<compile_context>
chip_gen: v6e
topology: v6e:2x2x1
jax: 0.10.0
libtpu: 0.0.40
codegen_flags: <defaults>
</compile_context>

<pallas_src>
import functools

import jax
import jax.numpy as jnp
from jax.experimental import pallas as pl
from jax.experimental.pallas import tpu as pltpu

_EPS = 1e-5  # nn.BatchNorm2d default
_VMEM_LIMIT = 32 * 1024 * 1024


# ------------------------------------------------------------------ utils ---

def _round_up(x, m):
    return ((x + m - 1) // m) * m


def _largest_tile(dim, target):
    """Largest multiple-of-8 divisor of `dim` that is <= target.

    `dim` must already be a multiple of 8."""
    t = min(target, dim)
    t -= t % 8
    while t >= 8:
        if dim % t == 0:
            return t
        t -= 8
    return dim


def _choose_k_tiling(k):
    """Return (tk, kp).  Small K runs as a single full-width step; large K
    prefers 512/256/128-wide steps (padding K up to a 256 multiple if no
    divisor exists — padded rows/cols are zero and contribute nothing)."""
    if k <= 512:
        return k, k
    for cand in (512, 256, 128):
        if k % cand == 0:
            return cand, k
    kp = _round_up(k, 256)
    return 256, kp


def _choose_m_tiling(m, grid_n, target):
    """Pick the row tile / padded row count; keep >=2 parallel blocks when
    the work is splittable so both v7x TensorCores are used."""
    tm = _round_up(min(target, _round_up(m, 8)), 8)
    mp = _round_up(m, tm)
    if (mp // tm) * grid_n < 2 and tm >= 16:
        tm = _round_up(tm // 2, 8)
        mp = _round_up(m, tm)
    return tm, mp


# ---------------------------------------------------------------- kernels ---

def _matmul_stats_kernel(a_ref, b_ref, o_ref, sum_ref, sq_ref, acc_ref):
    """Tiled A(M,K)@B(K,C), bf16 inputs, f32 accumulation in VMEM scratch.
    Emits the bf16 output plus fused per-channel sum / sum-of-squares (for
    BatchNorm) at the last K step."""
    kk = pl.program_id(2)

    @pl.when(kk == 0)
    def _():
        acc_ref[...] = jnp.zeros_like(acc_ref)

    acc_ref[...] += jnp.dot(a_ref[...], b_ref[...],
                            preferred_element_type=jnp.float32)

    @pl.when(kk == pl.num_programs(2) - 1)
    def _():
        acc = acc_ref[...]
        o_ref[...] = acc.astype(o_ref.dtype)
        col_sum = jnp.sum(acc, axis=0, keepdims=True)          # (1, tn)
        col_sq = jnp.sum(acc * acc, axis=0, keepdims=True)     # (1, tn)
        sum_ref[...] = jnp.broadcast_to(col_sum, sum_ref.shape)
        sq_ref[...] = jnp.broadcast_to(col_sq, sq_ref.shape)


def _affine_relu_kernel(y_ref, s_ref, b_ref, o_ref):
    # relu(y*scale + bias); widen bf16->f32 in-kernel, store bf16.
    y = y_ref[...].astype(jnp.float32)
    o_ref[...] = jnp.maximum(y * s_ref[...] + b_ref[...], 0.0).astype(o_ref.dtype)


def _affine_add_relu_kernel(y_ref, s_ref, b_ref, r_ref, o_ref):
    # relu(y*scale + bias + res) -- identity shortcut (no dead FMA).
    y = y_ref[...].astype(jnp.float32)
    r = r_ref[...].astype(jnp.float32)
    o_ref[...] = jnp.maximum(y * s_ref[...] + b_ref[...] + r,
                             0.0).astype(o_ref.dtype)


def _affine_add_affine_relu_kernel(y_ref, s_ref, b_ref, r_ref, rs_ref, rb_ref,
                                   o_ref):
    # relu((y*scale+bias) + (res*res_scale+res_bias)) -- projection shortcut.
    y = y_ref[...].astype(jnp.float32)
    r = r_ref[...].astype(jnp.float32)
    main = y * s_ref[...] + b_ref[...]
    res = r * rs_ref[...] + rb_ref[...]
    o_ref[...] = jnp.maximum(main + res, 0.0).astype(o_ref.dtype)


# --------------------------------------------------------------- wrappers ---

def pallas_conv_matmul(a_bf16, b_f32, *, tm_target=512):
    """A(M,K) bf16 @ B(K,C) -> (bf16 (Mp, Cpad), col_sum (Cpad,), col_sq (Cpad,)).

    B's channel dim is zero-padded to a multiple of 128 (lane-dense output,
    full MXU N) and cast to bf16; M is zero-padded to the row tile.  The per
    channel sum / sum-of-squares over rows are produced by the same kernel so
    BatchNorm statistics need no extra pass.  Padded rows/channels are zero
    and contribute nothing."""
    m, k = a_bf16.shape
    kb, c = b_f32.shape
    assert kb == k

    c_pad = _round_up(c, 128)
    tn = 256 if c_pad % 256 == 0 else 128
    grid_n = c_pad // tn

    tk, kp = _choose_k_tiling(k)
    grid_k = kp // tk

    tm, mp = _choose_m_tiling(m, grid_n, tm_target)
    grid_m = mp // tm

    a_p = a_bf16
    if mp != m or kp != k:
        a_p = jnp.pad(a_bf16, ((0, mp - m), (0, kp - k)))
    b_p = b_f32.astype(jnp.bfloat16)
    if kp != k or c_pad != c:
        b_p = jnp.pad(b_p, ((0, kp - k), (0, c_pad - c)))

    cost = pl.CostEstimate(
        flops=2 * mp * kp * c_pad,
        transcendentals=0,
        bytes_accessed=(grid_n * mp * kp * 2        # A re-streamed per N tile
                        + grid_m * kp * c_pad * 2   # B re-streamed per M tile
                        + mp * c_pad * 2            # bf16 output
                        + 2 * grid_m * 8 * c_pad * 4))  # stats outputs

    out, ssum, ssq = pl.pallas_call(
        _matmul_stats_kernel,
        out_shape=(
            jax.ShapeDtypeStruct((mp, c_pad), jnp.bfloat16),
            jax.ShapeDtypeStruct((grid_m * 8, c_pad), jnp.float32),
            jax.ShapeDtypeStruct((grid_m * 8, c_pad), jnp.float32),
        ),
        grid=(grid_m, grid_n, grid_k),
        in_specs=[
            pl.BlockSpec((tm, tk), lambda i, j, kk: (i, kk)),
            pl.BlockSpec((tk, tn), lambda i, j, kk: (kk, j)),
        ],
        out_specs=(
            pl.BlockSpec((tm, tn), lambda i, j, kk: (i, j)),
            pl.BlockSpec((8, tn), lambda i, j, kk: (i, j)),
            pl.BlockSpec((8, tn), lambda i, j, kk: (i, j)),
        ),
        scratch_shapes=[pltpu.VMEM((tm, tn), jnp.float32)],
        compiler_params=pltpu.CompilerParams(
            dimension_semantics=("parallel", "parallel", "arbitrary"),
            vmem_limit_bytes=_VMEM_LIMIT),
        cost_estimate=cost,
    )(a_p, b_p)

    # Each 8-row stats slab holds the same value replicated across sublanes.
    col_sum = ssum.reshape(grid_m, 8, c_pad)[:, 0, :].sum(axis=0)
    col_sq = ssq.reshape(grid_m, 8, c_pad)[:, 0, :].sum(axis=0)
    return out, col_sum, col_sq


def fused_bn_relu(y, scale, bias, res=None, res_scale=None, res_bias=None,
                  tm_target=512):
    """relu(y*scale + bias [+ res | + res*res_scale + res_bias]).

    Operates on the channel-padded (Mp, Cpad) bf16 slab produced by the conv
    matmul: Cpad is a multiple of 128 so every store is a full-width
    (unmasked) vst; bf16<->f32 widen/narrow happens inside the kernel."""
    mp, c_pad = y.shape
    assert c_pad % 128 == 0 and mp % 8 == 0

    tm = _largest_tile(mp, tm_target)
    if mp // tm < 2 and tm >= 16 and (tm // 2) % 8 == 0:
        tm //= 2  # keep both v7x TensorCores busy

    def row_spec():
        return pl.BlockSpec((tm, c_pad), lambda i: (i, 0))

    def chan_spec():
        return pl.BlockSpec((1, c_pad), lambda i: (0, 0))

    def chan(v):
        v = v.astype(jnp.float32).reshape(1, -1)
        if v.shape[1] != c_pad:
            v = jnp.pad(v, ((0, 0), (0, c_pad - v.shape[1])))
        return v

    args = [y.astype(jnp.bfloat16), chan(scale), chan(bias)]
    specs = [row_spec(), chan_spec(), chan_spec()]
    if res is None:
        kernel = _affine_relu_kernel
    else:
        args.append(res.astype(jnp.bfloat16))
        specs.append(row_spec())
        if res_scale is None:
            kernel = _affine_add_relu_kernel
        else:
            args += [chan(res_scale), chan(res_bias)]
            specs += [chan_spec(), chan_spec()]
            kernel = _affine_add_affine_relu_kernel

    return pl.pallas_call(
        kernel,
        out_shape=jax.ShapeDtypeStruct((mp, c_pad), jnp.bfloat16),
        grid=(mp // tm,),
        in_specs=specs,
        out_specs=pl.BlockSpec((tm, c_pad), lambda i: (i, 0)),
        compiler_params=pltpu.CompilerParams(
            dimension_semantics=("parallel",),
            vmem_limit_bytes=_VMEM_LIMIT),
    )(*args)


# ------------------------------------------------------------------- glue ---

def im2col(x_nhwc, ksize, stride, pad):
    """Extract conv patches (keeps input dtype, i.e. bf16 end-to-end).
    Returns ((M, kh*kw*C), (N, Ho, Wo))."""
    n, h, w, c = x_nhwc.shape
    x_p = jnp.pad(x_nhwc, ((0, 0), (pad, pad), (pad, pad), (0, 0))) if pad else x_nhwc
    ho = (h + 2 * pad - ksize) // stride + 1
    wo = (w + 2 * pad - ksize) // stride + 1
    patches = []
    for kh in range(ksize):
        for kw in range(ksize):
            sl = x_p[:, kh: kh + (ho - 1) * stride + 1: stride,
                        kw: kw + (wo - 1) * stride + 1: stride, :]
            patches.append(sl)
    p = jnp.stack(patches, axis=3)            # (N, Ho, Wo, kh*kw, C)
    return p.reshape(n * ho * wo, ksize * ksize * c), (n, ho, wo)


def conv_weight_to_matmul(w):
    """PyTorch (C_out, C_in, kh, kw) -> (kh*kw*C_in, C_out), matching im2col."""
    c_out = w.shape[0]
    return jnp.transpose(w, (2, 3, 1, 0)).reshape(-1, c_out)


def bn_scale_bias(col_sum, col_sq, n_rows, gamma, beta, eps=_EPS):
    """Training-mode BatchNorm folded to per-channel scale/bias from the fused
    per-channel sum / sum-of-squares (biased variance, like torch)."""
    mean = col_sum / n_rows
    # TODO(synk): E[x^2]-mean^2 can cancel for large-mean activations at real
    # depth; a centered second pass would be more robust.  Clamp keeps it sane.
    var = jnp.maximum(col_sq / n_rows - mean * mean, 0.0)
    scale = gamma / jnp.sqrt(var + eps)
    bias = beta - mean * scale
    return scale, bias


# ------------------------------------------------------------ BasicBlock ---

def init_basic_block_params(key, in_channels, out_channels, stride):
    ks = jax.random.split(key, 8)
    p = {
        "w1": 0.1 * jax.random.normal(ks[0], (out_channels, in_channels, 3, 3), jnp.float32),
        "g1": 1.0 + 0.05 * jax.random.normal(ks[1], (out_channels,), jnp.float32),
        "be1": 0.05 * jax.random.normal(ks[2], (out_channels,), jnp.float32),
        "w2": 0.1 * jax.random.normal(ks[3], (out_channels, out_channels, 3, 3), jnp.float32),
        "g2": 1.0 + 0.05 * jax.random.normal(ks[4], (out_channels,), jnp.float32),
        "be2": 0.05 * jax.random.normal(ks[5], (out_channels,), jnp.float32),
    }
    if stride != 1 or in_channels != out_channels:
        p["ws"] = 0.1 * jax.random.normal(ks[6], (out_channels, in_channels, 1, 1), jnp.float32)
        p["gs"] = 1.0 + 0.05 * jax.random.normal(ks[7], (out_channels,), jnp.float32)
        p["bes"] = jnp.zeros((out_channels,), jnp.float32)
    return p


@functools.partial(jax.jit, static_argnames=("stride",))
def basic_block_forward(x_nchw, params, stride):
    # NCHW -> NHWC and cast to bf16 BEFORE the patch build, so the 9x im2col
    # expansion is bf16 everywhere.
    x = jnp.transpose(x_nchw, (0, 2, 3, 1)).astype(jnp.bfloat16)
    n, h, w, c_in = x.shape
    c_out = params["w1"].shape[0]

    # --- residual branch: conv3x3(stride) -> BN -> ReLU ---
    p1, (n_, ho, wo) = im2col(x, 3, stride, 1)
    m = n_ * ho * wo
    y1, s1, q1 = pallas_conv_matmul(p1, conv_weight_to_matmul(params["w1"]))
    sc1, bi1 = bn_scale_bias(s1[:c_out], q1[:c_out], m, params["g1"], params["be1"])
    a1 = fused_bn_relu(y1, sc1, bi1)                         # (Mp, Cpad) bf16
    a1_img = a1[:m, :c_out].reshape(n_, ho, wo, c_out)

    # --- residual branch: conv3x3(1) -> BN ---
    p2, _ = im2col(a1_img, 3, 1, 1)
    y2, s2, q2 = pallas_conv_matmul(p2, conv_weight_to_matmul(params["w2"]))
    sc2, bi2 = bn_scale_bias(s2[:c_out], q2[:c_out], m, params["g2"], params["be2"])
    mp, c_pad = y2.shape

    # --- shortcut branch + fused add + ReLU ---
    if stride != 1 or c_in != c_out:
        ps, _ = im2col(x, 1, stride, 0)
        ys, ss, qs = pallas_conv_matmul(ps, conv_weight_to_matmul(params["ws"]))
        scs, bis = bn_scale_bias(ss[:c_out], qs[:c_out], m, params["gs"], params["bes"])
        assert ys.shape == y2.shape  # same M / padded-C tiling by construction
        out = fused_bn_relu(y2, sc2, bi2, res=ys, res_scale=scs, res_bias=bis)
    else:
        res = x.reshape(n * h * w, c_in)                     # identity (m == n*h*w)
        res = jnp.pad(res, ((0, mp - m), (0, c_pad - c_in)))
        out = fused_bn_relu(y2, sc2, bi2, res=res)

    out_img = out[:m, :c_out].reshape(n_, ho, wo, c_out)
    # NHWC -> NCHW at the module boundary to match the PyTorch interface.
    return jnp.transpose(out_img, (0, 3, 1, 2)).astype(jnp.float32)


# -------------------------------------------------------------- reference ---

def reference_basic_block(x, params, stride):
    """Plain-JAX f32 reference (training-mode BatchNorm), for a sanity check."""
    def conv(inp, wgt, s, pad):
        return jax.lax.conv_general_dilated(
            inp, wgt, (s, s), [(pad, pad), (pad, pad)],
            dimension_numbers=("NCHW", "OIHW", "NCHW"))

    def bn(yc, gamma, beta):
        mean = jnp.mean(yc, axis=(0, 2, 3), keepdims=True)
        var = jnp.var(yc, axis=(0, 2, 3), keepdims=True)
        g = gamma[None, :, None, None]
        b = beta[None, :, None, None]
        return (yc - mean) / jnp.sqrt(var + _EPS) * g + b

    r = jax.nn.relu(bn(conv(x, params["w1"], stride, 1), params["g1"], params["be1"]))
    r = bn(conv(r, params["w2"], 1, 1), params["g2"], params["be2"])
    if "ws" in params:
        s = bn(conv(x, params["ws"], stride, 0), params["gs"], params["bes"])
    else:
        s = x
    return jax.nn.relu(r + s)


if __name__ == "__main__":
    key = jax.random.PRNGKey(0)
    k_x, k_p = jax.random.split(key)

    batch, in_ch, out_ch, spatial, stride = 2, 4, 8, 16, 2
    x = jax.random.normal(k_x, (batch, in_ch, spatial, spatial), jnp.float32)
    params = init_basic_block_params(k_p, in_ch, out_ch, stride)

    y = basic_block_forward(x, params, stride)
    y = jax.block_until_ready(y)

    expected_shape = (batch, out_ch, spatial // stride, spatial // stride)
    assert y.shape == expected_shape, (y.shape, expected_shape)
    assert bool(jnp.all(jnp.isfinite(y)))
    assert bool(jnp.all(y >= 0.0))  # final ReLU

    # Loose sanity check vs a plain-JAX f32 reference (bf16 MXU inputs and
    # bf16 intermediate activations make small numerical differences expected).
    y_ref = reference_basic_block(x, params, stride)
    max_diff = float(jnp.max(jnp.abs(y - y_ref)))
    assert max_diff < 0.25, max_diff

    print("KERNEL_OK")
</pallas_src>

<mosaic_0001>
module attributes {stable_mosaic.version = 11 : i64} {
  func.func @_matmul_stats_kernel(%arg0: i32, %arg1: i32, %arg2: i32, %arg3: memref<64x36xbf16, #tpu.memory_space<vmem>>, %arg4: memref<36x128xbf16, #tpu.memory_space<vmem>>, %arg5: memref<64x128xbf16, #tpu.memory_space<vmem>>, %arg6: memref<8x128xf32, #tpu.memory_space<vmem>>, %arg7: memref<8x128xf32, #tpu.memory_space<vmem>>, %arg8: memref<64x128xf32, #tpu.memory_space<vmem>>) attributes {dimension_semantics = [#tpu.dimension_semantics<parallel>, #tpu.dimension_semantics<parallel>, #tpu.dimension_semantics<arbitrary>], iteration_bounds = array<i64: 2, 1, 1>, scalar_prefetch = 0 : i64, scratch_operands = 1 : i64, tpu.core_type = #tpu.core_type<tc>, window_params = [{transform_indices = @transform_0, window_bounds = array<i64: 64, 36>}, {transform_indices = @transform_1, window_bounds = array<i64: 36, 128>}, {transform_indices = @transform_2, window_bounds = array<i64: 64, 128>}, {transform_indices = @transform_3, window_bounds = array<i64: 8, 128>}, {transform_indices = @transform_4, window_bounds = array<i64: 8, 128>}]} {
    %c0_i32 = arith.constant 0 : i32
    %0 = arith.cmpi eq, %arg2, %c0_i32 : i32
    %1 = arith.extui %0 : i1 to i32
    %c0_i32_0 = arith.constant 0 : i32
    %2 = arith.cmpi ne, %1, %c0_i32_0 : i32
    scf.if %2 {
      %cst_10 = arith.constant 0.000000e+00 : f32
      %12 = vector.broadcast %cst_10 : f32 to vector<64x128xf32>
      %c0_11 = arith.constant 0 : index
      %c0_12 = arith.constant 0 : index
      %13 = vector.load %arg8[%c0_11, %c0_12] : memref<64x128xf32, #tpu.memory_space<vmem>>, vector<64x128xf32>
      tpu.vector_store %arg8[%c0_11, %c0_12], %12 {strides = array<i32>} : memref<64x128xf32, #tpu.memory_space<vmem>>, vector<64x128xf32>,
    } else {
    }
    %c0 = arith.constant 0 : index
    %c0_1 = arith.constant 0 : index
    %3 = vector.load %arg8[%c0, %c0_1] : memref<64x128xf32, #tpu.memory_space<vmem>>, vector<64x128xf32>
    %c0_2 = arith.constant 0 : index
    %c0_3 = arith.constant 0 : index
    %4 = vector.load %arg3[%c0_2, %c0_3] : memref<64x36xbf16, #tpu.memory_space<vmem>>, vector<64x36xbf16>
    %c0_4 = arith.constant 0 : index
    %c0_5 = arith.constant 0 : index
    %5 = vector.load %arg4[%c0_4, %c0_5] : memref<36x128xbf16, #tpu.memory_space<vmem>>, vector<36x128xbf16>
    %cst = arith.constant dense<0.000000e+00> : vector<64x128xf32>
    %6 = tpu.matmul %4, %5, %cst {dimension_numbers = #tpu.dot_dimension_numbers<[1], [0], [0], [1], [0, 0, 1, 1], [], []>} : vector<64x36xbf16>, vector<36x128xbf16>, vector<64x128xf32> -> vector<64x128xf32>
    %7 = arith.addf %3, %6 : vector<64x128xf32>
    %c0_6 = arith.constant 0 : index
    %c0_7 = arith.constant 0 : index
    %8 = vector.load %arg8[%c0_6, %c0_7] : memref<64x128xf32, #tpu.memory_space<vmem>>, vector<64x128xf32>
    tpu.vector_store %arg8[%c0_6, %c0_7], %7 {strides = array<i32>} : memref<64x128xf32, #tpu.memory_space<vmem>>, vector<64x128xf32>,
    %c0_i32_8 = arith.constant 0 : i32
    %9 = arith.cmpi eq, %arg2, %c0_i32_8 : i32
    %10 = arith.extui %9 : i1 to i32
    %c0_i32_9 = arith.constant 0 : i32
    %11 = arith.cmpi ne, %10, %c0_i32_9 : i32
    scf.if %11 {
      %c0_10 = arith.constant 0 : index
      %c0_11 = arith.constant 0 : index
      %12 = vector.load %arg8[%c0_10, %c0_11] : memref<64x128xf32, #tpu.memory_space<vmem>>, vector<64x128xf32>
      %13 = arith.truncf %12 : vector<64x128xf32> to vector<64x128xbf16>
      %c0_12 = arith.constant 0 : index
      %c0_13 = arith.constant 0 : index
      %14 = vector.load %arg5[%c0_12, %c0_13] : memref<64x128xbf16, #tpu.memory_space<vmem>>, vector<64x128xbf16>
      tpu.vector_store %arg5[%c0_12, %c0_13], %13 {strides = array<i32>} : memref<64x128xbf16, #tpu.memory_space<vmem>>, vector<64x128xbf16>,
      %cst_14 = arith.constant dense<0.000000e+00> : vector<128xf32>
      %15 = vector.multi_reduction <add>, %12, %cst_14 [0] : vector<64x128xf32> to vector<128xf32>
      %16 = vector.shape_cast %15 : vector<128xf32> to vector<1x128xf32>
      %17 = arith.mulf %12, %12 : vector<64x128xf32>
      %cst_15 = arith.constant dense<0.000000e+00> : vector<128xf32>
      %18 = vector.multi_reduction <add>, %17, %cst_15 [0] : vector<64x128xf32> to vector<128xf32>
      %19 = vector.shape_cast %18 : vector<128xf32> to vector<1x128xf32>
      %20 = vector.shape_cast %16 : vector<1x128xf32> to vector<1x128xf32>
      %21 = vector.broadcast %20 : vector<1x128xf32> to vector<8x128xf32>
      %c0_16 = arith.constant 0 : index
      %c0_17 = arith.constant 0 : index
      %22 = vector.load %arg6[%c0_16, %c0_17] : memref<8x128xf32, #tpu.memory_space<vmem>>, vector<8x128xf32>
      tpu.vector_store %arg6[%c0_16, %c0_17], %21 {strides = array<i32>} : memref<8x128xf32, #tpu.memory_space<vmem>>, vector<8x128xf32>,
      %23 = vector.shape_cast %19 : vector<1x128xf32> to vector<1x128xf32>
      %24 = vector.broadcast %23 : vector<1x128xf32> to vector<8x128xf32>
      %c0_18 = arith.constant 0 : index
      %c0_19 = arith.constant 0 : index
      %25 = vector.load %arg7[%c0_18, %c0_19] : memref<8x128xf32, #tpu.memory_space<vmem>>, vector<8x128xf32>
      tpu.vector_store %arg7[%c0_18, %c0_19], %24 {strides = array<i32>} : memref<8x128xf32, #tpu.memory_space<vmem>>, vector<8x128xf32>,
    } else {
    }
    return
  }
  func.func @transform_0(%arg0: i32, %arg1: i32, %arg2: i32) -> (i32, i32) {
    %c0_i32 = arith.constant 0 : i32
    return %arg0, %arg2 : i32, i32
  }
  func.func @transform_1(%arg0: i32, %arg1: i32, %arg2: i32) -> (i32, i32) {
    %c0_i32 = arith.constant 0 : i32
    return %arg2, %arg1 : i32, i32
  }
  func.func @transform_2(%arg0: i32, %arg1: i32, %arg2: i32) -> (i32, i32) {
    %c0_i32 = arith.constant 0 : i32
    return %arg0, %arg1 : i32, i32
  }
  func.func @transform_3(%arg0: i32, %arg1: i32, %arg2: i32) -> (i32, i32) {
    %c0_i32 = arith.constant 0 : i32
    return %arg0, %arg1 : i32, i32
  }
  func.func @transform_4(%arg0: i32, %arg1: i32, %arg2: i32) -> (i32, i32) {
    %c0_i32 = arith.constant 0 : i32
    return %arg0, %arg1 : i32, i32
  }
}

module attributes {stable_mosaic.version = 11 : i64} {
  func.func @_affine_relu_kernel(%arg0: i32, %arg1: memref<64x128xbf16, #tpu.memory_space<vmem>>, %arg2: memref<1x128xf32, #tpu.memory_space<vmem>>, %arg3: memref<1x128xf32, #tpu.memory_space<vmem>>, %arg4: memref<64x128xbf16, #tpu.memory_space<vmem>>) attributes {dimension_semantics = [#tpu.dimension_semantics<parallel>], iteration_bounds = array<i64: 2>, scalar_prefetch = 0 : i64, scratch_operands = 0 : i64, tpu.core_type = #tpu.core_type<tc>, window_params = [{transform_indices = @transform_0, window_bounds = array<i64: 64, 128>}, {pipeline_mode = #tpu.pipeline_mode<synchronous>, transform_indices = @transform_1, window_bounds = array<i64: 1, 128>}, {pipeline_mode = #tpu.pipeline_mode<synchronous>, transform_indices = @transform_2, window_bounds = array<i64: 1, 128>}, {transform_indices = @transform_3, window_bounds = array<i64: 64, 128>}]} {
    %c0 = arith.constant 0 : index
    %c0_0 = arith.constant 0 : index
    %0 = vector.load %arg1[%c0, %c0_0] : memref<64x128xbf16, #tpu.memory_space<vmem>>, vector<64x128xbf16>
    %1 = arith.extf %0 : vector<64x128xbf16> to vector<64x128xf32>
    %c0_1 = arith.constant 0 : index
    %c0_2 = arith.constant 0 : index
    %2 = vector.load %arg2[%c0_1, %c0_2] : memref<1x128xf32, #tpu.memory_space<vmem>>, vector<1x128xf32>
    %3 = vector.broadcast %2 : vector<1x128xf32> to vector<64x128xf32>
    %4 = arith.mulf %1, %3 : vector<64x128xf32>
    %c0_3 = arith.constant 0 : index
    %c0_4 = arith.constant 0 : index
    %5 = vector.load %arg3[%c0_3, %c0_4] : memref<1x128xf32, #tpu.memory_space<vmem>>, vector<1x128xf32>
    %6 = vector.broadcast %5 : vector<1x128xf32> to vector<64x128xf32>
    %7 = arith.addf %4, %6 : vector<64x128xf32>
    %cst = arith.constant 0.000000e+00 : f32
    %8 = vector.broadcast %cst : f32 to vector<64x128xf32>
    %9 = arith.maximumf %7, %8 : vector<64x128xf32>
    %10 = arith.truncf %9 : vector<64x128xf32> to vector<64x128xbf16>
    %c0_5 = arith.constant 0 : index
    %c0_6 = arith.constant 0 : index
    %11 = vector.load %arg4[%c0_5, %c0_6] : memref<64x128xbf16, #tpu.memory_space<vmem>>, vector<64x128xbf16>
    tpu.vector_store %arg4[%c0_5, %c0_6], %10 {strides = array<i32>} : memref<64x128xbf16, #tpu.memory_space<vmem>>, vector<64x128xbf16>,
    return
  }
  func.func @transform_0(%arg0: i32) -> (i32, i32) {
    %c0_i32 = arith.constant 0 : i32
    %c0_i32_0 = arith.constant 0 : i32
    return %arg0, %c0_i32 : i32, i32
  }
  func.func @transform_1(%arg0: i32) -> (i32, i32) {
    %c0_i32 = arith.constant 0 : i32
    %c0_i32_0 = arith.constant 0 : i32
    %c0_i32_1 = arith.constant 0 : i32
    return %c0_i32, %c0_i32_0 : i32, i32
  }
  func.func @transform_2(%arg0: i32) -> (i32, i32) {
    %c0_i32 = arith.constant 0 : i32
    %c0_i32_0 = arith.constant 0 : i32
    %c0_i32_1 = arith.constant 0 : i32
    return %c0_i32, %c0_i32_0 : i32, i32
  }
  func.func @transform_3(%arg0: i32) -> (i32, i32) {
    %c0_i32 = arith.constant 0 : i32
    %c0_i32_0 = arith.constant 0 : i32
    return %arg0, %c0_i32 : i32, i32
  }
}

module attributes {stable_mosaic.version = 11 : i64} {
  func.func @_matmul_stats_kernel(%arg0: i32, %arg1: i32, %arg2: i32, %arg3: memref<64x72xbf16, #tpu.memory_space<vmem>>, %arg4: memref<72x128xbf16, #tpu.memory_space<vmem>>, %arg5: memref<64x128xbf16, #tpu.memory_space<vmem>>, %arg6: memref<8x128xf32, #tpu.memory_space<vmem>>, %arg7: memref<8x128xf32, #tpu.memory_space<vmem>>, %arg8: memref<64x128xf32, #tpu.memory_space<vmem>>) attributes {dimension_semantics = [#tpu.dimension_semantics<parallel>, #tpu.dimension_semantics<parallel>, #tpu.dimension_semantics<arbitrary>], iteration_bounds = array<i64: 2, 1, 1>, scalar_prefetch = 0 : i64, scratch_operands = 1 : i64, tpu.core_type = #tpu.core_type<tc>, window_params = [{transform_indices = @transform_0, window_bounds = array<i64: 64, 72>}, {transform_indices = @transform_1, window_bounds = array<i64: 72, 128>}, {transform_indices = @transform_2, window_bounds = array<i64: 64, 128>}, {transform_indices = @transform_3, window_bounds = array<i64: 8, 128>}, {transform_indices = @transform_4, window_bounds = array<i64: 8, 128>}]} {
    %c0_i32 = arith.constant 0 : i32
    %0 = arith.cmpi eq, %arg2, %c0_i32 : i32
    %1 = arith.extui %0 : i1 to i32
    %c0_i32_0 = arith.constant 0 : i32
    %2 = arith.cmpi ne, %1, %c0_i32_0 : i32
    scf.if %2 {
      %cst_10 = arith.constant 0.000000e+00 : f32
      %12 = vector.broadcast %cst_10 : f32 to vector<64x128xf32>
      %c0_11 = arith.constant 0 : index
      %c0_12 = arith.constant 0 : index
      %13 = vector.load %arg8[%c0_11, %c0_12] : memref<64x128xf32, #tpu.memory_space<vmem>>, vector<64x128xf32>
      tpu.vector_store %arg8[%c0_11, %c0_12], %12 {strides = array<i32>} : memref<64x128xf32, #tpu.memory_space<vmem>>, vector<64x128xf32>,
    } else {
    }
    %c0 = arith.constant 0 : index
    %c0_1 = arith.constant 0 : index
    %3 = vector.load %arg8[%c0, %c0_1] : memref<64x128xf32, #tpu.memory_space<vmem>>, vector<64x128xf32>
    %c0_2 = arith.constant 0 : index
    %c0_3 = arith.constant 0 : index
    %4 = vector.load %arg3[%c0_2, %c0_3] : memref<64x72xbf16, #tpu.memory_space<vmem>>, vector<64x72xbf16>
    %c0_4 = arith.constant 0 : index
    %c0_5 = arith.constant 0 : index
    %5 = vector.load %arg4[%c0_4, %c0_5] : memref<72x128xbf16, #tpu.memory_space<vmem>>, vector<72x128xbf16>
    %cst = arith.constant dense<0.000000e+00> : vector<64x128xf32>
    %6 = tpu.matmul %4, %5, %cst {dimension_numbers = #tpu.dot_dimension_numbers<[1], [0], [0], [1], [0, 0, 1, 1], [], []>} : vector<64x72xbf16>, vector<72x128xbf16>, vector<64x128xf32> -> vector<64x128xf32>
    %7 = arith.addf %3, %6 : vector<64x128xf32>
    %c0_6 = arith.constant 0 : index
    %c0_7 = arith.constant 0 : index
    %8 = vector.load %arg8[%c0_6, %c0_7] : memref<64x128xf32, #tpu.memory_space<vmem>>, vector<64x128xf32>
    tpu.vector_store %arg8[%c0_6, %c0_7], %7 {strides = array<i32>} : memref<64x128xf32, #tpu.memory_space<vmem>>, vector<64x128xf32>,
    %c0_i32_8 = arith.constant 0 : i32
    %9 = arith.cmpi eq, %arg2, %c0_i32_8 : i32
    %10 = arith.extui %9 : i1 to i32
    %c0_i32_9 = arith.constant 0 : i32
    %11 = arith.cmpi ne, %10, %c0_i32_9 : i32
    scf.if %11 {
      %c0_10 = arith.constant 0 : index
      %c0_11 = arith.constant 0 : index
      %12 = vector.load %arg8[%c0_10, %c0_11] : memref<64x128xf32, #tpu.memory_space<vmem>>, vector<64x128xf32>
      %13 = arith.truncf %12 : vector<64x128xf32> to vector<64x128xbf16>
      %c0_12 = arith.constant 0 : index
      %c0_13 = arith.constant 0 : index
      %14 = vector.load %arg5[%c0_12, %c0_13] : memref<64x128xbf16, #tpu.memory_space<vmem>>, vector<64x128xbf16>
      tpu.vector_store %arg5[%c0_12, %c0_13], %13 {strides = array<i32>} : memref<64x128xbf16, #tpu.memory_space<vmem>>, vector<64x128xbf16>,
      %cst_14 = arith.constant dense<0.000000e+00> : vector<128xf32>
      %15 = vector.multi_reduction <add>, %12, %cst_14 [0] : vector<64x128xf32> to vector<128xf32>
      %16 = vector.shape_cast %15 : vector<128xf32> to vector<1x128xf32>
      %17 = arith.mulf %12, %12 : vector<64x128xf32>
      %cst_15 = arith.constant dense<0.000000e+00> : vector<128xf32>
      %18 = vector.multi_reduction <add>, %17, %cst_15 [0] : vector<64x128xf32> to vector<128xf32>
      %19 = vector.shape_cast %18 : vector<128xf32> to vector<1x128xf32>
      %20 = vector.shape_cast %16 : vector<1x128xf32> to vector<1x128xf32>
      %21 = vector.broadcast %20 : vector<1x128xf32> to vector<8x128xf32>
      %c0_16 = arith.constant 0 : index
      %c0_17 = arith.constant 0 : index
      %22 = vector.load %arg6[%c0_16, %c0_17] : memref<8x128xf32, #tpu.memory_space<vmem>>, vector<8x128xf32>
      tpu.vector_store %arg6[%c0_16, %c0_17], %21 {strides = array<i32>} : memref<8x128xf32, #tpu.memory_space<vmem>>, vector<8x128xf32>,
      %23 = vector.shape_cast %19 : vector<1x128xf32> to vector<1x128xf32>
      %24 = vector.broadcast %23 : vector<1x128xf32> to vector<8x128xf32>
      %c0_18 = arith.constant 0 : index
      %c0_19 = arith.constant 0 : index
      %25 = vector.load %arg7[%c0_18, %c0_19] : memref<8x128xf32, #tpu.memory_space<vmem>>, vector<8x128xf32>
      tpu.vector_store %arg7[%c0_18, %c0_19], %24 {strides = array<i32>} : memref<8x128xf32, #tpu.memory_space<vmem>>, vector<8x128xf32>,
    } else {
    }
    return
  }
  func.func @transform_0(%arg0: i32, %arg1: i32, %arg2: i32) -> (i32, i32) {
    %c0_i32 = arith.constant 0 : i32
    return %arg0, %arg2 : i32, i32
  }
  func.func @transform_1(%arg0: i32, %arg1: i32, %arg2: i32) -> (i32, i32) {
    %c0_i32 = arith.constant 0 : i32
    return %arg2, %arg1 : i32, i32
  }
  func.func @transform_2(%arg0: i32, %arg1: i32, %arg2: i32) -> (i32, i32) {
    %c0_i32 = arith.constant 0 : i32
    return %arg0, %arg1 : i32, i32
  }
  func.func @transform_3(%arg0: i32, %arg1: i32, %arg2: i32) -> (i32, i32) {
    %c0_i32 = arith.constant 0 : i32
    return %arg0, %arg1 : i32, i32
  }
  func.func @transform_4(%arg0: i32, %arg1: i32, %arg2: i32) -> (i32, i32) {
    %c0_i32 = arith.constant 0 : i32
    return %arg0, %arg1 : i32, i32
  }
}

module attributes {stable_mosaic.version = 11 : i64} {
  func.func @_affine_add_affine_relu_kernel(%arg0: i32, %arg1: memref<64x128xbf16, #tpu.memory_space<vmem>>, %arg2: memref<1x128xf32, #tpu.memory_space<vmem>>, %arg3: memref<1x128xf32, #tpu.memory_space<vmem>>, %arg4: memref<64x128xbf16, #tpu.memory_space<vmem>>, %arg5: memref<1x128xf32, #tpu.memory_space<vmem>>, %arg6: memref<1x128xf32, #tpu.memory_space<vmem>>, %arg7: memref<64x128xbf16, #tpu.memory_space<vmem>>) attributes {dimension_semantics = [#tpu.dimension_semantics<parallel>], iteration_bounds = array<i64: 2>, scalar_prefetch = 0 : i64, scratch_operands = 0 : i64, tpu.core_type = #tpu.core_type<tc>, window_params = [{transform_indices = @transform_0, window_bounds = array<i64: 64, 128>}, {pipeline_mode = #tpu.pipeline_mode<synchronous>, transform_indices = @transform_1, window_bounds = array<i64: 1, 128>}, {pipeline_mode = #tpu.pipeline_mode<synchronous>, transform_indices = @transform_2, window_bounds = array<i64: 1, 128>}, {transform_indices = @transform_3, window_bounds = array<i64: 64, 128>}, {pipeline_mode = #tpu.pipeline_mode<synchronous>, transform_indices = @transform_4, window_bounds = array<i64: 1, 128>}, {pipeline_mode = #tpu.pipeline_mode<synchronous>, transform_indices = @transform_5, window_bounds = array<i64: 1, 128>}, {transform_indices = @transform_6, window_bounds = array<i64: 64, 128>}]} {
    %c0 = arith.constant 0 : index
    %c0_0 = arith.constant 0 : index
    %0 = vector.load %arg1[%c0, %c0_0] : memref<64x128xbf16, #tpu.memory_space<vmem>>, vector<64x128xbf16>
    %1 = arith.extf %0 : vector<64x128xbf16> to vector<64x128xf32>
    %c0_1 = arith.constant 0 : index
    %c0_2 = arith.constant 0 : index
    %2 = vector.load %arg4[%c0_1, %c0_2] : memref<64x128xbf16, #tpu.memory_space<vmem>>, vector<64x128xbf16>
    %3 = arith.extf %2 : vector<64x128xbf16> to vector<64x128xf32>
    %c0_3 = arith.constant 0 : index
    %c0_4 = arith.constant 0 : index
    %4 = vector.load %arg2[%c0_3, %c0_4] : memref<1x128xf32, #tpu.memory_space<vmem>>, vector<1x128xf32>
    %5 = vector.broadcast %4 : vector<1x128xf32> to vector<64x128xf32>
    %6 = arith.mulf %1, %5 : vector<64x128xf32>
    %c0_5 = arith.constant 0 : index
    %c0_6 = arith.constant 0 : index
    %7 = vector.load %arg3[%c0_5, %c0_6] : memref<1x128xf32, #tpu.memory_space<vmem>>, vector<1x128xf32>
    %8 = vector.broadcast %7 : vector<1x128xf32> to vector<64x128xf32>
    %9 = arith.addf %6, %8 : vector<64x128xf32>
    %c0_7 = arith.constant 0 : index
    %c0_8 = arith.constant 0 : index
    %10 = vector.load %arg5[%c0_7, %c0_8] : memref<1x128xf32, #tpu.memory_space<vmem>>, vector<1x128xf32>
    %11 = vector.broadcast %10 : vector<1x128xf32> to vector<64x128xf32>
    %12 = arith.mulf %3, %11 : vector<64x128xf32>
    %c0_9 = arith.constant 0 : index
    %c0_10 = arith.constant 0 : index
    %13 = vector.load %arg6[%c0_9, %c0_10] : memref<1x128xf32, #tpu.memory_space<vmem>>, vector<1x128xf32>
    %14 = vector.broadcast %13 : vector<1x128xf32> to vector<64x128xf32>
    %15 = arith.addf %12, %14 : vector<64x128xf32>
    %16 = arith.addf %9, %15 : vector<64x128xf32>
    %cst = arith.constant 0.000000e+00 : f32
    %17 = vector.broadcast %cst : f32 to vector<64x128xf32>
    %18 = arith.maximumf %16, %17 : vector<64x128xf32>
    %19 = arith.truncf %18 : vector<64x128xf32> to vector<64x128xbf16>
    %c0_11 = arith.constant 0 : index
    %c0_12 = arith.constant 0 : index
    %20 = vector.load %arg7[%c0_11, %c0_12] : memref<64x128xbf16, #tpu.memory_space<vmem>>, vector<64x128xbf16>
    tpu.vector_store %arg7[%c0_11, %c0_12], %19 {strides = array<i32>} : memref<64x128xbf16, #tpu.memory_space<vmem>>, vector<64x128xbf16>,
    return
  }
  func.func @transform_0(%arg0: i32) -> (i32, i32) {
    %c0_i32 = arith.constant 0 : i32
    %c0_i32_0 = arith.constant 0 : i32
    return %arg0, %c0_i32 : i32, i32
  }
  func.func @transform_1(%arg0: i32) -> (i32, i32) {
    %c0_i32 = arith.constant 0 : i32
    %c0_i32_0 = arith.constant 0 : i32
    %c0_i32_1 = arith.constant 0 : i32
    return %c0_i32, %c0_i32_0 : i32, i32
  }
  func.func @transform_2(%arg0: i32) -> (i32, i32) {
    %c0_i32 = arith.constant 0 : i32
    %c0_i32_0 = arith.constant 0 : i32
    %c0_i32_1 = arith.constant 0 : i32
    return %c0_i32, %c0_i32_0 : i32, i32
  }
  func.func @transform_3(%arg0: i32) -> (i32, i32) {
    %c0_i32 = arith.constant 0 : i32
    %c0_i32_0 = arith.constant 0 : i32
    return %arg0, %c0_i32 : i32, i32
  }
  func.func @transform_4(%arg0: i32) -> (i32, i32) {
    %c0_i32 = arith.constant 0 : i32
    %c0_i32_0 = arith.constant 0 : i32
    %c0_i32_1 = arith.constant 0 : i32
    return %c0_i32, %c0_i32_0 : i32, i32
  }
  func.func @transform_5(%arg0: i32) -> (i32, i32) {
    %c0_i32 = arith.constant 0 : i32
    %c0_i32_0 = arith.constant 0 : i32
    %c0_i32_1 = arith.constant 0 : i32
    return %c0_i32, %c0_i32_0 : i32, i32
  }
  func.func @transform_6(%arg0: i32) -> (i32, i32) {
    %c0_i32 = arith.constant 0 : i32
    %c0_i32_0 = arith.constant 0 : i32
    return %arg0, %c0_i32 : i32, i32
  }
}

module attributes {stable_mosaic.version = 11 : i64} {
  func.func @_matmul_stats_kernel(%arg0: i32, %arg1: i32, %arg2: i32, %arg3: memref<64x4xbf16, #tpu.memory_space<vmem>>, %arg4: memref<4x128xbf16, #tpu.memory_space<vmem>>, %arg5: memref<64x128xbf16, #tpu.memory_space<vmem>>, %arg6: memref<8x128xf32, #tpu.memory_space<vmem>>, %arg7: memref<8x128xf32, #tpu.memory_space<vmem>>, %arg8: memref<64x128xf32, #tpu.memory_space<vmem>>) attributes {dimension_semantics = [#tpu.dimension_semantics<parallel>, #tpu.dimension_semantics<parallel>, #tpu.dimension_semantics<arbitrary>], iteration_bounds = array<i64: 2, 1, 1>, scalar_prefetch = 0 : i64, scratch_operands = 1 : i64, tpu.core_type = #tpu.core_type<tc>, window_params = [{transform_indices = @transform_0, window_bounds = array<i64: 64, 4>}, {transform_indices = @transform_1, window_bounds = array<i64: 4, 128>}, {transform_indices = @transform_2, window_bounds = array<i64: 64, 128>}, {transform_indices = @transform_3, window_bounds = array<i64: 8, 128>}, {transform_indices = @transform_4, window_bounds = array<i64: 8, 128>}]} {
    %c0_i32 = arith.constant 0 : i32
    %0 = arith.cmpi eq, %arg2, %c0_i32 : i32
    %1 = arith.extui %0 : i1 to i32
    %c0_i32_0 = arith.constant 0 : i32
    %2 = arith.cmpi ne, %1, %c0_i32_0 : i32
    scf.if %2 {
      %cst_10 = arith.constant 0.000000e+00 : f32
      %12 = vector.broadcast %cst_10 : f32 to vector<64x128xf32>
      %c0_11 = arith.constant 0 : index
      %c0_12 = arith.constant 0 : index
      %13 = vector.load %arg8[%c0_11, %c0_12] : memref<64x128xf32, #tpu.memory_space<vmem>>, vector<64x128xf32>
      tpu.vector_store %arg8[%c0_11, %c0_12], %12 {strides = array<i32>} : memref<64x128xf32, #tpu.memory_space<vmem>>, vector<64x128xf32>,
    } else {
    }
    %c0 = arith.constant 0 : index
    %c0_1 = arith.constant 0 : index
    %3 = vector.load %arg8[%c0, %c0_1] : memref<64x128xf32, #tpu.memory_space<vmem>>, vector<64x128xf32>
    %c0_2 = arith.constant 0 : index
    %c0_3 = arith.constant 0 : index
    %4 = vector.load %arg3[%c0_2, %c0_3] : memref<64x4xbf16, #tpu.memory_space<vmem>>, vector<64x4xbf16>
    %c0_4 = arith.constant 0 : index
    %c0_5 = arith.constant 0 : index
    %5 = vector.load %arg4[%c0_4, %c0_5] : memref<4x128xbf16, #tpu.memory_space<vmem>>, vector<4x128xbf16>
    %cst = arith.constant dense<0.000000e+00> : vector<64x128xf32>
    %6 = tpu.matmul %4, %5, %cst {dimension_numbers = #tpu.dot_dimension_numbers<[1], [0], [0], [1], [0, 0, 1, 1], [], []>} : vector<64x4xbf16>, vector<4x128xbf16>, vector<64x128xf32> -> vector<64x128xf32>
    %7 = arith.addf %3, %6 : vector<64x128xf32>
    %c0_6 = arith.constant 0 : index
    %c0_7 = arith.constant 0 : index
    %8 = vector.load %arg8[%c0_6, %c0_7] : memref<64x128xf32, #tpu.memory_space<vmem>>, vector<64x128xf32>
    tpu.vector_store %arg8[%c0_6, %c0_7], %7 {strides = array<i32>} : memref<64x128xf32, #tpu.memory_space<vmem>>, vector<64x128xf32>,
    %c0_i32_8 = arith.constant 0 : i32
    %9 = arith.cmpi eq, %arg2, %c0_i32_8 : i32
    %10 = arith.extui %9 : i1 to i32
    %c0_i32_9 = arith.constant 0 : i32
    %11 = arith.cmpi ne, %10, %c0_i32_9 : i32
    scf.if %11 {
      %c0_10 = arith.constant 0 : index
      %c0_11 = arith.constant 0 : index
      %12 = vector.load %arg8[%c0_10, %c0_11] : memref<64x128xf32, #tpu.memory_space<vmem>>, vector<64x128xf32>
      %13 = arith.truncf %12 : vector<64x128xf32> to vector<64x128xbf16>
      %c0_12 = arith.constant 0 : index
      %c0_13 = arith.constant 0 : index
      %14 = vector.load %arg5[%c0_12, %c0_13] : memref<64x128xbf16, #tpu.memory_space<vmem>>, vector<64x128xbf16>
      tpu.vector_store %arg5[%c0_12, %c0_13], %13 {strides = array<i32>} : memref<64x128xbf16, #tpu.memory_space<vmem>>, vector<64x128xbf16>,
      %cst_14 = arith.constant dense<0.000000e+00> : vector<128xf32>
      %15 = vector.multi_reduction <add>, %12, %cst_14 [0] : vector<64x128xf32> to vector<128xf32>
      %16 = vector.shape_cast %15 : vector<128xf32> to vector<1x128xf32>
      %17 = arith.mulf %12, %12 : vector<64x128xf32>
      %cst_15 = arith.constant dense<0.000000e+00> : vector<128xf32>
      %18 = vector.multi_reduction <add>, %17, %cst_15 [0] : vector<64x128xf32> to vector<128xf32>
      %19 = vector.shape_cast %18 : vector<128xf32> to vector<1x128xf32>
      %20 = vector.shape_cast %16 : vector<1x128xf32> to vector<1x128xf32>
      %21 = vector.broadcast %20 : vector<1x128xf32> to vector<8x128xf32>
      %c0_16 = arith.constant 0 : index
      %c0_17 = arith.constant 0 : index
      %22 = vector.load %arg6[%c0_16, %c0_17] : memref<8x128xf32, #tpu.memory_space<vmem>>, vector<8x128xf32>
      tpu.vector_store %arg6[%c0_16, %c0_17], %21 {strides = array<i32>} : memref<8x128xf32, #tpu.memory_space<vmem>>, vector<8x128xf32>,
      %23 = vector.shape_cast %19 : vector<1x128xf32> to vector<1x128xf32>
      %24 = vector.broadcast %23 : vector<1x128xf32> to vector<8x128xf32>
      %c0_18 = arith.constant 0 : index
      %c0_19 = arith.constant 0 : index
      %25 = vector.load %arg7[%c0_18, %c0_19] : memref<8x128xf32, #tpu.memory_space<vmem>>, vector<8x128xf32>
      tpu.vector_store %arg7[%c0_18, %c0_19], %24 {strides = array<i32>} : memref<8x128xf32, #tpu.memory_space<vmem>>, vector<8x128xf32>,
    } else {
    }
    return
  }
  func.func @transform_0(%arg0: i32, %arg1: i32, %arg2: i32) -> (i32, i32) {
    %c0_i32 = arith.constant 0 : i32
    return %arg0, %arg2 : i32, i32
  }
  func.func @transform_1(%arg0: i32, %arg1: i32, %arg2: i32) -> (i32, i32) {
    %c0_i32 = arith.constant 0 : i32
    return %arg2, %arg1 : i32, i32
  }
  func.func @transform_2(%arg0: i32, %arg1: i32, %arg2: i32) -> (i32, i32) {
    %c0_i32 = arith.constant 0 : i32
    return %arg0, %arg1 : i32, i32
  }
  func.func @transform_3(%arg0: i32, %arg1: i32, %arg2: i32) -> (i32, i32) {
    %c0_i32 = arith.constant 0 : i32
    return %arg0, %arg1 : i32, i32
  }
  func.func @transform_4(%arg0: i32, %arg1: i32, %arg2: i32) -> (i32, i32) {
    %c0_i32 = arith.constant 0 : i32
    return %arg0, %arg1 : i32, i32
  }
}

</mosaic_0001>

<llo_original>
// kernel: basic_block_forward.6
$region0: #{basic_block_forward.6}
  #allocation0 [shape = 'u32[]', space=smem, size = 0x4, offset = 0x4, fixed_abs, tag = 'smem constant byte address 0x4 - core index']
  #allocation1 [shape = 'u32[144,128]{1,0:T(1,128)}', space=vmem, size = 0x12000, scoped, tag = 'internal scratch']
  %s0 = inlined_call_operand.vmem [shape: bf16[128,128], index: 0, kind: input, shape index: {}]
  %s1 = inlined_call_operand.vmem [shape: f32[1,128], index: 1, kind: input, shape index: {}]
  %s2 = inlined_call_operand.vmem [shape: f32[1,128], index: 2, kind: input, shape index: {}]
  %s3 = inlined_call_operand.vmem [shape: bf16[128,128], index: 3, kind: output, shape index: {}]
  %s4 = sld [smem:[#allocation0]]
  $region45: #{basic_block_forward.6} parent=0
    _
  %s6 = ssub.s32 1, %s4
  %s7 = scalar_select 0, %s6, %s4
  loop: start=0, step=1, limit=4
  $region2: #{basic_block_forward.6} parent=0 // loop_pre_header
    _
  $region3: #{basic_block_forward.6} parent=0 // loop_header
    %s9 = sphi 0, %s13
    %p10 = scmp.ge.s32.totalorder %s9, 4
    %s19 = sphi 0, %s21
    %s22 = sphi 0, %s19
    %s23 = sphi 0, %s22
    %s39 = sphi 0, %s23
    %s43 = sphi 0, %s43
    %s45 = sphi 0, %s43
    %s46 = sphi 0, %s45
    %s60 = sphi 0, %s46
    %s64 = sphi 0, %s64
    %s66 = sphi 0, %s64
    %s67 = sphi 0, %s66
    %s81 = sphi 0, %s67
    %s87 = sphi 0, %s89
    %s90 = sphi 0, %s87
    %s91 = sphi 0, %s90
    %s107 = sphi 0, %s91
  $region4: #{basic_block_forward.6} parent=0 // loop_header_branch
    %12 = sbr.rel (%p10) target = $region8
  $region5: #{basic_block_forward.6} parent=0 // loop_body
    %s14 = ssub.s32 %s9, 1
    %s15 = ssub.s32 %s9, 2
    %s16 = sadd.s32 %s9, 1
    %s17 = ssub.s32 %s9, %s16
    %p18 = scmp.eq.s32.totalorder %s17, 0
    %s20 = sadd.s32 %s19, 1
    %s21 = scalar_select %p18, %s19, %s20
    %p24 = pneg %p18
    %p25 = scmp.eq.s32.totalorder %s9, 1
    %p26 = por %p24, %p25
    %p27 = scmp.ne.s32.totalorder %s19, %s22
    %p28 = scmp.eq.s32.totalorder %s9, 0
    %p29 = por %p27, %p28
    %p30 = scmp.ne.s32.totalorder %s19, %s22
    %p31 = scmp.eq.s32.totalorder %s14, 1
    %p32 = por %p30, %p31
    %p33 = scmp.ne.s32.totalorder %s22, %s23
    %p34 = scmp.eq.s32.totalorder %s14, 0
    %p35 = por %p33, %p34
    %p36 = scmp.ne.s32.totalorder %s22, %s23
    %p37 = scmp.eq.s32.totalorder %s15, 1
    %p38 = por %p36, %p37
    %p40 = scmp.ne.s32.totalorder %s23, %s39
    %p41 = scmp.eq.s32.totalorder %s15, 0
    %p42 = por %p40, %p41
    %s44 = sadd.s32 %s43, 1
    %p47 = scmp.eq.s32.totalorder %s9, 1
    %p48 = scmp.ne.s32.totalorder %s43, %s45
    %p49 = scmp.eq.s32.totalorder %s9, 0
    %p50 = por %p48, %p49
    %p51 = scmp.ne.s32.totalorder %s43, %s45
    %p52 = scmp.eq.s32.totalorder %s14, 1
    %p53 = por %p51, %p52
    %p54 = scmp.ne.s32.totalorder %s45, %s46
    %p55 = scmp.eq.s32.totalorder %s14, 0
    %p56 = por %p54, %p55
    %p57 = scmp.ne.s32.totalorder %s45, %s46
    %p58 = scmp.eq.s32.totalorder %s15, 1
    %p59 = por %p57, %p58
    %p61 = scmp.ne.s32.totalorder %s46, %s60
    %p62 = scmp.eq.s32.totalorder %s15, 0
    %p63 = por %p61, %p62
    %s65 = sadd.s32 %s64, 1
    %p68 = scmp.eq.s32.totalorder %s9, 1
    %p69 = scmp.ne.s32.totalorder %s64, %s66
    %p70 = scmp.eq.s32.totalorder %s9, 0
    %p71 = por %p69, %p70
    %p72 = scmp.ne.s32.totalorder %s64, %s66
    %p73 = scmp.eq.s32.totalorder %s14, 1
    %p74 = por %p72, %p73
    %p75 = scmp.ne.s32.totalorder %s66, %s67
    %p76 = scmp.eq.s32.totalorder %s14, 0
    %p77 = por %p75, %p76
    %p78 = scmp.ne.s32.totalorder %s66, %s67
    %p79 = scmp.eq.s32.totalorder %s15, 1
    %p80 = por %p78, %p79
    %p82 = scmp.ne.s32.totalorder %s67, %s81
    %p83 = scmp.eq.s32.totalorder %s15, 0
    %p84 = por %p82, %p83
    %s85 = ssub.s32 %s9, %s16
    %p86 = scmp.eq.s32.totalorder %s85, 0
    %s88 = sadd.s32 %s87, 1
    %s89 = scalar_select %p86, %s87, %s88
    %p92 = pneg %p86
    %p93 = scmp.eq.s32.totalorder %s9, 1
    %p94 = por %p92, %p93
    %p95 = scmp.ne.s32.totalorder %s87, %s90
    %p96 = scmp.eq.s32.totalorder %s9, 0
    %p97 = por %p95, %p96
    %p98 = scmp.ne.s32.totalorder %s87, %s90
    %p99 = scmp.eq.s32.totalorder %s14, 1
    %p100 = por %p98, %p99
    %p101 = scmp.ne.s32.totalorder %s90, %s91
    %p102 = scmp.eq.s32.totalorder %s14, 0
    %p103 = por %p101, %p102
    %p104 = scmp.ne.s32.totalorder %s90, %s91
    %p105 = scmp.eq.s32.totalorder %s15, 1
    %p106 = por %p104, %p105
    %p108 = scmp.ne.s32.totalorder %s91, %s107
    %p109 = scmp.eq.s32.totalorder %s15, 0
    %p110 = por %p108, %p109
    %p111 = scmp.le.s32.totalorder 1, %s9
    %p112 = scmp.lt.s32.totalorder %s9, 3
    %p113 = pnand %p111, %p112
    %p114 = pneg %p113
    // Predicated region
    $region9: #{basic_block_forward.6} parent=5 // pred_check
      _
    $region10: #{basic_block_forward.6} parent=5 // pred_check_branch
      %116 = sbr.rel (%p113) target = $region12
    $region11: #{basic_block_forward.6} parent=5 // pred_region
      %s117 = ssub.s32 %s9, 1
      // Predicated region
      $region13: #{basic_block_forward.6} parent=11 // pred_check
        %p118 = pneg %p56
      $region14: #{basic_block_forward.6} parent=11 // pred_check_branch
        %120 = sbr.rel (%p118) target = $region16
      $region15: #{basic_block_forward.6} parent=11 // pred_region
        _
      $region16: #{basic_block_forward.6} parent=11 // pred_fallthru
        _
      // Predicated region
      $region17: #{basic_block_forward.6} parent=11 // pred_check
        %p121 = pneg %p77
      $region18: #{basic_block_forward.6} parent=11 // pred_check_branch
        %123 = sbr.rel (%p121) target = $region20
      $region19: #{basic_block_forward.6} parent=11 // pred_region
        _
      $region20: #{basic_block_forward.6} parent=11 // pred_fallthru
        _
    $region12: #{basic_block_forward.6} parent=5 // pred_fallthru
      _
    %p124 = scmp.lt.s32.totalorder %s9, 2
    // Predicated region
    $region21: #{basic_block_forward.6} parent=5 // pred_check
      %p125 = pneg %p124
    $region22: #{basic_block_forward.6} parent=5 // pred_check_branch
      %127 = sbr.rel (%p125) target = $region24
    $region23: #{basic_block_forward.6} parent=5 // pred_region
      // Predicated region
      $region25: #{basic_block_forward.6} parent=23 // pred_check
        %p128 = pneg %p29
      $region26: #{basic_block_forward.6} parent=23 // pred_check_branch
        %130 = sbr.rel (%p128) target = $region28
      $region27: #{basic_block_forward.6} parent=23 // pred_region
        %s131 = smul.u32 8, %s9
        %p132 = scmp.lt.s32.totalorder %s131, 15
        %s133 = scalar_select %p132, %s131, 15
        %s134 = smul.addr %s133, 4
        %s135 = scalar_lea.vmem %s0, %s134
        %s136 = smul.u32 8, %s9
      $region28: #{basic_block_forward.6} parent=23 // pred_fallthru
        _
    $region24: #{basic_block_forward.6} parent=5 // pred_fallthru
      _
    %p137 = scmp.le.s32.totalorder 1, %s9
    %p138 = scmp.lt.s32.totalorder %s9, 3
    %p139 = pnand %p137, %p138
    %p140 = pneg %p139
    // Predicated region
    $region29: #{basic_block_forward.6} parent=5 // pred_check
      _
    $region30: #{basic_block_forward.6} parent=5 // pred_check_branch
      %142 = sbr.rel (%p139) target = $region32
    $region31: #{basic_block_forward.6} parent=5 // pred_region
      %s143 = ssub.s32 %s9, 1
      %s144 = smul.u32 8, %s14
      %p145 = scmp.lt.s32.totalorder %s144, 15
      %s146 = scalar_select %p145, %s144, 15
      %s147 = smul.addr %s146, 4
      %s148 = scalar_lea.vmem %s0, %s147
      %p149 = pneg %p35
      %p150 = pneg %p32
      %p151 = pneg %p56
      %p152 = pneg %p53
      %p153 = pneg %p77
      %p154 = pneg %p74
      %p155 = pneg %p103
      %p156 = pneg %p100
      %s157 = smul.u32 8, %s14
      %p158 = scmp.lt.s32.totalorder %s157, 15
      %s159 = scalar_select %p158, %s157, 15
      %s160 = smul.addr %s159, 4
      %s161 = scalar_lea.vmem %s3, %s160
      %s162 = smul.u32 8, %s14
      %p163 = scmp.lt.s32.totalorder %s162, 15
      %s164 = scalar_select %p163, %s162, 15
      %s165 = smul.addr %s164, 4
      %s166 = scalar_lea.vmem %s0, %s165
      %s167 = smul.u32 8, %s14
      %s168 = smul.u32 8, %s14
      %p169 = scmp.lt.s32.totalorder %s168, 15
      %s170 = scalar_select %p169, %s168, 15
      %s171 = smul.addr %s170, 4
      %s172 = scalar_lea.vmem %s3, %s171
      %s173 = smul.u32 8, %s14
      %v174 = vld [vmem:[%s166] sm:$0xf]
      %v175 = vld [vmem:[%s166 + $0x4] sm:$0xf]
      %v176 = vld [vmem:[%s166 + $0x8] sm:$0xf]
      %v177 = vld [vmem:[%s166 + $0xc] sm:$0xf]
      %v178 = vld [vmem:[%s166 + $0x10] sm:$0xf]
      %v179 = vld [vmem:[%s166 + $0x14] sm:$0xf]
      %v180 = vld [vmem:[%s166 + $0x18] sm:$0xf]
      %v181 = vld [vmem:[%s166 + $0x1c] sm:$0xf]
      %v182 = vunpack.c.l.bf16 %v174
      %v183 = vunpack.c.l.bf16 %v175
      %v184 = vunpack.c.l.bf16 %v176
      %v185 = vunpack.c.l.bf16 %v177
      %v186 = vunpack.c.l.bf16 %v178
      %v187 = vunpack.c.l.bf16 %v179
      %v188 = vunpack.c.l.bf16 %v180
      %v189 = vunpack.c.l.bf16 %v181
      %v190 = vld [vmem:[%s1] sm:$0x1]
      %v192 = vlaneseq
      %v193 = vshrl.u32 %v192, 7
      %v194 = vsub.s32 0, %v193
      %v195 = vrot.slane %v190, %v194
      %v197 = vmul.f32 %v182, %v195
      %v198 = vmul.f32 %v183, %v195
      %v199 = vmul.f32 %v184, %v195
      %v200 = vmul.f32 %v185, %v195
      %v201 = vmul.f32 %v186, %v195
      %v202 = vmul.f32 %v187, %v195
      %v203 = vmul.f32 %v188, %v195
      %v204 = vmul.f32 %v189, %v195
      %v205 = vld [vmem:[%s2] sm:$0x1]
      %v207 = vlaneseq
      %v208 = vshrl.u32 %v207, 7
      %v209 = vsub.s32 0, %v208
      %v210 = vrot.slane %v205, %v209
      %v212 = vadd.f32 %v197, %v210
      %v213 = vadd.f32 %v198, %v210
      %v214 = vadd.f32 %v199, %v210
      %v215 = vadd.f32 %v200, %v210
      %v216 = vadd.f32 %v201, %v210
      %v217 = vadd.f32 %v202, %v210
      %v218 = vadd.f32 %v203, %v210
      %v219 = vadd.f32 %v204, %v210
      %v220 = vmax.f32 %v212, 0.0
      %v221 = vmax.f32 %v213, 0.0
      %v222 = vmax.f32 %v214, 0.0
      %v223 = vmax.f32 %v215, 0.0
      %v224 = vmax.f32 %v216, 0.0
      %v225 = vmax.f32 %v217, 0.0
      %v226 = vmax.f32 %v218, 0.0
      %v227 = vmax.f32 %v219, 0.0
      %v228 = vpack.c.bf16 %v221, %v220
      %v229 = vpack.c.bf16 %v223, %v222
      %v230 = vpack.c.bf16 %v225, %v224
      %v231 = vpack.c.bf16 %v227, %v226
      %v236 = vunpack.c.l.b16 %v228
      %v237 = vunpack.c.h.b16 %v228
      %v238 = vunpack.c.l.b16 %v229
      %v239 = vunpack.c.h.b16 %v229
      %v240 = vunpack.c.l.b16 %v230
      %v241 = vunpack.c.h.b16 %v230
      %v242 = vunpack.c.l.b16 %v231
      %v243 = vunpack.c.h.b16 %v231
      %v244 = vpack.c.b16 %v236, %v236
      %v245 = vpack.c.b16 %v237, %v237
      %v246 = vpack.c.b16 %v238, %v238
      %v247 = vpack.c.b16 %v239, %v239
      %v248 = vpack.c.b16 %v240, %v240
      %v249 = vpack.c.b16 %v241, %v241
      %v250 = vpack.c.b16 %v242, %v242
      %v251 = vpack.c.b16 %v243, %v243
      %260 = vst [vmem:[%s172] sm:$0xf] %v244
      %261 = vst [vmem:[%s172 + $0x4] sm:$0xf] %v245
      %262 = vst [vmem:[%s172 + $0x8] sm:$0xf] %v246
      %263 = vst [vmem:[%s172 + $0xc] sm:$0xf] %v247
      %264 = vst [vmem:[%s172 + $0x10] sm:$0xf] %v248
      %265 = vst [vmem:[%s172 + $0x14] sm:$0xf] %v249
      %266 = vst [vmem:[%s172 + $0x18] sm:$0xf] %v250
      %267 = vst [vmem:[%s172 + $0x1c] sm:$0xf] %v251
      %s268 = smul.u32 8, %s14
      %p269 = scmp.lt.s32.totalorder %s268, 15
      %s270 = scalar_select %p269, %s268, 15
      %s271 = smul.addr %s270, 4
      %s272 = scalar_lea.vmem %s3, %s271
      // Predicated region
      $region33: #{basic_block_forward.6} parent=31 // pred_check
        %p273 = pneg %p100
      $region34: #{basic_block_forward.6} parent=31 // pred_check_branch
        %275 = sbr.rel (%p273) target = $region36
      $region35: #{basic_block_forward.6} parent=31 // pred_region
        %s276 = smul.u32 8, %s14
      $region36: #{basic_block_forward.6} parent=31 // pred_fallthru
        _
    $region32: #{basic_block_forward.6} parent=5 // pred_fallthru
      _
    %p277 = scmp.le.s32.totalorder 2, %s9
    // Predicated region
    $region37: #{basic_block_forward.6} parent=5 // pred_check
      %p278 = pneg %p277
    $region38: #{basic_block_forward.6} parent=5 // pred_check_branch
      %280 = sbr.rel (%p278) target = $region40
    $region39: #{basic_block_forward.6} parent=5 // pred_region
      %s281 = ssub.s32 %s9, 2
      // Predicated region
      $region41: #{basic_block_forward.6} parent=39 // pred_check
        %p282 = pneg %p106
      $region42: #{basic_block_forward.6} parent=39 // pred_check_branch
        %284 = sbr.rel (%p282) target = $region44
      $region43: #{basic_block_forward.6} parent=39 // pred_region
        %s285 = smul.u32 8, %s15
        %p286 = scmp.lt.s32.totalorder %s285, 15
        %s287 = scalar_select %p286, %s285, 15
        %s288 = smul.addr %s287, 4
        %s289 = scalar_lea.vmem %s3, %s288
      $region44: #{basic_block_forward.6} parent=39 // pred_fallthru
        _
    $region40: #{basic_block_forward.6} parent=5 // pred_fallthru
      _
  $region6: #{basic_block_forward.6} parent=0 // loop_footer
    %s13 = sadd.s32 1, %s9
  $region7: #{basic_block_forward.6} parent=0 // loop_footer_branch
    %8 = sbr.rel target = $region3
  $region8: #{basic_block_forward.6} parent=0 // loop_exit
    _

// kernel: basic_block_forward.5
$region0: #{basic_block_forward.5}
  #allocation0 [shape = 'u32[]', space=smem, size = 0x4, offset = 0x4, fixed_abs, tag = 'smem constant byte address 0x4 - core index']
  #allocation1 [shape = 'u32[144,128]{1,0:T(1,128)}', space=vmem, size = 0x12000, scoped, tag = 'internal scratch']
  #allocation2 [shape = 'f32[64,128]{1,0:T(8,128)}', space=vmem, size = 0x8000, scoped, tag = 'scratch operand']
  %s0 = inlined_call_operand.vmem [shape: bf16[128,36], index: 0, kind: input, shape index: {}]
  %s1 = inlined_call_operand.vmem [shape: bf16[36,128], index: 1, kind: input, shape index: {}]
  %s2 = inlined_call_operand.vmem [shape: bf16[128,128], index: 2, kind: output, shape index: {0}]
  %s3 = inlined_call_operand.vmem [shape: f32[16,128], index: 3, kind: output, shape index: {1}]
  %s4 = inlined_call_operand.vmem [shape: f32[16,128], index: 4, kind: output, shape index: {2}]
  %5 = xla_tuple %s2, %s3, %s4
  %s6 = sld [smem:[#allocation0]]
  $region65: #{basic_block_forward.5} parent=0
    _
  %s8 = ssub.s32 1, %s6
  %s9 = scalar_select 0, %s8, %s6
  loop: start=0, step=1, limit=4
  $region2: #{basic_block_forward.5} parent=0 // loop_pre_header
    _
  $region3: #{basic_block_forward.5} parent=0 // loop_header
    %s11 = sphi 0, %s15
    %p12 = scmp.ge.s32.totalorder %s11, 4
    %s18 = sphi 0, %s37
    %s19 = sphi 0, %s33
    %s20 = sphi 0, %s29
    %s21 = sphi 0, %s18
    %s22 = sphi 0, %s19
    %s23 = sphi 0, %s20
    %s24 = sphi 0, %s21
    %s25 = sphi 0, %s22
    %s26 = sphi 0, %s23
    %s42 = sphi 0, %s44
    %s45 = sphi 0, %s42
    %s46 = sphi 0, %s45
    %s62 = sphi 0, %s46
    %s70 = sphi 0, %s72
    %s73 = sphi 0, %s70
    %s74 = sphi 0, %s73
    %s90 = sphi 0, %s74
    %s98 = sphi 0, %s100
    %s101 = sphi 0, %s98
    %s102 = sphi 0, %s101
    %s118 = sphi 0, %s102
    %s126 = sphi 0, %s128
    %s129 = sphi 0, %s126
    %s130 = sphi 0, %s129
    %s146 = sphi 0, %s130
    %s154 = sphi 0, %s156
    %s157 = sphi 0, %s154
    %s158 = sphi 0, %s157
    %s174 = sphi 0, %s158
  $region4: #{basic_block_forward.5} parent=0 // loop_header_branch
    %14 = sbr.rel (%p12) target = $region8
  $region5: #{basic_block_forward.5} parent=0 // loop_body
    %s16 = ssub.s32 %s11, 1
    %s17 = ssub.s32 %s11, 2
    %s27 = sadd.s32 1, %s20
    %p28 = scmp.ge.s32.totalorder %s27, 1
    %s29 = scalar_select %p28, 0, %s27
    %s30 = sadd.s32 1, %s19
    %s31 = scalar_select %p28, %s30, %s19
    %p32 = scmp.ge.s32.totalorder %s31, 1
    %s33 = scalar_select %p32, 0, %s31
    %s34 = sadd.s32 1, %s18
    %s35 = scalar_select %p32, %s34, %s18
    %p36 = scmp.ge.s32.totalorder %s35, 2
    %s37 = scalar_select %p36, 0, %s35
    %s38 = ssub.s32 %s18, %s37
    %s39 = ssub.s32 %s20, %s29
    %s40 = sor.u32 %s38, %s39
    %p41 = scmp.eq.s32.totalorder %s40, 0
    %s43 = sadd.s32 %s42, 1
    %s44 = scalar_select %p41, %s42, %s43
    %p47 = pneg %p41
    %p48 = scmp.eq.s32.totalorder %s11, 1
    %p49 = por %p47, %p48
    %p50 = scmp.ne.s32.totalorder %s42, %s45
    %p51 = scmp.eq.s32.totalorder %s11, 0
    %p52 = por %p50, %p51
    %p53 = scmp.ne.s32.totalorder %s42, %s45
    %p54 = scmp.eq.s32.totalorder %s16, 1
    %p55 = por %p53, %p54
    %p56 = scmp.ne.s32.totalorder %s45, %s46
    %p57 = scmp.eq.s32.totalorder %s16, 0
    %p58 = por %p56, %p57
    %p59 = scmp.ne.s32.totalorder %s45, %s46
    %p60 = scmp.eq.s32.totalorder %s17, 1
    %p61 = por %p59, %p60
    %p63 = scmp.ne.s32.totalorder %s46, %s62
    %p64 = scmp.eq.s32.totalorder %s17, 0
    %p65 = por %p63, %p64
    %s66 = ssub.s32 %s20, %s29
    %s67 = ssub.s32 %s19, %s33
    %s68 = sor.u32 %s66, %s67
    %p69 = scmp.eq.s32.totalorder %s68, 0
    %s71 = sadd.s32 %s70, 1
    %s72 = scalar_select %p69, %s70, %s71
    %p75 = pneg %p69
    %p76 = scmp.eq.s32.totalorder %s11, 1
    %p77 = por %p75, %p76
    %p78 = scmp.ne.s32.totalorder %s70, %s73
    %p79 = scmp.eq.s32.totalorder %s11, 0
    %p80 = por %p78, %p79
    %p81 = scmp.ne.s32.totalorder %s70, %s73
    %p82 = scmp.eq.s32.totalorder %s16, 1
    %p83 = por %p81, %p82
    %p84 = scmp.ne.s32.totalorder %s73, %s74
    %p85 = scmp.eq.s32.totalorder %s16, 0
    %p86 = por %p84, %p85
    %p87 = scmp.ne.s32.totalorder %s73, %s74
    %p88 = scmp.eq.s32.totalorder %s17, 1
    %p89 = por %p87, %p88
    %p91 = scmp.ne.s32.totalorder %s74, %s90
    %p92 = scmp.eq.s32.totalorder %s17, 0
    %p93 = por %p91, %p92
    %s94 = ssub.s32 %s18, %s37
    %s95 = ssub.s32 %s19, %s33
    %s96 = sor.u32 %s94, %s95
    %p97 = scmp.eq.s32.totalorder %s96, 0
    %s99 = sadd.s32 %s98, 1
    %s100 = scalar_select %p97, %s98, %s99
    %p103 = pneg %p97
    %p104 = scmp.eq.s32.totalorder %s11, 1
    %p105 = por %p103, %p104
    %p106 = scmp.ne.s32.totalorder %s98, %s101
    %p107 = scmp.eq.s32.totalorder %s11, 0
    %p108 = por %p106, %p107
    %p109 = scmp.ne.s32.totalorder %s98, %s101
    %p110 = scmp.eq.s32.totalorder %s16, 1
    %p111 = por %p109, %p110
    %p112 = scmp.ne.s32.totalorder %s101, %s102
    %p113 = scmp.eq.s32.totalorder %s16, 0
    %p114 = por %p112, %p113
    %p115 = scmp.ne.s32.totalorder %s101, %s102
    %p116 = scmp.eq.s32.totalorder %s17, 1
    %p117 = por %p115, %p116
    %p119 = scmp.ne.s32.totalorder %s102, %s118
    %p120 = scmp.eq.s32.totalorder %s17, 0
    %p121 = por %p119, %p120
    %s122 = ssub.s32 %s18, %s37
    %s123 = ssub.s32 %s19, %s33
    %s124 = sor.u32 %s122, %s123
    %p125 = scmp.eq.s32.totalorder %s124, 0
    %s127 = sadd.s32 %s126, 1
    %s128 = scalar_select %p125, %s126, %s127
    %p131 = pneg %p125
    %p132 = scmp.eq.s32.totalorder %s11, 1
    %p133 = por %p131, %p132
    %p134 = scmp.ne.s32.totalorder %s126, %s129
    %p135 = scmp.eq.s32.totalorder %s11, 0
    %p136 = por %p134, %p135
    %p137 = scmp.ne.s32.totalorder %s126, %s129
    %p138 = scmp.eq.s32.totalorder %s16, 1
    %p139 = por %p137, %p138
    %p140 = scmp.ne.s32.totalorder %s129, %s130
    %p141 = scmp.eq.s32.totalorder %s16, 0
    %p142 = por %p140, %p141
    %p143 = scmp.ne.s32.totalorder %s129, %s130
    %p144 = scmp.eq.s32.totalorder %s17, 1
    %p145 = por %p143, %p144
    %p147 = scmp.ne.s32.totalorder %s130, %s146
    %p148 = scmp.eq.s32.totalorder %s17, 0
    %p149 = por %p147, %p148
    %s150 = ssub.s32 %s18, %s37
    %s151 = ssub.s32 %s19, %s33
    %s152 = sor.u32 %s150, %s151
    %p153 = scmp.eq.s32.totalorder %s152, 0
    %s155 = sadd.s32 %s154, 1
    %s156 = scalar_select %p153, %s154, %s155
    %p159 = pneg %p153
    %p160 = scmp.eq.s32.totalorder %s11, 1
    %p161 = por %p159, %p160
    %p162 = scmp.ne.s32.totalorder %s154, %s157
    %p163 = scmp.eq.s32.totalorder %s11, 0
    %p164 = por %p162, %p163
    %p165 = scmp.ne.s32.totalorder %s154, %s157
    %p166 = scmp.eq.s32.totalorder %s16, 1
    %p167 = por %p165, %p166
    %p168 = scmp.ne.s32.totalorder %s157, %s158
    %p169 = scmp.eq.s32.totalorder %s16, 0
    %p170 = por %p168, %p169
    %p171 = scmp.ne.s32.totalorder %s157, %s158
    %p172 = scmp.eq.s32.totalorder %s17, 1
    %p173 = por %p171, %p172
    %p175 = scmp.ne.s32.totalorder %s158, %s174
    %p176 = scmp.eq.s32.totalorder %s17, 0
    %p177 = por %p175, %p176
    %p178 = scmp.le.s32.totalorder 1, %s11
    %p179 = scmp.lt.s32.totalorder %s11, 3
    %p180 = pnand %p178, %p179
    %p181 = pneg %p180
    // Predicated region
    $region9: #{basic_block_forward.5} parent=5 // pred_check
      _
    $region10: #{basic_block_forward.5} parent=5 // pred_check_branch
      %183 = sbr.rel (%p180) target = $region12
    $region11: #{basic_block_forward.5} parent=5 // pred_region
      %s184 = ssub.s32 %s11, 1
      // Predicated region
      $region13: #{basic_block_forward.5} parent=11 // pred_check
        %p185 = pneg %p86
      $region14: #{basic_block_forward.5} parent=11 // pred_check_branch
        %187 = sbr.rel (%p185) target = $region16
      $region15: #{basic_block_forward.5} parent=11 // pred_region
        %s188 = smul.u32 5, %s23
        %p189 = scmp.lt.s32.totalorder %s188, 4
        %s190 = scalar_select %p189, %s188, 4
        %p191 = scmp.lt.s32.totalorder %s22, 0
        %s192 = scalar_select %p191, %s22, 0
        %s193 = sadd.s32 %s192, %s190
        %s194 = smul.addr %s193, 4
        %s195 = scalar_lea.vmem %s1, %s194
        %s196 = smul.u32 5, %s23
      $region16: #{basic_block_forward.5} parent=11 // pred_fallthru
        _
    $region12: #{basic_block_forward.5} parent=5 // pred_fallthru
      _
    %p197 = scmp.lt.s32.totalorder %s11, 2
    // Predicated region
    $region17: #{basic_block_forward.5} parent=5 // pred_check
      %p198 = pneg %p197
    $region18: #{basic_block_forward.5} parent=5 // pred_check_branch
      %200 = sbr.rel (%p198) target = $region20
    $region19: #{basic_block_forward.5} parent=5 // pred_region
      // Predicated region
      $region21: #{basic_block_forward.5} parent=19 // pred_check
        %p201 = pneg %p52
      $region22: #{basic_block_forward.5} parent=19 // pred_check_branch
        %203 = sbr.rel (%p201) target = $region24
      $region23: #{basic_block_forward.5} parent=19 // pred_region
        %s204 = smul.u32 8, %s18
        %p205 = scmp.lt.s32.totalorder %s204, 15
        %s206 = scalar_select %p205, %s204, 15
        %p207 = scmp.lt.s32.totalorder %s20, 0
        %s208 = scalar_select %p207, %s20, 0
        %s209 = sadd.s32 %s208, %s206
        %s210 = smul.addr %s209, 4
        %s211 = scalar_lea.vmem %s0, %s210
        %s212 = smul.u32 8, %s18
      $region24: #{basic_block_forward.5} parent=19 // pred_fallthru
        _
    $region20: #{basic_block_forward.5} parent=5 // pred_fallthru
      _
    %p213 = scmp.le.s32.totalorder 1, %s11
    %p214 = scmp.lt.s32.totalorder %s11, 3
    %p215 = pnand %p213, %p214
    %p216 = pneg %p215
    // Predicated region
    $region25: #{basic_block_forward.5} parent=5 // pred_check
      _
    $region26: #{basic_block_forward.5} parent=5 // pred_check_branch
      %218 = sbr.rel (%p215) target = $region28
    $region27: #{basic_block_forward.5} parent=5 // pred_region
      %s219 = ssub.s32 %s11, 1
      %s220 = smul.u32 8, %s21
      %p221 = scmp.lt.s32.totalorder %s220, 15
      %s222 = scalar_select %p221, %s220, 15
      %p223 = scmp.lt.s32.totalorder %s23, 0
      %s224 = scalar_select %p223, %s23, 0
      %s225 = sadd.s32 %s224, %s222
      %s226 = smul.addr %s225, 4
      %s227 = scalar_lea.vmem %s0, %s226
      %p228 = pneg %p58
      %p229 = pneg %p55
      %s230 = smul.u32 5, %s23
      %p231 = scmp.lt.s32.totalorder %s230, 4
      %s232 = scalar_select %p231, %s230, 4
      %p233 = scmp.lt.s32.totalorder %s22, 0
      %s234 = scalar_select %p233, %s22, 0
      %s235 = sadd.s32 %s234, %s232
      %s236 = smul.addr %s235, 4
      %s237 = scalar_lea.vmem %s1, %s236
      %p238 = pneg %p86
      %p239 = pneg %p83
      %p240 = pneg %p114
      %p241 = pneg %p111
      %s242 = smul.u32 8, %s21
      %p243 = scmp.lt.s32.totalorder %s242, 15
      %s244 = scalar_select %p243, %s242, 15
      %p245 = scmp.lt.s32.totalorder %s22, 0
      %s246 = scalar_select %p245, %s22, 0
      %s247 = sadd.s32 %s246, %s244
      %s248 = smul.addr %s247, 4
      %s249 = scalar_lea.vmem %s2, %s248
      %p250 = pneg %p142
      %p251 = pneg %p139
      %p252 = scmp.lt.s32.totalorder %s21, 1
      %s253 = scalar_select %p252, %s21, 1
      %p254 = scmp.lt.s32.totalorder %s22, 0
      %s255 = scalar_select %p254, %s22, 0
      %s256 = sadd.s32 %s255, %s253
      %s257 = smul.addr %s256, 8
      %s258 = scalar_lea.vmem %s3, %s257
      %p259 = pneg %p170
      %p260 = pneg %p167
      %p261 = scmp.lt.s32.totalorder %s21, 1
      %s262 = scalar_select %p261, %s21, 1
      %p263 = scmp.lt.s32.totalorder %s22, 0
      %s264 = scalar_select %p263, %s22, 0
      %s265 = sadd.s32 %s264, %s262
      %s266 = smul.addr %s265, 8
      %s267 = scalar_lea.vmem %s4, %s266
      %s268 = smul.u32 8, %s21
      %p269 = scmp.lt.s32.totalorder %s268, 15
      %s270 = scalar_select %p269, %s268, 15
      %p271 = scmp.lt.s32.totalorder %s23, 0
      %s272 = scalar_select %p271, %s23, 0
      %s273 = sadd.s32 %s272, %s270
      %s274 = smul.addr %s273, 4
      %s275 = scalar_lea.vmem %s0, %s274
      %s276 = smul.u32 8, %s21
      %s277 = smul.u32 5, %s23
      %p278 = scmp.lt.s32.totalorder %s277, 4
      %s279 = scalar_select %p278, %s277, 4
      %p280 = scmp.lt.s32.totalorder %s22, 0
      %s281 = scalar_select %p280, %s22, 0
      %s282 = sadd.s32 %s281, %s279
      %s283 = smul.addr %s282, 4
      %s284 = scalar_lea.vmem %s1, %s283
      %s285 = smul.u32 5, %s23
      %s286 = smul.u32 8, %s21
      %p287 = scmp.lt.s32.totalorder %s286, 15
      %s288 = scalar_select %p287, %s286, 15
      %p289 = scmp.lt.s32.totalorder %s22, 0
      %s290 = scalar_select %p289, %s22, 0
      %s291 = sadd.s32 %s290, %s288
      %s292 = smul.addr %s291, 4
      %s293 = scalar_lea.vmem %s2, %s292
      %s294 = smul.u32 8, %s21
      %p295 = scmp.lt.s32.totalorder %s21, 1
      %s296 = scalar_select %p295, %s21, 1
      %p297 = scmp.lt.s32.totalorder %s22, 0
      %s298 = scalar_select %p297, %s22, 0
      %s299 = sadd.s32 %s298, %s296
      %s300 = smul.addr %s299, 8
      %s301 = scalar_lea.vmem %s3, %s300
      %p302 = scmp.lt.s32.totalorder %s21, 1
      %s303 = scalar_select %p302, %s21, 1
      %p304 = scmp.lt.s32.totalorder %s22, 0
      %s305 = scalar_select %p304, %s22, 0
      %s306 = sadd.s32 %s305, %s303
      %s307 = smul.addr %s306, 8
      %s308 = scalar_lea.vmem %s4, %s307
      %p310 = scmp.eq.s32.totalorder %s23, 0
      // Predicated region
      $region29: #{basic_block_forward.5} parent=27 // pred_check
        %p311 = pneg %p310
      $region30: #{basic_block_forward.5} parent=27 // pred_check_branch
        %313 = sbr.rel (%p311) target = $region32
      $region31: #{basic_block_forward.5} parent=27 // pred_region
        %314 = vst [vmem:[#allocation2] sm:$0xff] 0.0
        %315 = vst [vmem:[#allocation2 + $0x8] sm:$0xff] 0.0
        %316 = vst [vmem:[#allocation2 + $0x10] sm:$0xff] 0.0
        %317 = vst [vmem:[#allocation2 + $0x18] sm:$0xff] 0.0
        %318 = vst [vmem:[#allocation2 + $0x20] sm:$0xff] 0.0
        %319 = vst [vmem:[#allocation2 + $0x28] sm:$0xff] 0.0
        %320 = vst [vmem:[#allocation2 + $0x30] sm:$0xff] 0.0
        %321 = vst [vmem:[#allocation2 + $0x38] sm:$0xff] 0.0
      $region32: #{basic_block_forward.5} parent=27 // pred_fallthru
        _
      %v322 = vld [vmem:[#allocation2] sm:$0xff]
      %v323 = vld [vmem:[#allocation2 + $0x8] sm:$0xff]
      %v324 = vld [vmem:[#allocation2 + $0x10] sm:$0xff]
      %v325 = vld [vmem:[#allocation2 + $0x18] sm:$0xff]
      %v326 = vld [vmem:[#allocation2 + $0x20] sm:$0xff]
      %v327 = vld [vmem:[#allocation2 + $0x28] sm:$0xff]
      %v328 = vld [vmem:[#allocation2 + $0x30] sm:$0xff]
      %v329 = vld [vmem:[#allocation2 + $0x38] sm:$0xff]
      %v330 = vld [vmem:[%s275] sm:$0xf]
      %v331 = vld [vmem:[%s275 + $0x4] sm:$0xf]
      %v332 = vld [vmem:[%s275 + $0x8] sm:$0xf]
      %v333 = vld [vmem:[%s275 + $0xc] sm:$0xf]
      %v334 = vld [vmem:[%s275 + $0x10] sm:$0xf]
      %v335 = vld [vmem:[%s275 + $0x14] sm:$0xf]
      %v336 = vld [vmem:[%s275 + $0x18] sm:$0xf]
      %v337 = vld [vmem:[%s275 + $0x1c] sm:$0xf]
      %v338 = vld [vmem:[%s284] sm:$0xf]
      %v339 = vld [vmem:[%s284 + $0x4] sm:$0xf]
      %v340 = vld [vmem:[%s284 + $0x8] sm:$0xf]
      %v341 = vld [vmem:[%s284 + $0xc] sm:$0xf]
      %v342 = vld [vmem:[%s284 + $0x10] sm:$0x3]
      %v351 = vunpack.c.l.b16 %v330
      %v352 = vunpack.c.l.b16 %v331
      %v353 = vunpack.c.l.b16 %v332
      %v354 = vunpack.c.l.b16 %v333
      %v355 = vunpack.c.l.b16 %v334
      %v356 = vunpack.c.l.b16 %v335
      %v357 = vunpack.c.l.b16 %v336
      %v358 = vunpack.c.l.b16 %v337
      %v359 = vpack.c.b16 %v352, %v351
      %v360 = vpack.c.b16 %v354, %v353
      %v361 = vpack.c.b16 %v356, %v355
      %v362 = vpack.c.b16 %v358, %v357
      %v368 = vunpack.c.l.b16 %v338
      %v369 = vunpack.c.l.b16 %v339
      %v370 = vunpack.c.l.b16 %v340
      %v371 = vunpack.c.l.b16 %v341
      %v372 = vunpack.c.l.b16 %v342
      %v373 = vpack.c.b16 %v369, %v368
      %v374 = vpack.c.b16 %v371, %v370
      %v375 = vpack.c.b16 %v372, %v372
      %vm378 = vcmask 293888
      %v380 = vsel %vm378, %v359, 0
      %v383 = vsel %vm378, %v360, 0
      %v386 = vsel %vm378, %v361, 0
      %v389 = vsel %vm378, %v362, 0
      %vm391 = vcmask 1041408
      %v393 = vsel %vm391, %v375, 0
      %395 = vmatprep.subr.bf16.mxu0 0
      %396 = vmatpush1.bf16.msra.mxu0 0
      %397 = vmatprep.subr.bf16.mxu0 0
      %398 = vmatpush1.bf16.msra.mxu0 0
      %399 = vmatprep.subr.bf16.mxu0 0
      %400 = vmatpush1.bf16.msra.mxu0 0
      %401 = vmatprep.subr.bf16.mxu0 0
      %402 = vmatpush1.bf16.msra.mxu0 0
      %403 = vmatprep.subr.bf16.mxu0 0
      %404 = vmatpush1.bf16.msra.mxu0 0
      %405 = vmatprep.subr.bf16.mxu0 0
      %406 = vmatpush1.bf16.msra.mxu0 %v393
      %407 = vmatprep.subr.bf16.mxu0 0
      %408 = vmatpush1.bf16.msra.mxu0 %v374
      %409 = vmatprep.subr.bf16.mxu0 0
      %410 = vmatpush1.bf16.msra.mxu0 %v373
      %411 = vmatprep.subr.bf16.mxu0 0
      %412 = vmatpush2.bf16.msra.mxu0 0
      %413 = vmatprep.subr.bf16.mxu0 0
      %414 = vmatpush2.bf16.msra.mxu0 0
      %415 = vmatprep.subr.bf16.mxu0 0
      %416 = vmatpush2.bf16.msra.mxu0 0
      %417 = vmatprep.subr.bf16.mxu0 0
      %418 = vmatpush2.bf16.msra.mxu0 0
      %419 = vmatprep.subr.bf16.mxu0 0
      %420 = vmatpush2.bf16.msra.mxu0 0
      %421 = vmatprep.subr.bf16.mxu0 0
      %422 = vmatpush2.bf16.msra.mxu0 0
      %423 = vmatprep.subr.bf16.mxu0 0
      %424 = vmatpush2.bf16.msra.mxu0 0
      %425 = vmatprep.subr.bf16.mxu0 0
      %426 = vmatpush2.bf16.msra.mxu0 0
      %427 = vmatprep.mubr.bf16.mxu0 0
      %428 = vmatmul.mubr.bf16.gmra.mxu0 %v380
      %v429 = vpop.f32.mrf.mxu0
      %v430 = vadd.f32 0.0, %v429
      %v431 = vpop.f32.mrf.mxu0
      %v432 = vpop.f32.mrf.mxu0
      %v433 = vadd.f32 0.0, %v432
      %v434 = vpop.f32.mrf.mxu0
      %435 = vmatprep.mubr.bf16.mxu0 0
      %436 = vmatmul.mubr.bf16.gmra.mxu0 %v383
      %v437 = vpop.f32.mrf.mxu0
      %v438 = vadd.f32 0.0, %v437
      %v439 = vpop.f32.mrf.mxu0
      %v440 = vpop.f32.mrf.mxu0
      %v441 = vadd.f32 0.0, %v440
      %v442 = vpop.f32.mrf.mxu0
      %443 = vmatprep.mubr.bf16.mxu0 0
      %444 = vmatmul.mubr.bf16.gmra.mxu0 %v386
      %v445 = vpop.f32.mrf.mxu0
      %v446 = vadd.f32 0.0, %v445
      %v447 = vpop.f32.mrf.mxu0
      %v448 = vpop.f32.mrf.mxu0
      %v449 = vadd.f32 0.0, %v448
      %v450 = vpop.f32.mrf.mxu0
      %451 = vmatprep.mubr.bf16.mxu0 0
      %452 = vmatmul.mubr.bf16.gmra.mxu0 %v389
      %v453 = vpop.f32.mrf.mxu0
      %v454 = vadd.f32 0.0, %v453
      %v455 = vpop.f32.mrf.mxu0
      %v456 = vpop.f32.mrf.mxu0
      %v457 = vadd.f32 0.0, %v456
      %v458 = vpop.f32.mrf.mxu0
      %459 = vdwg.mxu0
      %v460 = vadd.f32 %v322, %v430
      %v461 = vadd.f32 %v323, %v433
      %v462 = vadd.f32 %v324, %v438
      %v463 = vadd.f32 %v325, %v441
      %v464 = vadd.f32 %v326, %v446
      %v465 = vadd.f32 %v327, %v449
      %v466 = vadd.f32 %v328, %v454
      %v467 = vadd.f32 %v329, %v457
      %468 = vst [vmem:[#allocation2] sm:$0xff] %v460
      %469 = vst [vmem:[#allocation2 + $0x8] sm:$0xff] %v461
      %470 = vst [vmem:[#allocation2 + $0x10] sm:$0xff] %v462
      %471 = vst [vmem:[#allocation2 + $0x18] sm:$0xff] %v463
      %472 = vst [vmem:[#allocation2 + $0x20] sm:$0xff] %v464
      %473 = vst [vmem:[#allocation2 + $0x28] sm:$0xff] %v465
      %474 = vst [vmem:[#allocation2 + $0x30] sm:$0xff] %v466
      %475 = vst [vmem:[#allocation2 + $0x38] sm:$0xff] %v467
      // Predicated region
      $region33: #{basic_block_forward.5} parent=27 // pred_check
        %p476 = pneg %p310
      $region34: #{basic_block_forward.5} parent=27 // pred_check_branch
        %478 = sbr.rel (%p476) target = $region36
      $region35: #{basic_block_forward.5} parent=27 // pred_region
        %v479 = vld [vmem:[#allocation2] sm:$0xff]
        %v480 = vld [vmem:[#allocation2 + $0x8] sm:$0xff]
        %v481 = vld [vmem:[#allocation2 + $0x10] sm:$0xff]
        %v482 = vld [vmem:[#allocation2 + $0x18] sm:$0xff]
        %v483 = vld [vmem:[#allocation2 + $0x20] sm:$0xff]
        %v484 = vld [vmem:[#allocation2 + $0x28] sm:$0xff]
        %v485 = vld [vmem:[#allocation2 + $0x30] sm:$0xff]
        %v486 = vld [vmem:[#allocation2 + $0x38] sm:$0xff]
        %v487 = vpack.c.bf16 %v480, %v479
        %v488 = vpack.c.bf16 %v482, %v481
        %v489 = vpack.c.bf16 %v484, %v483
        %v490 = vpack.c.bf16 %v486, %v485
        %v495 = vunpack.c.l.b16 %v487
        %v496 = vunpack.c.h.b16 %v487
        %v497 = vunpack.c.l.b16 %v488
        %v498 = vunpack.c.h.b16 %v488
        %v499 = vunpack.c.l.b16 %v489
        %v500 = vunpack.c.h.b16 %v489
        %v501 = vunpack.c.l.b16 %v490
        %v502 = vunpack.c.h.b16 %v490
        %v503 = vpack.c.b16 %v495, %v495
        %v504 = vpack.c.b16 %v496, %v496
        %v505 = vpack.c.b16 %v497, %v497
        %v506 = vpack.c.b16 %v498, %v498
        %v507 = vpack.c.b16 %v499, %v499
        %v508 = vpack.c.b16 %v500, %v500
        %v509 = vpack.c.b16 %v501, %v501
        %v510 = vpack.c.b16 %v502, %v502
        %519 = vst [vmem:[%s293] sm:$0xf] %v503
        %520 = vst [vmem:[%s293 + $0x4] sm:$0xf] %v504
        %521 = vst [vmem:[%s293 + $0x8] sm:$0xf] %v505
        %522 = vst [vmem:[%s293 + $0xc] sm:$0xf] %v506
        %523 = vst [vmem:[%s293 + $0x10] sm:$0xf] %v507
        %524 = vst [vmem:[%s293 + $0x14] sm:$0xf] %v508
        %525 = vst [vmem:[%s293 + $0x18] sm:$0xf] %v509
        %526 = vst [vmem:[%s293 + $0x1c] sm:$0xf] %v510
        %v527 = vadd.f32 %v479, %v480
        %v528 = vadd.f32 %v527, %v481
        %v529 = vadd.f32 %v528, %v482
        %v530 = vadd.f32 %v529, %v483
        %v531 = vadd.f32 %v530, %v484
        %v532 = vadd.f32 %v531, %v485
        %v533 = vadd.f32 %v532, %v486
        %v534 = vrot.slane %v533, 4
        %v535 = vadd.f32 %v533, %v534
        %v536 = vrot.slane %v535, 2
        %v537 = vadd.f32 %v535, %v536
        %v538 = vrot.slane %v537, 1
        %v539 = vadd.f32 %v537, %v538
        %v540 = vmul.f32 %v479, %v479
        %v541 = vmul.f32 %v480, %v480
        %v542 = vmul.f32 %v481, %v481
        %v543 = vmul.f32 %v482, %v482
        %v544 = vmul.f32 %v483, %v483
        %v545 = vmul.f32 %v484, %v484
        %v546 = vmul.f32 %v485, %v485
        %v547 = vmul.f32 %v486, %v486
        %v548 = vadd.f32 %v540, %v541
        %v549 = vadd.f32 %v548, %v542
        %v550 = vadd.f32 %v549, %v543
        %v551 = vadd.f32 %v550, %v544
        %v552 = vadd.f32 %v551, %v545
        %v553 = vadd.f32 %v552, %v546
        %v554 = vadd.f32 %v553, %v547
        %v555 = vrot.slane %v554, 4
        %v556 = vadd.f32 %v554, %v555
        %v557 = vrot.slane %v556, 2
        %v558 = vadd.f32 %v556, %v557
        %v559 = vrot.slane %v558, 1
        %v560 = vadd.f32 %v558, %v559
        %561 = vst [vmem:[%s301] sm:$0xff] %v539
        %562 = vst [vmem:[%s308] sm:$0xff] %v560
      $region36: #{basic_block_forward.5} parent=27 // pred_fallthru
        _
      %s563 = smul.u32 8, %s21
      %p564 = scmp.lt.s32.totalorder %s563, 15
      %s565 = scalar_select %p564, %s563, 15
      %p566 = scmp.lt.s32.totalorder %s22, 0
      %s567 = scalar_select %p566, %s22, 0
      %s568 = sadd.s32 %s567, %s565
      %s569 = smul.addr %s568, 4
      %s570 = scalar_lea.vmem %s2, %s569
      %p571 = scmp.lt.s32.totalorder %s21, 1
      %s572 = scalar_select %p571, %s21, 1
      %p573 = scmp.lt.s32.totalorder %s22, 0
      %s574 = scalar_select %p573, %s22, 0
      %s575 = sadd.s32 %s574, %s572
      %s576 = smul.addr %s575, 8
      %s577 = scalar_lea.vmem %s3, %s576
      %p578 = scmp.lt.s32.totalorder %s21, 1
      %s579 = scalar_select %p578, %s21, 1
      %p580 = scmp.lt.s32.totalorder %s22, 0
      %s581 = scalar_select %p580, %s22, 0
      %s582 = sadd.s32 %s581, %s579
      %s583 = smul.addr %s582, 8
      %s584 = scalar_lea.vmem %s4, %s583
      // Predicated region
      $region37: #{basic_block_forward.5} parent=27 // pred_check
        %p585 = pneg %p111
      $region38: #{basic_block_forward.5} parent=27 // pred_check_branch
        %587 = sbr.rel (%p585) target = $region40
      $region39: #{basic_block_forward.5} parent=27 // pred_region
        %s588 = smul.u32 8, %s21
      $region40: #{basic_block_forward.5} parent=27 // pred_fallthru
        _
      // Predicated region
      $region41: #{basic_block_forward.5} parent=27 // pred_check
        %p589 = pneg %p139
      $region42: #{basic_block_forward.5} parent=27 // pred_check_branch
        %591 = sbr.rel (%p589) target = $region44
      $region43: #{basic_block_forward.5} parent=27 // pred_region
        _
      $region44: #{basic_block_forward.5} parent=27 // pred_fallthru
        _
      // Predicated region
      $region45: #{basic_block_forward.5} parent=27 // pred_check
        %p592 = pneg %p167
      $region46: #{basic_block_forward.5} parent=27 // pred_check_branch
        %594 = sbr.rel (%p592) target = $region48
      $region47: #{basic_block_forward.5} parent=27 // pred_region
        _
      $region48: #{basic_block_forward.5} parent=27 // pred_fallthru
        _
    $region28: #{basic_block_forward.5} parent=5 // pred_fallthru
      _
    %p595 = scmp.le.s32.totalorder 2, %s11
    // Predicated region
    $region49: #{basic_block_forward.5} parent=5 // pred_check
      %p596 = pneg %p595
    $region50: #{basic_block_forward.5} parent=5 // pred_check_branch
      %598 = sbr.rel (%p596) target = $region52
    $region51: #{basic_block_forward.5} parent=5 // pred_region
      %s599 = ssub.s32 %s11, 2
      // Predicated region
      $region53: #{basic_block_forward.5} parent=51 // pred_check
        %p600 = pneg %p117
      $region54: #{basic_block_forward.5} parent=51 // pred_check_branch
        %602 = sbr.rel (%p600) target = $region56
      $region55: #{basic_block_forward.5} parent=51 // pred_region
        %s603 = smul.u32 8, %s24
        %p604 = scmp.lt.s32.totalorder %s603, 15
        %s605 = scalar_select %p604, %s603, 15
        %p606 = scmp.lt.s32.totalorder %s25, 0
        %s607 = scalar_select %p606, %s25, 0
        %s608 = sadd.s32 %s607, %s605
        %s609 = smul.addr %s608, 4
        %s610 = scalar_lea.vmem %s2, %s609
      $region56: #{basic_block_forward.5} parent=51 // pred_fallthru
        _
      // Predicated region
      $region57: #{basic_block_forward.5} parent=51 // pred_check
        %p611 = pneg %p145
      $region58: #{basic_block_forward.5} parent=51 // pred_check_branch
        %613 = sbr.rel (%p611) target = $region60
      $region59: #{basic_block_forward.5} parent=51 // pred_region
        %p614 = scmp.lt.s32.totalorder %s24, 1
        %s615 = scalar_select %p614, %s24, 1
        %p616 = scmp.lt.s32.totalorder %s25, 0
        %s617 = scalar_select %p616, %s25, 0
        %s618 = sadd.s32 %s617, %s615
        %s619 = smul.addr %s618, 8
        %s620 = scalar_lea.vmem %s3, %s619
      $region60: #{basic_block_forward.5} parent=51 // pred_fallthru
        _
      // Predicated region
      $region61: #{basic_block_forward.5} parent=51 // pred_check
        %p621 = pneg %p173
      $region62: #{basic_block_forward.5} parent=51 // pred_check_branch
        %623 = sbr.rel (%p621) target = $region64
      $region63: #{basic_block_forward.5} parent=51 // pred_region
        %p624 = scmp.lt.s32.totalorder %s24, 1
        %s625 = scalar_select %p624, %s24, 1
        %p626 = scmp.lt.s32.totalorder %s25, 0
        %s627 = scalar_select %p626, %s25, 0
        %s628 = sadd.s32 %s627, %s625
        %s629 = smul.addr %s628, 8
        %s630 = scalar_lea.vmem %s4, %s629
      $region64: #{basic_block_forward.5} parent=51 // pred_fallthru
        _
    $region52: #{basic_block_forward.5} parent=5 // pred_fallthru
      _
  $region6: #{basic_block_forward.5} parent=0 // loop_footer
    %s15 = sadd.s32 1, %s11
  $region7: #{basic_block_forward.5} parent=0 // loop_footer_branch
    %10 = sbr.rel target = $region3
  $region8: #{basic_block_forward.5} parent=0 // loop_exit
    _

// kernel: basic_block_forward.7
$region0: #{basic_block_forward.7}
  #allocation0 [shape = 'u32[]', space=smem, size = 0x4, offset = 0x4, fixed_abs, tag = 'smem constant byte address 0x4 - core index']
  #allocation1 [shape = 'u32[144,128]{1,0:T(1,128)}', space=vmem, size = 0x12000, scoped, tag = 'internal scratch']
  #allocation2 [shape = 'f32[64,128]{1,0:T(8,128)}', space=vmem, size = 0x8000, scoped, tag = 'scratch operand']
  %s0 = inlined_call_operand.vmem [shape: bf16[128,72], index: 0, kind: input, shape index: {}]
  %s1 = inlined_call_operand.vmem [shape: bf16[72,128], index: 1, kind: input, shape index: {}]
  %s2 = inlined_call_operand.vmem [shape: bf16[128,128], index: 2, kind: output, shape index: {0}]
  %s3 = inlined_call_operand.vmem [shape: f32[16,128], index: 3, kind: output, shape index: {1}]
  %s4 = inlined_call_operand.vmem [shape: f32[16,128], index: 4, kind: output, shape index: {2}]
  %5 = xla_tuple %s2, %s3, %s4
  %s6 = sld [smem:[#allocation0]]
  $region65: #{basic_block_forward.7} parent=0
    _
  %s8 = ssub.s32 1, %s6
  %s9 = scalar_select 0, %s8, %s6
  loop: start=0, step=1, limit=4
  $region2: #{basic_block_forward.7} parent=0 // loop_pre_header
    _
  $region3: #{basic_block_forward.7} parent=0 // loop_header
    %s11 = sphi 0, %s15
    %p12 = scmp.ge.s32.totalorder %s11, 4
    %s18 = sphi 0, %s37
    %s19 = sphi 0, %s33
    %s20 = sphi 0, %s29
    %s21 = sphi 0, %s18
    %s22 = sphi 0, %s19
    %s23 = sphi 0, %s20
    %s24 = sphi 0, %s21
    %s25 = sphi 0, %s22
    %s26 = sphi 0, %s23
    %s42 = sphi 0, %s44
    %s45 = sphi 0, %s42
    %s46 = sphi 0, %s45
    %s62 = sphi 0, %s46
    %s70 = sphi 0, %s72
    %s73 = sphi 0, %s70
    %s74 = sphi 0, %s73
    %s90 = sphi 0, %s74
    %s98 = sphi 0, %s100
    %s101 = sphi 0, %s98
    %s102 = sphi 0, %s101
    %s118 = sphi 0, %s102
    %s126 = sphi 0, %s128
    %s129 = sphi 0, %s126
    %s130 = sphi 0, %s129
    %s146 = sphi 0, %s130
    %s154 = sphi 0, %s156
    %s157 = sphi 0, %s154
    %s158 = sphi 0, %s157
    %s174 = sphi 0, %s158
  $region4: #{basic_block_forward.7} parent=0 // loop_header_branch
    %14 = sbr.rel (%p12) target = $region8
  $region5: #{basic_block_forward.7} parent=0 // loop_body
    %s16 = ssub.s32 %s11, 1
    %s17 = ssub.s32 %s11, 2
    %s27 = sadd.s32 1, %s20
    %p28 = scmp.ge.s32.totalorder %s27, 1
    %s29 = scalar_select %p28, 0, %s27
    %s30 = sadd.s32 1, %s19
    %s31 = scalar_select %p28, %s30, %s19
    %p32 = scmp.ge.s32.totalorder %s31, 1
    %s33 = scalar_select %p32, 0, %s31
    %s34 = sadd.s32 1, %s18
    %s35 = scalar_select %p32, %s34, %s18
    %p36 = scmp.ge.s32.totalorder %s35, 2
    %s37 = scalar_select %p36, 0, %s35
    %s38 = ssub.s32 %s18, %s37
    %s39 = ssub.s32 %s20, %s29
    %s40 = sor.u32 %s38, %s39
    %p41 = scmp.eq.s32.totalorder %s40, 0
    %s43 = sadd.s32 %s42, 1
    %s44 = scalar_select %p41, %s42, %s43
    %p47 = pneg %p41
    %p48 = scmp.eq.s32.totalorder %s11, 1
    %p49 = por %p47, %p48
    %p50 = scmp.ne.s32.totalorder %s42, %s45
    %p51 = scmp.eq.s32.totalorder %s11, 0
    %p52 = por %p50, %p51
    %p53 = scmp.ne.s32.totalorder %s42, %s45
    %p54 = scmp.eq.s32.totalorder %s16, 1
    %p55 = por %p53, %p54
    %p56 = scmp.ne.s32.totalorder %s45, %s46
    %p57 = scmp.eq.s32.totalorder %s16, 0
    %p58 = por %p56, %p57
    %p59 = scmp.ne.s32.totalorder %s45, %s46
    %p60 = scmp.eq.s32.totalorder %s17, 1
    %p61 = por %p59, %p60
    %p63 = scmp.ne.s32.totalorder %s46, %s62
    %p64 = scmp.eq.s32.totalorder %s17, 0
    %p65 = por %p63, %p64
    %s66 = ssub.s32 %s20, %s29
    %s67 = ssub.s32 %s19, %s33
    %s68 = sor.u32 %s66, %s67
    %p69 = scmp.eq.s32.totalorder %s68, 0
    %s71 = sadd.s32 %s70, 1
    %s72 = scalar_select %p69, %s70, %s71
    %p75 = pneg %p69
    %p76 = scmp.eq.s32.totalorder %s11, 1
    %p77 = por %p75, %p76
    %p78 = scmp.ne.s32.totalorder %s70, %s73
    %p79 = scmp.eq.s32.totalorder %s11, 0
    %p80 = por %p78, %p79
    %p81 = scmp.ne.s32.totalorder %s70, %s73
    %p82 = scmp.eq.s32.totalorder %s16, 1
    %p83 = por %p81, %p82
    %p84 = scmp.ne.s32.totalorder %s73, %s74
    %p85 = scmp.eq.s32.totalorder %s16, 0
    %p86 = por %p84, %p85
    %p87 = scmp.ne.s32.totalorder %s73, %s74
    %p88 = scmp.eq.s32.totalorder %s17, 1
    %p89 = por %p87, %p88
    %p91 = scmp.ne.s32.totalorder %s74, %s90
    %p92 = scmp.eq.s32.totalorder %s17, 0
    %p93 = por %p91, %p92
    %s94 = ssub.s32 %s18, %s37
    %s95 = ssub.s32 %s19, %s33
    %s96 = sor.u32 %s94, %s95
    %p97 = scmp.eq.s32.totalorder %s96, 0
    %s99 = sadd.s32 %s98, 1
    %s100 = scalar_select %p97, %s98, %s99
    %p103 = pneg %p97
    %p104 = scmp.eq.s32.totalorder %s11, 1
    %p105 = por %p103, %p104
    %p106 = scmp.ne.s32.totalorder %s98, %s101
    %p107 = scmp.eq.s32.totalorder %s11, 0
    %p108 = por %p106, %p107
    %p109 = scmp.ne.s32.totalorder %s98, %s101
    %p110 = scmp.eq.s32.totalorder %s16, 1
    %p111 = por %p109, %p110
    %p112 = scmp.ne.s32.totalorder %s101, %s102
    %p113 = scmp.eq.s32.totalorder %s16, 0
    %p114 = por %p112, %p113
    %p115 = scmp.ne.s32.totalorder %s101, %s102
    %p116 = scmp.eq.s32.totalorder %s17, 1
    %p117 = por %p115, %p116
    %p119 = scmp.ne.s32.totalorder %s102, %s118
    %p120 = scmp.eq.s32.totalorder %s17, 0
    %p121 = por %p119, %p120
    %s122 = ssub.s32 %s18, %s37
    %s123 = ssub.s32 %s19, %s33
    %s124 = sor.u32 %s122, %s123
    %p125 = scmp.eq.s32.totalorder %s124, 0
    %s127 = sadd.s32 %s126, 1
    %s128 = scalar_select %p125, %s126, %s127
    %p131 = pneg %p125
    %p132 = scmp.eq.s32.totalorder %s11, 1
    %p133 = por %p131, %p132
    %p134 = scmp.ne.s32.totalorder %s126, %s129
    %p135 = scmp.eq.s32.totalorder %s11, 0
    %p136 = por %p134, %p135
    %p137 = scmp.ne.s32.totalorder %s126, %s129
    %p138 = scmp.eq.s32.totalorder %s16, 1
    %p139 = por %p137, %p138
    %p140 = scmp.ne.s32.totalorder %s129, %s130
    %p141 = scmp.eq.s32.totalorder %s16, 0
    %p142 = por %p140, %p141
    %p143 = scmp.ne.s32.totalorder %s129, %s130
    %p144 = scmp.eq.s32.totalorder %s17, 1
    %p145 = por %p143, %p144
    %p147 = scmp.ne.s32.totalorder %s130, %s146
    %p148 = scmp.eq.s32.totalorder %s17, 0
    %p149 = por %p147, %p148
    %s150 = ssub.s32 %s18, %s37
    %s151 = ssub.s32 %s19, %s33
    %s152 = sor.u32 %s150, %s151
    %p153 = scmp.eq.s32.totalorder %s152, 0
    %s155 = sadd.s32 %s154, 1
    %s156 = scalar_select %p153, %s154, %s155
    %p159 = pneg %p153
    %p160 = scmp.eq.s32.totalorder %s11, 1
    %p161 = por %p159, %p160
    %p162 = scmp.ne.s32.totalorder %s154, %s157
    %p163 = scmp.eq.s32.totalorder %s11, 0
    %p164 = por %p162, %p163
    %p165 = scmp.ne.s32.totalorder %s154, %s157
    %p166 = scmp.eq.s32.totalorder %s16, 1
    %p167 = por %p165, %p166
    %p168 = scmp.ne.s32.totalorder %s157, %s158
    %p169 = scmp.eq.s32.totalorder %s16, 0
    %p170 = por %p168, %p169
    %p171 = scmp.ne.s32.totalorder %s157, %s158
    %p172 = scmp.eq.s32.totalorder %s17, 1
    %p173 = por %p171, %p172
    %p175 = scmp.ne.s32.totalorder %s158, %s174
    %p176 = scmp.eq.s32.totalorder %s17, 0
    %p177 = por %p175, %p176
    %p178 = scmp.le.s32.totalorder 1, %s11
    %p179 = scmp.lt.s32.totalorder %s11, 3
    %p180 = pnand %p178, %p179
    %p181 = pneg %p180
    // Predicated region
    $region9: #{basic_block_forward.7} parent=5 // pred_check
      _
    $region10: #{basic_block_forward.7} parent=5 // pred_check_branch
      %183 = sbr.rel (%p180) target = $region12
    $region11: #{basic_block_forward.7} parent=5 // pred_region
      %s184 = ssub.s32 %s11, 1
      // Predicated region
      $region13: #{basic_block_forward.7} parent=11 // pred_check
        %p185 = pneg %p86
      $region14: #{basic_block_forward.7} parent=11 // pred_check_branch
        %187 = sbr.rel (%p185) target = $region16
      $region15: #{basic_block_forward.7} parent=11 // pred_region
        %s188 = smul.u32 9, %s23
        %p189 = scmp.lt.s32.totalorder %s188, 8
        %s190 = scalar_select %p189, %s188, 8
        %p191 = scmp.lt.s32.totalorder %s22, 0
        %s192 = scalar_select %p191, %s22, 0
        %s193 = sadd.s32 %s192, %s190
        %s194 = smul.addr %s193, 4
        %s195 = scalar_lea.vmem %s1, %s194
        %s196 = smul.u32 9, %s23
      $region16: #{basic_block_forward.7} parent=11 // pred_fallthru
        _
    $region12: #{basic_block_forward.7} parent=5 // pred_fallthru
      _
    %p197 = scmp.lt.s32.totalorder %s11, 2
    // Predicated region
    $region17: #{basic_block_forward.7} parent=5 // pred_check
      %p198 = pneg %p197
    $region18: #{basic_block_forward.7} parent=5 // pred_check_branch
      %200 = sbr.rel (%p198) target = $region20
    $region19: #{basic_block_forward.7} parent=5 // pred_region
      // Predicated region
      $region21: #{basic_block_forward.7} parent=19 // pred_check
        %p201 = pneg %p52
      $region22: #{basic_block_forward.7} parent=19 // pred_check_branch
        %203 = sbr.rel (%p201) target = $region24
      $region23: #{basic_block_forward.7} parent=19 // pred_region
        %s204 = smul.u32 8, %s18
        %p205 = scmp.lt.s32.totalorder %s204, 15
        %s206 = scalar_select %p205, %s204, 15
        %p207 = scmp.lt.s32.totalorder %s20, 0
        %s208 = scalar_select %p207, %s20, 0
        %s209 = sadd.s32 %s208, %s206
        %s210 = smul.addr %s209, 4
        %s211 = scalar_lea.vmem %s0, %s210
        %s212 = smul.u32 8, %s18
      $region24: #{basic_block_forward.7} parent=19 // pred_fallthru
        _
    $region20: #{basic_block_forward.7} parent=5 // pred_fallthru
      _
    %p213 = scmp.le.s32.totalorder 1, %s11
    %p214 = scmp.lt.s32.totalorder %s11, 3
    %p215 = pnand %p213, %p214
    %p216 = pneg %p215
    // Predicated region
    $region25: #{basic_block_forward.7} parent=5 // pred_check
      _
    $region26: #{basic_block_forward.7} parent=5 // pred_check_branch
      %218 = sbr.rel (%p215) target = $region28
    $region27: #{basic_block_forward.7} parent=5 // pred_region
      %s219 = ssub.s32 %s11, 1
      %s220 = smul.u32 8, %s21
      %p221 = scmp.lt.s32.totalorder %s220, 15
      %s222 = scalar_select %p221, %s220, 15
      %p223 = scmp.lt.s32.totalorder %s23, 0
      %s224 = scalar_select %p223, %s23, 0
      %s225 = sadd.s32 %s224, %s222
      %s226 = smul.addr %s225, 4
      %s227 = scalar_lea.vmem %s0, %s226
      %p228 = pneg %p58
      %p229 = pneg %p55
      %s230 = smul.u32 9, %s23
      %p231 = scmp.lt.s32.totalorder %s230, 8
      %s232 = scalar_select %p231, %s230, 8
      %p233 = scmp.lt.s32.totalorder %s22, 0
      %s234 = scalar_select %p233, %s22, 0
      %s235 = sadd.s32 %s234, %s232
      %s236 = smul.addr %s235, 4
      %s237 = scalar_lea.vmem %s1, %s236
      %p238 = pneg %p86
      %p239 = pneg %p83
      %p240 = pneg %p114
      %p241 = pneg %p111
      %s242 = smul.u32 8, %s21
      %p243 = scmp.lt.s32.totalorder %s242, 15
      %s244 = scalar_select %p243, %s242, 15
      %p245 = scmp.lt.s32.totalorder %s22, 0
      %s246 = scalar_select %p245, %s22, 0
      %s247 = sadd.s32 %s246, %s244
      %s248 = smul.addr %s247, 4
      %s249 = scalar_lea.vmem %s2, %s248
      %p250 = pneg %p142
      %p251 = pneg %p139
      %p252 = scmp.lt.s32.totalorder %s21, 1
      %s253 = scalar_select %p252, %s21, 1
      %p254 = scmp.lt.s32.totalorder %s22, 0
      %s255 = scalar_select %p254, %s22, 0
      %s256 = sadd.s32 %s255, %s253
      %s257 = smul.addr %s256, 8
      %s258 = scalar_lea.vmem %s3, %s257
      %p259 = pneg %p170
      %p260 = pneg %p167
      %p261 = scmp.lt.s32.totalorder %s21, 1
      %s262 = scalar_select %p261, %s21, 1
      %p263 = scmp.lt.s32.totalorder %s22, 0
      %s264 = scalar_select %p263, %s22, 0
      %s265 = sadd.s32 %s264, %s262
      %s266 = smul.addr %s265, 8
      %s267 = scalar_lea.vmem %s4, %s266
      %s268 = smul.u32 8, %s21
      %p269 = scmp.lt.s32.totalorder %s268, 15
      %s270 = scalar_select %p269, %s268, 15
      %p271 = scmp.lt.s32.totalorder %s23, 0
      %s272 = scalar_select %p271, %s23, 0
      %s273 = sadd.s32 %s272, %s270
      %s274 = smul.addr %s273, 4
      %s275 = scalar_lea.vmem %s0, %s274
      %s276 = smul.u32 8, %s21
      %s277 = smul.u32 9, %s23
      %p278 = scmp.lt.s32.totalorder %s277, 8
      %s279 = scalar_select %p278, %s277, 8
      %p280 = scmp.lt.s32.totalorder %s22, 0
      %s281 = scalar_select %p280, %s22, 0
      %s282 = sadd.s32 %s281, %s279
      %s283 = smul.addr %s282, 4
      %s284 = scalar_lea.vmem %s1, %s283
      %s285 = smul.u32 9, %s23
      %s286 = smul.u32 8, %s21
      %p287 = scmp.lt.s32.totalorder %s286, 15
      %s288 = scalar_select %p287, %s286, 15
      %p289 = scmp.lt.s32.totalorder %s22, 0
      %s290 = scalar_select %p289, %s22, 0
      %s291 = sadd.s32 %s290, %s288
      %s292 = smul.addr %s291, 4
      %s293 = scalar_lea.vmem %s2, %s292
      %s294 = smul.u32 8, %s21
      %p295 = scmp.lt.s32.totalorder %s21, 1
      %s296 = scalar_select %p295, %s21, 1
      %p297 = scmp.lt.s32.totalorder %s22, 0
      %s298 = scalar_select %p297, %s22, 0
      %s299 = sadd.s32 %s298, %s296
      %s300 = smul.addr %s299, 8
      %s301 = scalar_lea.vmem %s3, %s300
      %p302 = scmp.lt.s32.totalorder %s21, 1
      %s303 = scalar_select %p302, %s21, 1
      %p304 = scmp.lt.s32.totalorder %s22, 0
      %s305 = scalar_select %p304, %s22, 0
      %s306 = sadd.s32 %s305, %s303
      %s307 = smul.addr %s306, 8
      %s308 = scalar_lea.vmem %s4, %s307
      %p310 = scmp.eq.s32.totalorder %s23, 0
      // Predicated region
      $region29: #{basic_block_forward.7} parent=27 // pred_check
        %p311 = pneg %p310
      $region30: #{basic_block_forward.7} parent=27 // pred_check_branch
        %313 = sbr.rel (%p311) target = $region32
      $region31: #{basic_block_forward.7} parent=27 // pred_region
        %314 = vst [vmem:[#allocation2] sm:$0xff] 0.0
        %315 = vst [vmem:[#allocation2 + $0x8] sm:$0xff] 0.0
        %316 = vst [vmem:[#allocation2 + $0x10] sm:$0xff] 0.0
        %317 = vst [vmem:[#allocation2 + $0x18] sm:$0xff] 0.0
        %318 = vst [vmem:[#allocation2 + $0x20] sm:$0xff] 0.0
        %319 = vst [vmem:[#allocation2 + $0x28] sm:$0xff] 0.0
        %320 = vst [vmem:[#allocation2 + $0x30] sm:$0xff] 0.0
        %321 = vst [vmem:[#allocation2 + $0x38] sm:$0xff] 0.0
      $region32: #{basic_block_forward.7} parent=27 // pred_fallthru
        _
      %v322 = vld [vmem:[#allocation2] sm:$0xff]
      %v323 = vld [vmem:[#allocation2 + $0x8] sm:$0xff]
      %v324 = vld [vmem:[#allocation2 + $0x10] sm:$0xff]
      %v325 = vld [vmem:[#allocation2 + $0x18] sm:$0xff]
      %v326 = vld [vmem:[#allocation2 + $0x20] sm:$0xff]
      %v327 = vld [vmem:[#allocation2 + $0x28] sm:$0xff]
      %v328 = vld [vmem:[#allocation2 + $0x30] sm:$0xff]
      %v329 = vld [vmem:[#allocation2 + $0x38] sm:$0xff]
      %v330 = vld [vmem:[%s275] sm:$0xf]
      %v331 = vld [vmem:[%s275 + $0x4] sm:$0xf]
      %v332 = vld [vmem:[%s275 + $0x8] sm:$0xf]
      %v333 = vld [vmem:[%s275 + $0xc] sm:$0xf]
      %v334 = vld [vmem:[%s275 + $0x10] sm:$0xf]
      %v335 = vld [vmem:[%s275 + $0x14] sm:$0xf]
      %v336 = vld [vmem:[%s275 + $0x18] sm:$0xf]
      %v337 = vld [vmem:[%s275 + $0x1c] sm:$0xf]
      %v338 = vld [vmem:[%s284] sm:$0xf]
      %v339 = vld [vmem:[%s284 + $0x4] sm:$0xf]
      %v340 = vld [vmem:[%s284 + $0x8] sm:$0xf]
      %v341 = vld [vmem:[%s284 + $0xc] sm:$0xf]
      %v342 = vld [vmem:[%s284 + $0x10] sm:$0xf]
      %v343 = vld [vmem:[%s284 + $0x14] sm:$0xf]
      %v344 = vld [vmem:[%s284 + $0x18] sm:$0xf]
      %v345 = vld [vmem:[%s284 + $0x1c] sm:$0xf]
      %v346 = vld [vmem:[%s284 + $0x20] sm:$0xf]
      %v355 = vunpack.c.l.b16 %v330
      %v356 = vunpack.c.l.b16 %v331
      %v357 = vunpack.c.l.b16 %v332
      %v358 = vunpack.c.l.b16 %v333
      %v359 = vunpack.c.l.b16 %v334
      %v360 = vunpack.c.l.b16 %v335
      %v361 = vunpack.c.l.b16 %v336
      %v362 = vunpack.c.l.b16 %v337
      %v363 = vpack.c.b16 %v356, %v355
      %v364 = vpack.c.b16 %v358, %v357
      %v365 = vpack.c.b16 %v360, %v359
      %v366 = vpack.c.b16 %v362, %v361
      %v376 = vunpack.c.l.b16 %v338
      %v377 = vunpack.c.l.b16 %v339
      %v378 = vunpack.c.l.b16 %v340
      %v379 = vunpack.c.l.b16 %v341
      %v380 = vunpack.c.l.b16 %v342
      %v381 = vunpack.c.l.b16 %v343
      %v382 = vunpack.c.l.b16 %v344
      %v383 = vunpack.c.l.b16 %v345
      %v384 = vunpack.c.l.b16 %v346
      %v385 = vpack.c.b16 %v377, %v376
      %v386 = vpack.c.b16 %v379, %v378
      %v387 = vpack.c.b16 %v381, %v380
      %v388 = vpack.c.b16 %v383, %v382
      %v389 = vpack.c.b16 %v384, %v384
      %vm394 = vcmask 588800
      %v396 = vsel %vm394, %v363, 0
      %v399 = vsel %vm394, %v364, 0
      %v402 = vsel %vm394, %v365, 0
      %v405 = vsel %vm394, %v366, 0
      %vm407 = vcmask 1043456
      %v409 = vsel %vm407, %v389, 0
      %411 = vmatprep.subr.bf16.mxu0 0
      %412 = vmatpush1.bf16.msra.mxu0 0
      %413 = vmatprep.subr.bf16.mxu0 0
      %414 = vmatpush1.bf16.msra.mxu0 0
      %415 = vmatprep.subr.bf16.mxu0 0
      %416 = vmatpush1.bf16.msra.mxu0 0
      %417 = vmatprep.subr.bf16.mxu0 0
      %418 = vmatpush1.bf16.msra.mxu0 %v409
      %419 = vmatprep.subr.bf16.mxu0 0
      %420 = vmatpush1.bf16.msra.mxu0 %v388
      %421 = vmatprep.subr.bf16.mxu0 0
      %422 = vmatpush1.bf16.msra.mxu0 %v387
      %423 = vmatprep.subr.bf16.mxu0 0
      %424 = vmatpush1.bf16.msra.mxu0 %v386
      %425 = vmatprep.subr.bf16.mxu0 0
      %426 = vmatpush1.bf16.msra.mxu0 %v385
      %427 = vmatprep.subr.bf16.mxu0 0
      %428 = vmatpush2.bf16.msra.mxu0 0
      %429 = vmatprep.subr.bf16.mxu0 0
      %430 = vmatpush2.bf16.msra.mxu0 0
      %431 = vmatprep.subr.bf16.mxu0 0
      %432 = vmatpush2.bf16.msra.mxu0 0
      %433 = vmatprep.subr.bf16.mxu0 0
      %434 = vmatpush2.bf16.msra.mxu0 0
      %435 = vmatprep.subr.bf16.mxu0 0
      %436 = vmatpush2.bf16.msra.mxu0 0
      %437 = vmatprep.subr.bf16.mxu0 0
      %438 = vmatpush2.bf16.msra.mxu0 0
      %439 = vmatprep.subr.bf16.mxu0 0
      %440 = vmatpush2.bf16.msra.mxu0 0
      %441 = vmatprep.subr.bf16.mxu0 0
      %442 = vmatpush2.bf16.msra.mxu0 0
      %443 = vmatprep.mubr.bf16.mxu0 0
      %444 = vmatmul.mubr.bf16.gmra.mxu0 %v396
      %v445 = vpop.f32.mrf.mxu0
      %v446 = vadd.f32 0.0, %v445
      %v447 = vpop.f32.mrf.mxu0
      %v448 = vpop.f32.mrf.mxu0
      %v449 = vadd.f32 0.0, %v448
      %v450 = vpop.f32.mrf.mxu0
      %451 = vmatprep.mubr.bf16.mxu0 0
      %452 = vmatmul.mubr.bf16.gmra.mxu0 %v399
      %v453 = vpop.f32.mrf.mxu0
      %v454 = vadd.f32 0.0, %v453
      %v455 = vpop.f32.mrf.mxu0
      %v456 = vpop.f32.mrf.mxu0
      %v457 = vadd.f32 0.0, %v456
      %v458 = vpop.f32.mrf.mxu0
      %459 = vmatprep.mubr.bf16.mxu0 0
      %460 = vmatmul.mubr.bf16.gmra.mxu0 %v402
      %v461 = vpop.f32.mrf.mxu0
      %v462 = vadd.f32 0.0, %v461
      %v463 = vpop.f32.mrf.mxu0
      %v464 = vpop.f32.mrf.mxu0
      %v465 = vadd.f32 0.0, %v464
      %v466 = vpop.f32.mrf.mxu0
      %467 = vmatprep.mubr.bf16.mxu0 0
      %468 = vmatmul.mubr.bf16.gmra.mxu0 %v405
      %v469 = vpop.f32.mrf.mxu0
      %v470 = vadd.f32 0.0, %v469
      %v471 = vpop.f32.mrf.mxu0
      %v472 = vpop.f32.mrf.mxu0
      %v473 = vadd.f32 0.0, %v472
      %v474 = vpop.f32.mrf.mxu0
      %475 = vdwg.mxu0
      %v476 = vadd.f32 %v322, %v446
      %v477 = vadd.f32 %v323, %v449
      %v478 = vadd.f32 %v324, %v454
      %v479 = vadd.f32 %v325, %v457
      %v480 = vadd.f32 %v326, %v462
      %v481 = vadd.f32 %v327, %v465
      %v482 = vadd.f32 %v328, %v470
      %v483 = vadd.f32 %v329, %v473
      %484 = vst [vmem:[#allocation2] sm:$0xff] %v476
      %485 = vst [vmem:[#allocation2 + $0x8] sm:$0xff] %v477
      %486 = vst [vmem:[#allocation2 + $0x10] sm:$0xff] %v478
      %487 = vst [vmem:[#allocation2 + $0x18] sm:$0xff] %v479
      %488 = vst [vmem:[#allocation2 + $0x20] sm:$0xff] %v480
      %489 = vst [vmem:[#allocation2 + $0x28] sm:$0xff] %v481
      %490 = vst [vmem:[#allocation2 + $0x30] sm:$0xff] %v482
      %491 = vst [vmem:[#allocation2 + $0x38] sm:$0xff] %v483
      // Predicated region
      $region33: #{basic_block_forward.7} parent=27 // pred_check
        %p492 = pneg %p310
      $region34: #{basic_block_forward.7} parent=27 // pred_check_branch
        %494 = sbr.rel (%p492) target = $region36
      $region35: #{basic_block_forward.7} parent=27 // pred_region
        %v495 = vld [vmem:[#allocation2] sm:$0xff]
        %v496 = vld [vmem:[#allocation2 + $0x8] sm:$0xff]
        %v497 = vld [vmem:[#allocation2 + $0x10] sm:$0xff]
        %v498 = vld [vmem:[#allocation2 + $0x18] sm:$0xff]
        %v499 = vld [vmem:[#allocation2 + $0x20] sm:$0xff]
        %v500 = vld [vmem:[#allocation2 + $0x28] sm:$0xff]
        %v501 = vld [vmem:[#allocation2 + $0x30] sm:$0xff]
        %v502 = vld [vmem:[#allocation2 + $0x38] sm:$0xff]
        %v503 = vpack.c.bf16 %v496, %v495
        %v504 = vpack.c.bf16 %v498, %v497
        %v505 = vpack.c.bf16 %v500, %v499
        %v506 = vpack.c.bf16 %v502, %v501
        %v511 = vunpack.c.l.b16 %v503
        %v512 = vunpack.c.h.b16 %v503
        %v513 = vunpack.c.l.b16 %v504
        %v514 = vunpack.c.h.b16 %v504
        %v515 = vunpack.c.l.b16 %v505
        %v516 = vunpack.c.h.b16 %v505
        %v517 = vunpack.c.l.b16 %v506
        %v518 = vunpack.c.h.b16 %v506
        %v519 = vpack.c.b16 %v511, %v511
        %v520 = vpack.c.b16 %v512, %v512
        %v521 = vpack.c.b16 %v513, %v513
        %v522 = vpack.c.b16 %v514, %v514
        %v523 = vpack.c.b16 %v515, %v515
        %v524 = vpack.c.b16 %v516, %v516
        %v525 = vpack.c.b16 %v517, %v517
        %v526 = vpack.c.b16 %v518, %v518
        %535 = vst [vmem:[%s293] sm:$0xf] %v519
        %536 = vst [vmem:[%s293 + $0x4] sm:$0xf] %v520
        %537 = vst [vmem:[%s293 + $0x8] sm:$0xf] %v521
        %538 = vst [vmem:[%s293 + $0xc] sm:$0xf] %v522
        %539 = vst [vmem:[%s293 + $0x10] sm:$0xf] %v523
        %540 = vst [vmem:[%s293 + $0x14] sm:$0xf] %v524
        %541 = vst [vmem:[%s293 + $0x18] sm:$0xf] %v525
        %542 = vst [vmem:[%s293 + $0x1c] sm:$0xf] %v526
        %v543 = vadd.f32 %v495, %v496
        %v544 = vadd.f32 %v543, %v497
        %v545 = vadd.f32 %v544, %v498
        %v546 = vadd.f32 %v545, %v499
        %v547 = vadd.f32 %v546, %v500
        %v548 = vadd.f32 %v547, %v501
        %v549 = vadd.f32 %v548, %v502
        %v550 = vrot.slane %v549, 4
        %v551 = vadd.f32 %v549, %v550
        %v552 = vrot.slane %v551, 2
        %v553 = vadd.f32 %v551, %v552
        %v554 = vrot.slane %v553, 1
        %v555 = vadd.f32 %v553, %v554
        %v556 = vmul.f32 %v495, %v495
        %v557 = vmul.f32 %v496, %v496
        %v558 = vmul.f32 %v497, %v497
        %v559 = vmul.f32 %v498, %v498
        %v560 = vmul.f32 %v499, %v499
        %v561 = vmul.f32 %v500, %v500
        %v562 = vmul.f32 %v501, %v501
        %v563 = vmul.f32 %v502, %v502
        %v564 = vadd.f32 %v556, %v557
        %v565 = vadd.f32 %v564, %v558
        %v566 = vadd.f32 %v565, %v559
        %v567 = vadd.f32 %v566, %v560
        %v568 = vadd.f32 %v567, %v561
        %v569 = vadd.f32 %v568, %v562
        %v570 = vadd.f32 %v569, %v563
        %v571 = vrot.slane %v570, 4
        %v572 = vadd.f32 %v570, %v571
        %v573 = vrot.slane %v572, 2
        %v574 = vadd.f32 %v572, %v573
        %v575 = vrot.slane %v574, 1
        %v576 = vadd.f32 %v574, %v575
        %577 = vst [vmem:[%s301] sm:$0xff] %v555
        %578 = vst [vmem:[%s308] sm:$0xff] %v576
      $region36: #{basic_block_forward.7} parent=27 // pred_fallthru
        _
      %s579 = smul.u32 8, %s21
      %p580 = scmp.lt.s32.totalorder %s579, 15
      %s581 = scalar_select %p580, %s579, 15
      %p582 = scmp.lt.s32.totalorder %s22, 0
      %s583 = scalar_select %p582, %s22, 0
      %s584 = sadd.s32 %s583, %s581
      %s585 = smul.addr %s584, 4
      %s586 = scalar_lea.vmem %s2, %s585
      %p587 = scmp.lt.s32.totalorder %s21, 1
      %s588 = scalar_select %p587, %s21, 1
      %p589 = scmp.lt.s32.totalorder %s22, 0
      %s590 = scalar_select %p589, %s22, 0
      %s591 = sadd.s32 %s590, %s588
      %s592 = smul.addr %s591, 8
      %s593 = scalar_lea.vmem %s3, %s592
      %p594 = scmp.lt.s32.totalorder %s21, 1
      %s595 = scalar_select %p594, %s21, 1
      %p596 = scmp.lt.s32.totalorder %s22, 0
      %s597 = scalar_select %p596, %s22, 0
      %s598 = sadd.s32 %s597, %s595
      %s599 = smul.addr %s598, 8
      %s600 = scalar_lea.vmem %s4, %s599
      // Predicated region
      $region37: #{basic_block_forward.7} parent=27 // pred_check
        %p601 = pneg %p111
      $region38: #{basic_block_forward.7} parent=27 // pred_check_branch
        %603 = sbr.rel (%p601) target = $region40
      $region39: #{basic_block_forward.7} parent=27 // pred_region
        %s604 = smul.u32 8, %s21
      $region40: #{basic_block_forward.7} parent=27 // pred_fallthru
        _
      // Predicated region
      $region41: #{basic_block_forward.7} parent=27 // pred_check
        %p605 = pneg %p139
      $region42: #{basic_block_forward.7} parent=27 // pred_check_branch
        %607 = sbr.rel (%p605) target = $region44
      $region43: #{basic_block_forward.7} parent=27 // pred_region
        _
      $region44: #{basic_block_forward.7} parent=27 // pred_fallthru
        _
      // Predicated region
      $region45: #{basic_block_forward.7} parent=27 // pred_check
        %p608 = pneg %p167
      $region46: #{basic_block_forward.7} parent=27 // pred_check_branch
        %610 = sbr.rel (%p608) target = $region48
      $region47: #{basic_block_forward.7} parent=27 // pred_region
        _
      $region48: #{basic_block_forward.7} parent=27 // pred_fallthru
        _
    $region28: #{basic_block_forward.7} parent=5 // pred_fallthru
      _
    %p611 = scmp.le.s32.totalorder 2, %s11
    // Predicated region
    $region49: #{basic_block_forward.7} parent=5 // pred_check
      %p612 = pneg %p611
    $region50: #{basic_block_forward.7} parent=5 // pred_check_branch
      %614 = sbr.rel (%p612) target = $region52
    $region51: #{basic_block_forward.7} parent=5 // pred_region
      %s615 = ssub.s32 %s11, 2
      // Predicated region
      $region53: #{basic_block_forward.7} parent=51 // pred_check
        %p616 = pneg %p117
      $region54: #{basic_block_forward.7} parent=51 // pred_check_branch
        %618 = sbr.rel (%p616) target = $region56
      $region55: #{basic_block_forward.7} parent=51 // pred_region
        %s619 = smul.u32 8, %s24
        %p620 = scmp.lt.s32.totalorder %s619, 15
        %s621 = scalar_select %p620, %s619, 15
        %p622 = scmp.lt.s32.totalorder %s25, 0
        %s623 = scalar_select %p622, %s25, 0
        %s624 = sadd.s32 %s623, %s621
        %s625 = smul.addr %s624, 4
        %s626 = scalar_lea.vmem %s2, %s625
      $region56: #{basic_block_forward.7} parent=51 // pred_fallthru
        _
      // Predicated region
      $region57: #{basic_block_forward.7} parent=51 // pred_check
        %p627 = pneg %p145
      $region58: #{basic_block_forward.7} parent=51 // pred_check_branch
        %629 = sbr.rel (%p627) target = $region60
      $region59: #{basic_block_forward.7} parent=51 // pred_region
        %p630 = scmp.lt.s32.totalorder %s24, 1
        %s631 = scalar_select %p630, %s24, 1
        %p632 = scmp.lt.s32.totalorder %s25, 0
        %s633 = scalar_select %p632, %s25, 0
        %s634 = sadd.s32 %s633, %s631
        %s635 = smul.addr %s634, 8
        %s636 = scalar_lea.vmem %s3, %s635
      $region60: #{basic_block_forward.7} parent=51 // pred_fallthru
        _
      // Predicated region
      $region61: #{basic_block_forward.7} parent=51 // pred_check
        %p637 = pneg %p173
      $region62: #{basic_block_forward.7} parent=51 // pred_check_branch
        %639 = sbr.rel (%p637) target = $region64
      $region63: #{basic_block_forward.7} parent=51 // pred_region
        %p640 = scmp.lt.s32.totalorder %s24, 1
        %s641 = scalar_select %p640, %s24, 1
        %p642 = scmp.lt.s32.totalorder %s25, 0
        %s643 = scalar_select %p642, %s25, 0
        %s644 = sadd.s32 %s643, %s641
        %s645 = smul.addr %s644, 8
        %s646 = scalar_lea.vmem %s4, %s645
      $region64: #{basic_block_forward.7} parent=51 // pred_fallthru
        _
    $region52: #{basic_block_forward.7} parent=5 // pred_fallthru
      _
  $region6: #{basic_block_forward.7} parent=0 // loop_footer
    %s15 = sadd.s32 1, %s11
  $region7: #{basic_block_forward.7} parent=0 // loop_footer_branch
    %10 = sbr.rel target = $region3
  $region8: #{basic_block_forward.7} parent=0 // loop_exit
    _

// kernel: basic_block_forward.9
$region0: #{basic_block_forward.9}
  #allocation0 [shape = 'u32[]', space=smem, size = 0x4, offset = 0x4, fixed_abs, tag = 'smem constant byte address 0x4 - core index']
  #allocation1 [shape = 'u32[144,128]{1,0:T(1,128)}', space=vmem, size = 0x12000, scoped, tag = 'internal scratch']
  %s0 = inlined_call_operand.vmem [shape: bf16[128,128], index: 0, kind: input, shape index: {}]
  %s1 = inlined_call_operand.vmem [shape: f32[1,128], index: 1, kind: input, shape index: {}]
  %s2 = inlined_call_operand.vmem [shape: f32[1,128], index: 2, kind: input, shape index: {}]
  %s3 = inlined_call_operand.vmem [shape: bf16[128,128], index: 3, kind: input, shape index: {}]
  %s4 = inlined_call_operand.vmem [shape: f32[1,128], index: 4, kind: input, shape index: {}]
  %s5 = inlined_call_operand.vmem [shape: f32[1,128], index: 5, kind: input, shape index: {}]
  %s6 = inlined_call_operand.vmem [shape: bf16[128,128], index: 6, kind: output, shape index: {}]
  %s7 = sld [smem:[#allocation0]]
  $region57: #{basic_block_forward.9} parent=0
    _
  %s9 = ssub.s32 1, %s7
  %s10 = scalar_select 0, %s9, %s7
  loop: start=0, step=1, limit=4
  $region2: #{basic_block_forward.9} parent=0 // loop_pre_header
    _
  $region3: #{basic_block_forward.9} parent=0 // loop_header
    %s12 = sphi 0, %s16
    %p13 = scmp.ge.s32.totalorder %s12, 4
    %s22 = sphi 0, %s24
    %s25 = sphi 0, %s22
    %s26 = sphi 0, %s25
    %s42 = sphi 0, %s26
    %s46 = sphi 0, %s46
    %s48 = sphi 0, %s46
    %s49 = sphi 0, %s48
    %s63 = sphi 0, %s49
    %s67 = sphi 0, %s67
    %s69 = sphi 0, %s67
    %s70 = sphi 0, %s69
    %s84 = sphi 0, %s70
    %s90 = sphi 0, %s92
    %s93 = sphi 0, %s90
    %s94 = sphi 0, %s93
    %s110 = sphi 0, %s94
    %s114 = sphi 0, %s114
    %s116 = sphi 0, %s114
    %s117 = sphi 0, %s116
    %s131 = sphi 0, %s117
    %s135 = sphi 0, %s135
    %s137 = sphi 0, %s135
    %s138 = sphi 0, %s137
    %s152 = sphi 0, %s138
    %s158 = sphi 0, %s160
    %s161 = sphi 0, %s158
    %s162 = sphi 0, %s161
    %s178 = sphi 0, %s162
  $region4: #{basic_block_forward.9} parent=0 // loop_header_branch
    %15 = sbr.rel (%p13) target = $region8
  $region5: #{basic_block_forward.9} parent=0 // loop_body
    %s17 = ssub.s32 %s12, 1
    %s18 = ssub.s32 %s12, 2
    %s19 = sadd.s32 %s12, 1
    %s20 = ssub.s32 %s12, %s19
    %p21 = scmp.eq.s32.totalorder %s20, 0
    %s23 = sadd.s32 %s22, 1
    %s24 = scalar_select %p21, %s22, %s23
    %p27 = pneg %p21
    %p28 = scmp.eq.s32.totalorder %s12, 1
    %p29 = por %p27, %p28
    %p30 = scmp.ne.s32.totalorder %s22, %s25
    %p31 = scmp.eq.s32.totalorder %s12, 0
    %p32 = por %p30, %p31
    %p33 = scmp.ne.s32.totalorder %s22, %s25
    %p34 = scmp.eq.s32.totalorder %s17, 1
    %p35 = por %p33, %p34
    %p36 = scmp.ne.s32.totalorder %s25, %s26
    %p37 = scmp.eq.s32.totalorder %s17, 0
    %p38 = por %p36, %p37
    %p39 = scmp.ne.s32.totalorder %s25, %s26
    %p40 = scmp.eq.s32.totalorder %s18, 1
    %p41 = por %p39, %p40
    %p43 = scmp.ne.s32.totalorder %s26, %s42
    %p44 = scmp.eq.s32.totalorder %s18, 0
    %p45 = por %p43, %p44
    %s47 = sadd.s32 %s46, 1
    %p50 = scmp.eq.s32.totalorder %s12, 1
    %p51 = scmp.ne.s32.totalorder %s46, %s48
    %p52 = scmp.eq.s32.totalorder %s12, 0
    %p53 = por %p51, %p52
    %p54 = scmp.ne.s32.totalorder %s46, %s48
    %p55 = scmp.eq.s32.totalorder %s17, 1
    %p56 = por %p54, %p55
    %p57 = scmp.ne.s32.totalorder %s48, %s49
    %p58 = scmp.eq.s32.totalorder %s17, 0
    %p59 = por %p57, %p58
    %p60 = scmp.ne.s32.totalorder %s48, %s49
    %p61 = scmp.eq.s32.totalorder %s18, 1
    %p62 = por %p60, %p61
    %p64 = scmp.ne.s32.totalorder %s49, %s63
    %p65 = scmp.eq.s32.totalorder %s18, 0
    %p66 = por %p64, %p65
    %s68 = sadd.s32 %s67, 1
    %p71 = scmp.eq.s32.totalorder %s12, 1
    %p72 = scmp.ne.s32.totalorder %s67, %s69
    %p73 = scmp.eq.s32.totalorder %s12, 0
    %p74 = por %p72, %p73
    %p75 = scmp.ne.s32.totalorder %s67, %s69
    %p76 = scmp.eq.s32.totalorder %s17, 1
    %p77 = por %p75, %p76
    %p78 = scmp.ne.s32.totalorder %s69, %s70
    %p79 = scmp.eq.s32.totalorder %s17, 0
    %p80 = por %p78, %p79
    %p81 = scmp.ne.s32.totalorder %s69, %s70
    %p82 = scmp.eq.s32.totalorder %s18, 1
    %p83 = por %p81, %p82
    %p85 = scmp.ne.s32.totalorder %s70, %s84
    %p86 = scmp.eq.s32.totalorder %s18, 0
    %p87 = por %p85, %p86
    %s88 = ssub.s32 %s12, %s19
    %p89 = scmp.eq.s32.totalorder %s88, 0
    %s91 = sadd.s32 %s90, 1
    %s92 = scalar_select %p89, %s90, %s91
    %p95 = pneg %p89
    %p96 = scmp.eq.s32.totalorder %s12, 1
    %p97 = por %p95, %p96
    %p98 = scmp.ne.s32.totalorder %s90, %s93
    %p99 = scmp.eq.s32.totalorder %s12, 0
    %p100 = por %p98, %p99
    %p101 = scmp.ne.s32.totalorder %s90, %s93
    %p102 = scmp.eq.s32.totalorder %s17, 1
    %p103 = por %p101, %p102
    %p104 = scmp.ne.s32.totalorder %s93, %s94
    %p105 = scmp.eq.s32.totalorder %s17, 0
    %p106 = por %p104, %p105
    %p107 = scmp.ne.s32.totalorder %s93, %s94
    %p108 = scmp.eq.s32.totalorder %s18, 1
    %p109 = por %p107, %p108
    %p111 = scmp.ne.s32.totalorder %s94, %s110
    %p112 = scmp.eq.s32.totalorder %s18, 0
    %p113 = por %p111, %p112
    %s115 = sadd.s32 %s114, 1
    %p118 = scmp.eq.s32.totalorder %s12, 1
    %p119 = scmp.ne.s32.totalorder %s114, %s116
    %p120 = scmp.eq.s32.totalorder %s12, 0
    %p121 = por %p119, %p120
    %p122 = scmp.ne.s32.totalorder %s114, %s116
    %p123 = scmp.eq.s32.totalorder %s17, 1
    %p124 = por %p122, %p123
    %p125 = scmp.ne.s32.totalorder %s116, %s117
    %p126 = scmp.eq.s32.totalorder %s17, 0
    %p127 = por %p125, %p126
    %p128 = scmp.ne.s32.totalorder %s116, %s117
    %p129 = scmp.eq.s32.totalorder %s18, 1
    %p130 = por %p128, %p129
    %p132 = scmp.ne.s32.totalorder %s117, %s131
    %p133 = scmp.eq.s32.totalorder %s18, 0
    %p134 = por %p132, %p133
    %s136 = sadd.s32 %s135, 1
    %p139 = scmp.eq.s32.totalorder %s12, 1
    %p140 = scmp.ne.s32.totalorder %s135, %s137
    %p141 = scmp.eq.s32.totalorder %s12, 0
    %p142 = por %p140, %p141
    %p143 = scmp.ne.s32.totalorder %s135, %s137
    %p144 = scmp.eq.s32.totalorder %s17, 1
    %p145 = por %p143, %p144
    %p146 = scmp.ne.s32.totalorder %s137, %s138
    %p147 = scmp.eq.s32.totalorder %s17, 0
    %p148 = por %p146, %p147
    %p149 = scmp.ne.s32.totalorder %s137, %s138
    %p150 = scmp.eq.s32.totalorder %s18, 1
    %p151 = por %p149, %p150
    %p153 = scmp.ne.s32.totalorder %s138, %s152
    %p154 = scmp.eq.s32.totalorder %s18, 0
    %p155 = por %p153, %p154
    %s156 = ssub.s32 %s12, %s19
    %p157 = scmp.eq.s32.totalorder %s156, 0
    %s159 = sadd.s32 %s158, 1
    %s160 = scalar_select %p157, %s158, %s159
    %p163 = pneg %p157
    %p164 = scmp.eq.s32.totalorder %s12, 1
    %p165 = por %p163, %p164
    %p166 = scmp.ne.s32.totalorder %s158, %s161
    %p167 = scmp.eq.s32.totalorder %s12, 0
    %p168 = por %p166, %p167
    %p169 = scmp.ne.s32.totalorder %s158, %s161
    %p170 = scmp.eq.s32.totalorder %s17, 1
    %p171 = por %p169, %p170
    %p172 = scmp.ne.s32.totalorder %s161, %s162
    %p173 = scmp.eq.s32.totalorder %s17, 0
    %p174 = por %p172, %p173
    %p175 = scmp.ne.s32.totalorder %s161, %s162
    %p176 = scmp.eq.s32.totalorder %s18, 1
    %p177 = por %p175, %p176
    %p179 = scmp.ne.s32.totalorder %s162, %s178
    %p180 = scmp.eq.s32.totalorder %s18, 0
    %p181 = por %p179, %p180
    %p182 = scmp.le.s32.totalorder 1, %s12
    %p183 = scmp.lt.s32.totalorder %s12, 3
    %p184 = pnand %p182, %p183
    %p185 = pneg %p184
    // Predicated region
    $region9: #{basic_block_forward.9} parent=5 // pred_check
      _
    $region10: #{basic_block_forward.9} parent=5 // pred_check_branch
      %187 = sbr.rel (%p184) target = $region12
    $region11: #{basic_block_forward.9} parent=5 // pred_region
      %s188 = ssub.s32 %s12, 1
      // Predicated region
      $region13: #{basic_block_forward.9} parent=11 // pred_check
        %p189 = pneg %p59
      $region14: #{basic_block_forward.9} parent=11 // pred_check_branch
        %191 = sbr.rel (%p189) target = $region16
      $region15: #{basic_block_forward.9} parent=11 // pred_region
        _
      $region16: #{basic_block_forward.9} parent=11 // pred_fallthru
        _
      // Predicated region
      $region17: #{basic_block_forward.9} parent=11 // pred_check
        %p192 = pneg %p80
      $region18: #{basic_block_forward.9} parent=11 // pred_check_branch
        %194 = sbr.rel (%p192) target = $region20
      $region19: #{basic_block_forward.9} parent=11 // pred_region
        _
      $region20: #{basic_block_forward.9} parent=11 // pred_fallthru
        _
      // Predicated region
      $region21: #{basic_block_forward.9} parent=11 // pred_check
        %p195 = pneg %p127
      $region22: #{basic_block_forward.9} parent=11 // pred_check_branch
        %197 = sbr.rel (%p195) target = $region24
      $region23: #{basic_block_forward.9} parent=11 // pred_region
        _
      $region24: #{basic_block_forward.9} parent=11 // pred_fallthru
        _
      // Predicated region
      $region25: #{basic_block_forward.9} parent=11 // pred_check
        %p198 = pneg %p148
      $region26: #{basic_block_forward.9} parent=11 // pred_check_branch
        %200 = sbr.rel (%p198) target = $region28
      $region27: #{basic_block_forward.9} parent=11 // pred_region
        _
      $region28: #{basic_block_forward.9} parent=11 // pred_fallthru
        _
    $region12: #{basic_block_forward.9} parent=5 // pred_fallthru
      _
    %p201 = scmp.lt.s32.totalorder %s12, 2
    // Predicated region
    $region29: #{basic_block_forward.9} parent=5 // pred_check
      %p202 = pneg %p201
    $region30: #{basic_block_forward.9} parent=5 // pred_check_branch
      %204 = sbr.rel (%p202) target = $region32
    $region31: #{basic_block_forward.9} parent=5 // pred_region
      // Predicated region
      $region33: #{basic_block_forward.9} parent=31 // pred_check
        %p205 = pneg %p32
      $region34: #{basic_block_forward.9} parent=31 // pred_check_branch
        %207 = sbr.rel (%p205) target = $region36
      $region35: #{basic_block_forward.9} parent=31 // pred_region
        %s208 = smul.u32 8, %s12
        %p209 = scmp.lt.s32.totalorder %s208, 15
        %s210 = scalar_select %p209, %s208, 15
        %s211 = smul.addr %s210, 4
        %s212 = scalar_lea.vmem %s0, %s211
        %s213 = smul.u32 8, %s12
      $region36: #{basic_block_forward.9} parent=31 // pred_fallthru
        _
      // Predicated region
      $region37: #{basic_block_forward.9} parent=31 // pred_check
        %p214 = pneg %p100
      $region38: #{basic_block_forward.9} parent=31 // pred_check_branch
        %216 = sbr.rel (%p214) target = $region40
      $region39: #{basic_block_forward.9} parent=31 // pred_region
        %s217 = smul.u32 8, %s12
        %p218 = scmp.lt.s32.totalorder %s217, 15
        %s219 = scalar_select %p218, %s217, 15
        %s220 = smul.addr %s219, 4
        %s221 = scalar_lea.vmem %s3, %s220
        %s222 = smul.u32 8, %s12
      $region40: #{basic_block_forward.9} parent=31 // pred_fallthru
        _
    $region32: #{basic_block_forward.9} parent=5 // pred_fallthru
      _
    %p223 = scmp.le.s32.totalorder 1, %s12
    %p224 = scmp.lt.s32.totalorder %s12, 3
    %p225 = pnand %p223, %p224
    %p226 = pneg %p225
    // Predicated region
    $region41: #{basic_block_forward.9} parent=5 // pred_check
      _
    $region42: #{basic_block_forward.9} parent=5 // pred_check_branch
      %228 = sbr.rel (%p225) target = $region44
    $region43: #{basic_block_forward.9} parent=5 // pred_region
      %s229 = ssub.s32 %s12, 1
      %s230 = smul.u32 8, %s17
      %p231 = scmp.lt.s32.totalorder %s230, 15
      %s232 = scalar_select %p231, %s230, 15
      %s233 = smul.addr %s232, 4
      %s234 = scalar_lea.vmem %s0, %s233
      %p235 = pneg %p38
      %p236 = pneg %p35
      %p237 = pneg %p59
      %p238 = pneg %p56
      %p239 = pneg %p80
      %p240 = pneg %p77
      %s241 = smul.u32 8, %s17
      %p242 = scmp.lt.s32.totalorder %s241, 15
      %s243 = scalar_select %p242, %s241, 15
      %s244 = smul.addr %s243, 4
      %s245 = scalar_lea.vmem %s3, %s244
      %p246 = pneg %p106
      %p247 = pneg %p103
      %p248 = pneg %p127
      %p249 = pneg %p124
      %p250 = pneg %p148
      %p251 = pneg %p145
      %p252 = pneg %p174
      %p253 = pneg %p171
      %s254 = smul.u32 8, %s17
      %p255 = scmp.lt.s32.totalorder %s254, 15
      %s256 = scalar_select %p255, %s254, 15
      %s257 = smul.addr %s256, 4
      %s258 = scalar_lea.vmem %s6, %s257
      %s259 = smul.u32 8, %s17
      %p260 = scmp.lt.s32.totalorder %s259, 15
      %s261 = scalar_select %p260, %s259, 15
      %s262 = smul.addr %s261, 4
      %s263 = scalar_lea.vmem %s0, %s262
      %s264 = smul.u32 8, %s17
      %s265 = smul.u32 8, %s17
      %p266 = scmp.lt.s32.totalorder %s265, 15
      %s267 = scalar_select %p266, %s265, 15
      %s268 = smul.addr %s267, 4
      %s269 = scalar_lea.vmem %s3, %s268
      %s270 = smul.u32 8, %s17
      %s271 = smul.u32 8, %s17
      %p272 = scmp.lt.s32.totalorder %s271, 15
      %s273 = scalar_select %p272, %s271, 15
      %s274 = smul.addr %s273, 4
      %s275 = scalar_lea.vmem %s6, %s274
      %s276 = smul.u32 8, %s17
      %v277 = vld [vmem:[%s263] sm:$0xf]
      %v278 = vld [vmem:[%s263 + $0x4] sm:$0xf]
      %v279 = vld [vmem:[%s263 + $0x8] sm:$0xf]
      %v280 = vld [vmem:[%s263 + $0xc] sm:$0xf]
      %v281 = vld [vmem:[%s263 + $0x10] sm:$0xf]
      %v282 = vld [vmem:[%s263 + $0x14] sm:$0xf]
      %v283 = vld [vmem:[%s263 + $0x18] sm:$0xf]
      %v284 = vld [vmem:[%s263 + $0x1c] sm:$0xf]
      %v285 = vunpack.c.l.bf16 %v277
      %v286 = vunpack.c.l.bf16 %v278
      %v287 = vunpack.c.l.bf16 %v279
      %v288 = vunpack.c.l.bf16 %v280
      %v289 = vunpack.c.l.bf16 %v281
      %v290 = vunpack.c.l.bf16 %v282
      %v291 = vunpack.c.l.bf16 %v283
      %v292 = vunpack.c.l.bf16 %v284
      %v293 = vld [vmem:[%s269] sm:$0xf]
      %v294 = vld [vmem:[%s269 + $0x4] sm:$0xf]
      %v295 = vld [vmem:[%s269 + $0x8] sm:$0xf]
      %v296 = vld [vmem:[%s269 + $0xc] sm:$0xf]
      %v297 = vld [vmem:[%s269 + $0x10] sm:$0xf]
      %v298 = vld [vmem:[%s269 + $0x14] sm:$0xf]
      %v299 = vld [vmem:[%s269 + $0x18] sm:$0xf]
      %v300 = vld [vmem:[%s269 + $0x1c] sm:$0xf]
      %v301 = vunpack.c.l.bf16 %v293
      %v302 = vunpack.c.l.bf16 %v294
      %v303 = vunpack.c.l.bf16 %v295
      %v304 = vunpack.c.l.bf16 %v296
      %v305 = vunpack.c.l.bf16 %v297
      %v306 = vunpack.c.l.bf16 %v298
      %v307 = vunpack.c.l.bf16 %v299
      %v308 = vunpack.c.l.bf16 %v300
      %v309 = vld [vmem:[%s1] sm:$0x1]
      %v311 = vlaneseq
      %v312 = vshrl.u32 %v311, 7
      %v313 = vsub.s32 0, %v312
      %v314 = vrot.slane %v309, %v313
      %v316 = vmul.f32 %v285, %v314
      %v317 = vmul.f32 %v286, %v314
      %v318 = vmul.f32 %v287, %v314
      %v319 = vmul.f32 %v288, %v314
      %v320 = vmul.f32 %v289, %v314
      %v321 = vmul.f32 %v290, %v314
      %v322 = vmul.f32 %v291, %v314
      %v323 = vmul.f32 %v292, %v314
      %v324 = vld [vmem:[%s2] sm:$0x1]
      %v326 = vlaneseq
      %v327 = vshrl.u32 %v326, 7
      %v328 = vsub.s32 0, %v327
      %v329 = vrot.slane %v324, %v328
      %v331 = vadd.f32 %v316, %v329
      %v332 = vadd.f32 %v317, %v329
      %v333 = vadd.f32 %v318, %v329
      %v334 = vadd.f32 %v319, %v329
      %v335 = vadd.f32 %v320, %v329
      %v336 = vadd.f32 %v321, %v329
      %v337 = vadd.f32 %v322, %v329
      %v338 = vadd.f32 %v323, %v329
      %v339 = vld [vmem:[%s4] sm:$0x1]
      %v341 = vlaneseq
      %v342 = vshrl.u32 %v341, 7
      %v343 = vsub.s32 0, %v342
      %v344 = vrot.slane %v339, %v343
      %v346 = vmul.f32 %v301, %v344
      %v347 = vmul.f32 %v302, %v344
      %v348 = vmul.f32 %v303, %v344
      %v349 = vmul.f32 %v304, %v344
      %v350 = vmul.f32 %v305, %v344
      %v351 = vmul.f32 %v306, %v344
      %v352 = vmul.f32 %v307, %v344
      %v353 = vmul.f32 %v308, %v344
      %v354 = vld [vmem:[%s5] sm:$0x1]
      %v356 = vlaneseq
      %v357 = vshrl.u32 %v356, 7
      %v358 = vsub.s32 0, %v357
      %v359 = vrot.slane %v354, %v358
      %v361 = vadd.f32 %v346, %v359
      %v362 = vadd.f32 %v347, %v359
      %v363 = vadd.f32 %v348, %v359
      %v364 = vadd.f32 %v349, %v359
      %v365 = vadd.f32 %v350, %v359
      %v366 = vadd.f32 %v351, %v359
      %v367 = vadd.f32 %v352, %v359
      %v368 = vadd.f32 %v353, %v359
      %v369 = vadd.f32 %v331, %v361
      %v370 = vadd.f32 %v332, %v362
      %v371 = vadd.f32 %v333, %v363
      %v372 = vadd.f32 %v334, %v364
      %v373 = vadd.f32 %v335, %v365
      %v374 = vadd.f32 %v336, %v366
      %v375 = vadd.f32 %v337, %v367
      %v376 = vadd.f32 %v338, %v368
      %v377 = vmax.f32 %v369, 0.0
      %v378 = vmax.f32 %v370, 0.0
      %v379 = vmax.f32 %v371, 0.0
      %v380 = vmax.f32 %v372, 0.0
      %v381 = vmax.f32 %v373, 0.0
      %v382 = vmax.f32 %v374, 0.0
      %v383 = vmax.f32 %v375, 0.0
      %v384 = vmax.f32 %v376, 0.0
      %v385 = vpack.c.bf16 %v378, %v377
      %v386 = vpack.c.bf16 %v380, %v379
      %v387 = vpack.c.bf16 %v382, %v381
      %v388 = vpack.c.bf16 %v384, %v383
      %v393 = vunpack.c.l.b16 %v385
      %v394 = vunpack.c.h.b16 %v385
      %v395 = vunpack.c.l.b16 %v386
      %v396 = vunpack.c.h.b16 %v386
      %v397 = vunpack.c.l.b16 %v387
      %v398 = vunpack.c.h.b16 %v387
      %v399 = vunpack.c.l.b16 %v388
      %v400 = vunpack.c.h.b16 %v388
      %v401 = vpack.c.b16 %v393, %v393
      %v402 = vpack.c.b16 %v394, %v394
      %v403 = vpack.c.b16 %v395, %v395
      %v404 = vpack.c.b16 %v396, %v396
      %v405 = vpack.c.b16 %v397, %v397
      %v406 = vpack.c.b16 %v398, %v398
      %v407 = vpack.c.b16 %v399, %v399
      %v408 = vpack.c.b16 %v400, %v400
      %417 = vst [vmem:[%s275] sm:$0xf] %v401
      %418 = vst [vmem:[%s275 + $0x4] sm:$0xf] %v402
      %419 = vst [vmem:[%s275 + $0x8] sm:$0xf] %v403
      %420 = vst [vmem:[%s275 + $0xc] sm:$0xf] %v404
      %421 = vst [vmem:[%s275 + $0x10] sm:$0xf] %v405
      %422 = vst [vmem:[%s275 + $0x14] sm:$0xf] %v406
      %423 = vst [vmem:[%s275 + $0x18] sm:$0xf] %v407
      %424 = vst [vmem:[%s275 + $0x1c] sm:$0xf] %v408
      %s425 = smul.u32 8, %s17
      %p426 = scmp.lt.s32.totalorder %s425, 15
      %s427 = scalar_select %p426, %s425, 15
      %s428 = smul.addr %s427, 4
      %s429 = scalar_lea.vmem %s6, %s428
      // Predicated region
      $region45: #{basic_block_forward.9} parent=43 // pred_check
        %p430 = pneg %p171
      $region46: #{basic_block_forward.9} parent=43 // pred_check_branch
        %432 = sbr.rel (%p430) target = $region48
      $region47: #{basic_block_forward.9} parent=43 // pred_region
        %s433 = smul.u32 8, %s17
      $region48: #{basic_block_forward.9} parent=43 // pred_fallthru
        _
    $region44: #{basic_block_forward.9} parent=5 // pred_fallthru
      _
    %p434 = scmp.le.s32.totalorder 2, %s12
    // Predicated region
    $region49: #{basic_block_forward.9} parent=5 // pred_check
      %p435 = pneg %p434
    $region50: #{basic_block_forward.9} parent=5 // pred_check_branch
      %437 = sbr.rel (%p435) target = $region52
    $region51: #{basic_block_forward.9} parent=5 // pred_region
      %s438 = ssub.s32 %s12, 2
      // Predicated region
      $region53: #{basic_block_forward.9} parent=51 // pred_check
        %p439 = pneg %p177
      $region54: #{basic_block_forward.9} parent=51 // pred_check_branch
        %441 = sbr.rel (%p439) target = $region56
      $region55: #{basic_block_forward.9} parent=51 // pred_region
        %s442 = smul.u32 8, %s18
        %p443 = scmp.lt.s32.totalorder %s442, 15
        %s444 = scalar_select %p443, %s442, 15
        %s445 = smul.addr %s444, 4
        %s446 = scalar_lea.vmem %s6, %s445
      $region56: #{basic_block_forward.9} parent=51 // pred_fallthru
        _
    $region52: #{basic_block_forward.9} parent=5 // pred_fallthru
      _
  $region6: #{basic_block_forward.9} parent=0 // loop_footer
    %s16 = sadd.s32 1, %s12
  $region7: #{basic_block_forward.9} parent=0 // loop_footer_branch
    %11 = sbr.rel target = $region3
  $region8: #{basic_block_forward.9} parent=0 // loop_exit
    _

// kernel: basic_block_forward.8
$region0: #{basic_block_forward.8}
  #allocation0 [shape = 'u32[]', space=smem, size = 0x4, offset = 0x4, fixed_abs, tag = 'smem constant byte address 0x4 - core index']
  #allocation1 [shape = 'u32[144,128]{1,0:T(1,128)}', space=vmem, size = 0x12000, scoped, tag = 'internal scratch']
  #allocation2 [shape = 'f32[64,128]{1,0:T(8,128)}', space=vmem, size = 0x8000, scoped, tag = 'scratch operand']
  %s0 = inlined_call_operand.vmem [shape: bf16[128,4], index: 0, kind: input, shape index: {}]
  %s1 = inlined_call_operand.vmem [shape: bf16[4,128], index: 1, kind: input, shape index: {}]
  %s2 = inlined_call_operand.vmem [shape: bf16[128,128], index: 2, kind: output, shape index: {0}]
  %s3 = inlined_call_operand.vmem [shape: f32[16,128], index: 3, kind: output, shape index: {1}]
  %s4 = inlined_call_operand.vmem [shape: f32[16,128], index: 4, kind: output, shape index: {2}]
  %5 = xla_tuple %s2, %s3, %s4
  %s6 = sld [smem:[#allocation0]]
  $region65: #{basic_block_forward.8} parent=0
    _
  %s8 = ssub.s32 1, %s6
  %s9 = scalar_select 0, %s8, %s6
  loop: start=0, step=1, limit=4
  $region2: #{basic_block_forward.8} parent=0 // loop_pre_header
    _
  $region3: #{basic_block_forward.8} parent=0 // loop_header
    %s11 = sphi 0, %s15
    %p12 = scmp.ge.s32.totalorder %s11, 4
    %s18 = sphi 0, %s37
    %s19 = sphi 0, %s33
    %s20 = sphi 0, %s29
    %s21 = sphi 0, %s18
    %s22 = sphi 0, %s19
    %s23 = sphi 0, %s20
    %s24 = sphi 0, %s21
    %s25 = sphi 0, %s22
    %s26 = sphi 0, %s23
    %s42 = sphi 0, %s44
    %s45 = sphi 0, %s42
    %s46 = sphi 0, %s45
    %s62 = sphi 0, %s46
    %s70 = sphi 0, %s72
    %s73 = sphi 0, %s70
    %s74 = sphi 0, %s73
    %s90 = sphi 0, %s74
    %s98 = sphi 0, %s100
    %s101 = sphi 0, %s98
    %s102 = sphi 0, %s101
    %s118 = sphi 0, %s102
    %s126 = sphi 0, %s128
    %s129 = sphi 0, %s126
    %s130 = sphi 0, %s129
    %s146 = sphi 0, %s130
    %s154 = sphi 0, %s156
    %s157 = sphi 0, %s154
    %s158 = sphi 0, %s157
    %s174 = sphi 0, %s158
  $region4: #{basic_block_forward.8} parent=0 // loop_header_branch
    %14 = sbr.rel (%p12) target = $region8
  $region5: #{basic_block_forward.8} parent=0 // loop_body
    %s16 = ssub.s32 %s11, 1
    %s17 = ssub.s32 %s11, 2
    %s27 = sadd.s32 1, %s20
    %p28 = scmp.ge.s32.totalorder %s27, 1
    %s29 = scalar_select %p28, 0, %s27
    %s30 = sadd.s32 1, %s19
    %s31 = scalar_select %p28, %s30, %s19
    %p32 = scmp.ge.s32.totalorder %s31, 1
    %s33 = scalar_select %p32, 0, %s31
    %s34 = sadd.s32 1, %s18
    %s35 = scalar_select %p32, %s34, %s18
    %p36 = scmp.ge.s32.totalorder %s35, 2
    %s37 = scalar_select %p36, 0, %s35
    %s38 = ssub.s32 %s18, %s37
    %s39 = ssub.s32 %s20, %s29
    %s40 = sor.u32 %s38, %s39
    %p41 = scmp.eq.s32.totalorder %s40, 0
    %s43 = sadd.s32 %s42, 1
    %s44 = scalar_select %p41, %s42, %s43
    %p47 = pneg %p41
    %p48 = scmp.eq.s32.totalorder %s11, 1
    %p49 = por %p47, %p48
    %p50 = scmp.ne.s32.totalorder %s42, %s45
    %p51 = scmp.eq.s32.totalorder %s11, 0
    %p52 = por %p50, %p51
    %p53 = scmp.ne.s32.totalorder %s42, %s45
    %p54 = scmp.eq.s32.totalorder %s16, 1
    %p55 = por %p53, %p54
    %p56 = scmp.ne.s32.totalorder %s45, %s46
    %p57 = scmp.eq.s32.totalorder %s16, 0
    %p58 = por %p56, %p57
    %p59 = scmp.ne.s32.totalorder %s45, %s46
    %p60 = scmp.eq.s32.totalorder %s17, 1
    %p61 = por %p59, %p60
    %p63 = scmp.ne.s32.totalorder %s46, %s62
    %p64 = scmp.eq.s32.totalorder %s17, 0
    %p65 = por %p63, %p64
    %s66 = ssub.s32 %s20, %s29
    %s67 = ssub.s32 %s19, %s33
    %s68 = sor.u32 %s66, %s67
    %p69 = scmp.eq.s32.totalorder %s68, 0
    %s71 = sadd.s32 %s70, 1
    %s72 = scalar_select %p69, %s70, %s71
    %p75 = pneg %p69
    %p76 = scmp.eq.s32.totalorder %s11, 1
    %p77 = por %p75, %p76
    %p78 = scmp.ne.s32.totalorder %s70, %s73
    %p79 = scmp.eq.s32.totalorder %s11, 0
    %p80 = por %p78, %p79
    %p81 = scmp.ne.s32.totalorder %s70, %s73
    %p82 = scmp.eq.s32.totalorder %s16, 1
    %p83 = por %p81, %p82
    %p84 = scmp.ne.s32.totalorder %s73, %s74
    %p85 = scmp.eq.s32.totalorder %s16, 0
    %p86 = por %p84, %p85
    %p87 = scmp.ne.s32.totalorder %s73, %s74
    %p88 = scmp.eq.s32.totalorder %s17, 1
    %p89 = por %p87, %p88
    %p91 = scmp.ne.s32.totalorder %s74, %s90
    %p92 = scmp.eq.s32.totalorder %s17, 0
    %p93 = por %p91, %p92
    %s94 = ssub.s32 %s18, %s37
    %s95 = ssub.s32 %s19, %s33
    %s96 = sor.u32 %s94, %s95
    %p97 = scmp.eq.s32.totalorder %s96, 0
    %s99 = sadd.s32 %s98, 1
    %s100 = scalar_select %p97, %s98, %s99
    %p103 = pneg %p97
    %p104 = scmp.eq.s32.totalorder %s11, 1
    %p105 = por %p103, %p104
    %p106 = scmp.ne.s32.totalorder %s98, %s101
    %p107 = scmp.eq.s32.totalorder %s11, 0
    %p108 = por %p106, %p107
    %p109 = scmp.ne.s32.totalorder %s98, %s101
    %p110 = scmp.eq.s32.totalorder %s16, 1
    %p111 = por %p109, %p110
    %p112 = scmp.ne.s32.totalorder %s101, %s102
    %p113 = scmp.eq.s32.totalorder %s16, 0
    %p114 = por %p112, %p113
    %p115 = scmp.ne.s32.totalorder %s101, %s102
    %p116 = scmp.eq.s32.totalorder %s17, 1
    %p117 = por %p115, %p116
    %p119 = scmp.ne.s32.totalorder %s102, %s118
    %p120 = scmp.eq.s32.totalorder %s17, 0
    %p121 = por %p119, %p120
    %s122 = ssub.s32 %s18, %s37
    %s123 = ssub.s32 %s19, %s33
    %s124 = sor.u32 %s122, %s123
    %p125 = scmp.eq.s32.totalorder %s124, 0
    %s127 = sadd.s32 %s126, 1
    %s128 = scalar_select %p125, %s126, %s127
    %p131 = pneg %p125
    %p132 = scmp.eq.s32.totalorder %s11, 1
    %p133 = por %p131, %p132
    %p134 = scmp.ne.s32.totalorder %s126, %s129
    %p135 = scmp.eq.s32.totalorder %s11, 0
    %p136 = por %p134, %p135
    %p137 = scmp.ne.s32.totalorder %s126, %s129
    %p138 = scmp.eq.s32.totalorder %s16, 1
    %p139 = por %p137, %p138
    %p140 = scmp.ne.s32.totalorder %s129, %s130
    %p141 = scmp.eq.s32.totalorder %s16, 0
    %p142 = por %p140, %p141
    %p143 = scmp.ne.s32.totalorder %s129, %s130
    %p144 = scmp.eq.s32.totalorder %s17, 1
    %p145 = por %p143, %p144
    %p147 = scmp.ne.s32.totalorder %s130, %s146
    %p148 = scmp.eq.s32.totalorder %s17, 0
    %p149 = por %p147, %p148
    %s150 = ssub.s32 %s18, %s37
    %s151 = ssub.s32 %s19, %s33
    %s152 = sor.u32 %s150, %s151
    %p153 = scmp.eq.s32.totalorder %s152, 0
    %s155 = sadd.s32 %s154, 1
    %s156 = scalar_select %p153, %s154, %s155
    %p159 = pneg %p153
    %p160 = scmp.eq.s32.totalorder %s11, 1
    %p161 = por %p159, %p160
    %p162 = scmp.ne.s32.totalorder %s154, %s157
    %p163 = scmp.eq.s32.totalorder %s11, 0
    %p164 = por %p162, %p163
    %p165 = scmp.ne.s32.totalorder %s154, %s157
    %p166 = scmp.eq.s32.totalorder %s16, 1
    %p167 = por %p165, %p166
    %p168 = scmp.ne.s32.totalorder %s157, %s158
    %p169 = scmp.eq.s32.totalorder %s16, 0
    %p170 = por %p168, %p169
    %p171 = scmp.ne.s32.totalorder %s157, %s158
    %p172 = scmp.eq.s32.totalorder %s17, 1
    %p173 = por %p171, %p172
    %p175 = scmp.ne.s32.totalorder %s158, %s174
    %p176 = scmp.eq.s32.totalorder %s17, 0
    %p177 = por %p175, %p176
    %p178 = scmp.le.s32.totalorder 1, %s11
    %p179 = scmp.lt.s32.totalorder %s11, 3
    %p180 = pnand %p178, %p179
    %p181 = pneg %p180
    // Predicated region
    $region9: #{basic_block_forward.8} parent=5 // pred_check
      _
    $region10: #{basic_block_forward.8} parent=5 // pred_check_branch
      %183 = sbr.rel (%p180) target = $region12
    $region11: #{basic_block_forward.8} parent=5 // pred_region
      %s184 = ssub.s32 %s11, 1
      // Predicated region
      $region13: #{basic_block_forward.8} parent=11 // pred_check
        %p185 = pneg %p86
      $region14: #{basic_block_forward.8} parent=11 // pred_check_branch
        %187 = sbr.rel (%p185) target = $region16
      $region15: #{basic_block_forward.8} parent=11 // pred_region
        %p188 = scmp.lt.s32.totalorder %s23, 0
        %s189 = scalar_select %p188, %s23, 0
        %p190 = scmp.lt.s32.totalorder %s22, 0
        %s191 = scalar_select %p190, %s22, 0
        %s192 = sadd.s32 %s191, %s189
        %s193 = smul.addr %s192, 2
        %s194 = scalar_lea.vmem %s1, %s193
      $region16: #{basic_block_forward.8} parent=11 // pred_fallthru
        _
    $region12: #{basic_block_forward.8} parent=5 // pred_fallthru
      _
    %p195 = scmp.lt.s32.totalorder %s11, 2
    // Predicated region
    $region17: #{basic_block_forward.8} parent=5 // pred_check
      %p196 = pneg %p195
    $region18: #{basic_block_forward.8} parent=5 // pred_check_branch
      %198 = sbr.rel (%p196) target = $region20
    $region19: #{basic_block_forward.8} parent=5 // pred_region
      // Predicated region
      $region21: #{basic_block_forward.8} parent=19 // pred_check
        %p199 = pneg %p52
      $region22: #{basic_block_forward.8} parent=19 // pred_check_branch
        %201 = sbr.rel (%p199) target = $region24
      $region23: #{basic_block_forward.8} parent=19 // pred_region
        %s202 = smul.u32 8, %s18
        %p203 = scmp.lt.s32.totalorder %s202, 15
        %s204 = scalar_select %p203, %s202, 15
        %p205 = scmp.lt.s32.totalorder %s20, 0
        %s206 = scalar_select %p205, %s20, 0
        %s207 = sadd.s32 %s206, %s204
        %s208 = smul.addr %s207, 4
        %s209 = scalar_lea.vmem %s0, %s208
        %s210 = smul.u32 8, %s18
      $region24: #{basic_block_forward.8} parent=19 // pred_fallthru
        _
    $region20: #{basic_block_forward.8} parent=5 // pred_fallthru
      _
    %p211 = scmp.le.s32.totalorder 1, %s11
    %p212 = scmp.lt.s32.totalorder %s11, 3
    %p213 = pnand %p211, %p212
    %p214 = pneg %p213
    // Predicated region
    $region25: #{basic_block_forward.8} parent=5 // pred_check
      _
    $region26: #{basic_block_forward.8} parent=5 // pred_check_branch
      %216 = sbr.rel (%p213) target = $region28
    $region27: #{basic_block_forward.8} parent=5 // pred_region
      %s217 = ssub.s32 %s11, 1
      %s218 = smul.u32 8, %s21
      %p219 = scmp.lt.s32.totalorder %s218, 15
      %s220 = scalar_select %p219, %s218, 15
      %p221 = scmp.lt.s32.totalorder %s23, 0
      %s222 = scalar_select %p221, %s23, 0
      %s223 = sadd.s32 %s222, %s220
      %s224 = smul.addr %s223, 4
      %s225 = scalar_lea.vmem %s0, %s224
      %p226 = pneg %p58
      %p227 = pneg %p55
      %p228 = scmp.lt.s32.totalorder %s23, 0
      %s229 = scalar_select %p228, %s23, 0
      %p230 = scmp.lt.s32.totalorder %s22, 0
      %s231 = scalar_select %p230, %s22, 0
      %s232 = sadd.s32 %s231, %s229
      %s233 = smul.addr %s232, 2
      %s234 = scalar_lea.vmem %s1, %s233
      %p235 = pneg %p86
      %p236 = pneg %p83
      %p237 = pneg %p114
      %p238 = pneg %p111
      %s239 = smul.u32 8, %s21
      %p240 = scmp.lt.s32.totalorder %s239, 15
      %s241 = scalar_select %p240, %s239, 15
      %p242 = scmp.lt.s32.totalorder %s22, 0
      %s243 = scalar_select %p242, %s22, 0
      %s244 = sadd.s32 %s243, %s241
      %s245 = smul.addr %s244, 4
      %s246 = scalar_lea.vmem %s2, %s245
      %p247 = pneg %p142
      %p248 = pneg %p139
      %p249 = scmp.lt.s32.totalorder %s21, 1
      %s250 = scalar_select %p249, %s21, 1
      %p251 = scmp.lt.s32.totalorder %s22, 0
      %s252 = scalar_select %p251, %s22, 0
      %s253 = sadd.s32 %s252, %s250
      %s254 = smul.addr %s253, 8
      %s255 = scalar_lea.vmem %s3, %s254
      %p256 = pneg %p170
      %p257 = pneg %p167
      %p258 = scmp.lt.s32.totalorder %s21, 1
      %s259 = scalar_select %p258, %s21, 1
      %p260 = scmp.lt.s32.totalorder %s22, 0
      %s261 = scalar_select %p260, %s22, 0
      %s262 = sadd.s32 %s261, %s259
      %s263 = smul.addr %s262, 8
      %s264 = scalar_lea.vmem %s4, %s263
      %s265 = smul.u32 8, %s21
      %p266 = scmp.lt.s32.totalorder %s265, 15
      %s267 = scalar_select %p266, %s265, 15
      %p268 = scmp.lt.s32.totalorder %s23, 0
      %s269 = scalar_select %p268, %s23, 0
      %s270 = sadd.s32 %s269, %s267
      %s271 = smul.addr %s270, 4
      %s272 = scalar_lea.vmem %s0, %s271
      %s273 = smul.u32 8, %s21
      %p274 = scmp.lt.s32.totalorder %s23, 0
      %s275 = scalar_select %p274, %s23, 0
      %p276 = scmp.lt.s32.totalorder %s22, 0
      %s277 = scalar_select %p276, %s22, 0
      %s278 = sadd.s32 %s277, %s275
      %s279 = smul.addr %s278, 2
      %s280 = scalar_lea.vmem %s1, %s279
      %s281 = smul.u32 8, %s21
      %p282 = scmp.lt.s32.totalorder %s281, 15
      %s283 = scalar_select %p282, %s281, 15
      %p284 = scmp.lt.s32.totalorder %s22, 0
      %s285 = scalar_select %p284, %s22, 0
      %s286 = sadd.s32 %s285, %s283
      %s287 = smul.addr %s286, 4
      %s288 = scalar_lea.vmem %s2, %s287
      %s289 = smul.u32 8, %s21
      %p290 = scmp.lt.s32.totalorder %s21, 1
      %s291 = scalar_select %p290, %s21, 1
      %p292 = scmp.lt.s32.totalorder %s22, 0
      %s293 = scalar_select %p292, %s22, 0
      %s294 = sadd.s32 %s293, %s291
      %s295 = smul.addr %s294, 8
      %s296 = scalar_lea.vmem %s3, %s295
      %p297 = scmp.lt.s32.totalorder %s21, 1
      %s298 = scalar_select %p297, %s21, 1
      %p299 = scmp.lt.s32.totalorder %s22, 0
      %s300 = scalar_select %p299, %s22, 0
      %s301 = sadd.s32 %s300, %s298
      %s302 = smul.addr %s301, 8
      %s303 = scalar_lea.vmem %s4, %s302
      %p305 = scmp.eq.s32.totalorder %s23, 0
      // Predicated region
      $region29: #{basic_block_forward.8} parent=27 // pred_check
        %p306 = pneg %p305
      $region30: #{basic_block_forward.8} parent=27 // pred_check_branch
        %308 = sbr.rel (%p306) target = $region32
      $region31: #{basic_block_forward.8} parent=27 // pred_region
        %309 = vst [vmem:[#allocation2] sm:$0xff] 0.0
        %310 = vst [vmem:[#allocation2 + $0x8] sm:$0xff] 0.0
        %311 = vst [vmem:[#allocation2 + $0x10] sm:$0xff] 0.0
        %312 = vst [vmem:[#allocation2 + $0x18] sm:$0xff] 0.0
        %313 = vst [vmem:[#allocation2 + $0x20] sm:$0xff] 0.0
        %314 = vst [vmem:[#allocation2 + $0x28] sm:$0xff] 0.0
        %315 = vst [vmem:[#allocation2 + $0x30] sm:$0xff] 0.0
        %316 = vst [vmem:[#allocation2 + $0x38] sm:$0xff] 0.0
      $region32: #{basic_block_forward.8} parent=27 // pred_fallthru
        _
      %v317 = vld [vmem:[#allocation2] sm:$0xff]
      %v318 = vld [vmem:[#allocation2 + $0x8] sm:$0xff]
      %v319 = vld [vmem:[#allocation2 + $0x10] sm:$0xff]
      %v320 = vld [vmem:[#allocation2 + $0x18] sm:$0xff]
      %v321 = vld [vmem:[#allocation2 + $0x20] sm:$0xff]
      %v322 = vld [vmem:[#allocation2 + $0x28] sm:$0xff]
      %v323 = vld [vmem:[#allocation2 + $0x30] sm:$0xff]
      %v324 = vld [vmem:[#allocation2 + $0x38] sm:$0xff]
      %v325 = vld [vmem:[%s272] sm:$0xf]
      %v326 = vld [vmem:[%s272 + $0x4] sm:$0xf]
      %v327 = vld [vmem:[%s272 + $0x8] sm:$0xf]
      %v328 = vld [vmem:[%s272 + $0xc] sm:$0xf]
      %v329 = vld [vmem:[%s272 + $0x10] sm:$0xf]
      %v330 = vld [vmem:[%s272 + $0x14] sm:$0xf]
      %v331 = vld [vmem:[%s272 + $0x18] sm:$0xf]
      %v332 = vld [vmem:[%s272 + $0x1c] sm:$0xf]
      %v333 = vld [vmem:[%s280] sm:$0x3]
      %v342 = vunpack.c.l.b16 %v325
      %v343 = vunpack.c.l.b16 %v326
      %v344 = vunpack.c.l.b16 %v327
      %v345 = vunpack.c.l.b16 %v328
      %v346 = vunpack.c.l.b16 %v329
      %v347 = vunpack.c.l.b16 %v330
      %v348 = vunpack.c.l.b16 %v331
      %v349 = vunpack.c.l.b16 %v332
      %v350 = vpack.c.b16 %v343, %v342
      %v351 = vpack.c.b16 %v345, %v344
      %v352 = vpack.c.b16 %v347, %v346
      %v353 = vpack.c.b16 %v349, %v348
      %vm354 = vcmask 31744
      %v356 = vsel %vm354, %v350, 0
      %v359 = vsel %vm354, %v351, 0
      %v362 = vsel %vm354, %v352, 0
      %v365 = vsel %vm354, %v353, 0
      %vm367 = vcmask 1041408
      %v369 = vsel %vm367, %v333, 0
      %371 = vmatprep.subr.bf16.mxu0 0
      %372 = vmatpush1.bf16.msra.mxu0 0
      %373 = vmatprep.subr.bf16.mxu0 0
      %374 = vmatpush1.bf16.msra.mxu0 0
      %375 = vmatprep.subr.bf16.mxu0 0
      %376 = vmatpush1.bf16.msra.mxu0 0
      %377 = vmatprep.subr.bf16.mxu0 0
      %378 = vmatpush1.bf16.msra.mxu0 0
      %379 = vmatprep.subr.bf16.mxu0 0
      %380 = vmatpush1.bf16.msra.mxu0 0
      %381 = vmatprep.subr.bf16.mxu0 0
      %382 = vmatpush1.bf16.msra.mxu0 0
      %383 = vmatprep.subr.bf16.mxu0 0
      %384 = vmatpush1.bf16.msra.mxu0 0
      %385 = vmatprep.subr.bf16.mxu0 0
      %386 = vmatpush1.bf16.msra.mxu0 %v369
      %387 = vmatprep.subr.bf16.mxu0 0
      %388 = vmatpush2.bf16.msra.mxu0 0
      %389 = vmatprep.subr.bf16.mxu0 0
      %390 = vmatpush2.bf16.msra.mxu0 0
      %391 = vmatprep.subr.bf16.mxu0 0
      %392 = vmatpush2.bf16.msra.mxu0 0
      %393 = vmatprep.subr.bf16.mxu0 0
      %394 = vmatpush2.bf16.msra.mxu0 0
      %395 = vmatprep.subr.bf16.mxu0 0
      %396 = vmatpush2.bf16.msra.mxu0 0
      %397 = vmatprep.subr.bf16.mxu0 0
      %398 = vmatpush2.bf16.msra.mxu0 0
      %399 = vmatprep.subr.bf16.mxu0 0
      %400 = vmatpush2.bf16.msra.mxu0 0
      %401 = vmatprep.subr.bf16.mxu0 0
      %402 = vmatpush2.bf16.msra.mxu0 0
      %403 = vmatprep.mubr.bf16.mxu0 0
      %404 = vmatmul.mubr.bf16.gmra.mxu0 %v356
      %v405 = vpop.f32.mrf.mxu0
      %v406 = vadd.f32 0.0, %v405
      %v407 = vpop.f32.mrf.mxu0
      %v408 = vpop.f32.mrf.mxu0
      %v409 = vadd.f32 0.0, %v408
      %v410 = vpop.f32.mrf.mxu0
      %411 = vmatprep.mubr.bf16.mxu0 0
      %412 = vmatmul.mubr.bf16.gmra.mxu0 %v359
      %v413 = vpop.f32.mrf.mxu0
      %v414 = vadd.f32 0.0, %v413
      %v415 = vpop.f32.mrf.mxu0
      %v416 = vpop.f32.mrf.mxu0
      %v417 = vadd.f32 0.0, %v416
      %v418 = vpop.f32.mrf.mxu0
      %419 = vmatprep.mubr.bf16.mxu0 0
      %420 = vmatmul.mubr.bf16.gmra.mxu0 %v362
      %v421 = vpop.f32.mrf.mxu0
      %v422 = vadd.f32 0.0, %v421
      %v423 = vpop.f32.mrf.mxu0
      %v424 = vpop.f32.mrf.mxu0
      %v425 = vadd.f32 0.0, %v424
      %v426 = vpop.f32.mrf.mxu0
      %427 = vmatprep.mubr.bf16.mxu0 0
      %428 = vmatmul.mubr.bf16.gmra.mxu0 %v365
      %v429 = vpop.f32.mrf.mxu0
      %v430 = vadd.f32 0.0, %v429
      %v431 = vpop.f32.mrf.mxu0
      %v432 = vpop.f32.mrf.mxu0
      %v433 = vadd.f32 0.0, %v432
      %v434 = vpop.f32.mrf.mxu0
      %435 = vdwg.mxu0
      %v436 = vadd.f32 %v317, %v406
      %v437 = vadd.f32 %v318, %v409
      %v438 = vadd.f32 %v319, %v414
      %v439 = vadd.f32 %v320, %v417
      %v440 = vadd.f32 %v321, %v422
      %v441 = vadd.f32 %v322, %v425
      %v442 = vadd.f32 %v323, %v430
      %v443 = vadd.f32 %v324, %v433
      %444 = vst [vmem:[#allocation2] sm:$0xff] %v436
      %445 = vst [vmem:[#allocation2 + $0x8] sm:$0xff] %v437
      %446 = vst [vmem:[#allocation2 + $0x10] sm:$0xff] %v438
      %447 = vst [vmem:[#allocation2 + $0x18] sm:$0xff] %v439
      %448 = vst [vmem:[#allocation2 + $0x20] sm:$0xff] %v440
      %449 = vst [vmem:[#allocation2 + $0x28] sm:$0xff] %v441
      %450 = vst [vmem:[#allocation2 + $0x30] sm:$0xff] %v442
      %451 = vst [vmem:[#allocation2 + $0x38] sm:$0xff] %v443
      // Predicated region
      $region33: #{basic_block_forward.8} parent=27 // pred_check
        %p452 = pneg %p305
      $region34: #{basic_block_forward.8} parent=27 // pred_check_branch
        %454 = sbr.rel (%p452) target = $region36
      $region35: #{basic_block_forward.8} parent=27 // pred_region
        %v455 = vld [vmem:[#allocation2] sm:$0xff]
        %v456 = vld [vmem:[#allocation2 + $0x8] sm:$0xff]
        %v457 = vld [vmem:[#allocation2 + $0x10] sm:$0xff]
        %v458 = vld [vmem:[#allocation2 + $0x18] sm:$0xff]
        %v459 = vld [vmem:[#allocation2 + $0x20] sm:$0xff]
        %v460 = vld [vmem:[#allocation2 + $0x28] sm:$0xff]
        %v461 = vld [vmem:[#allocation2 + $0x30] sm:$0xff]
        %v462 = vld [vmem:[#allocation2 + $0x38] sm:$0xff]
        %v463 = vpack.c.bf16 %v456, %v455
        %v464 = vpack.c.bf16 %v458, %v457
        %v465 = vpack.c.bf16 %v460, %v459
        %v466 = vpack.c.bf16 %v462, %v461
        %v471 = vunpack.c.l.b16 %v463
        %v472 = vunpack.c.h.b16 %v463
        %v473 = vunpack.c.l.b16 %v464
        %v474 = vunpack.c.h.b16 %v464
        %v475 = vunpack.c.l.b16 %v465
        %v476 = vunpack.c.h.b16 %v465
        %v477 = vunpack.c.l.b16 %v466
        %v478 = vunpack.c.h.b16 %v466
        %v479 = vpack.c.b16 %v471, %v471
        %v480 = vpack.c.b16 %v472, %v472
        %v481 = vpack.c.b16 %v473, %v473
        %v482 = vpack.c.b16 %v474, %v474
        %v483 = vpack.c.b16 %v475, %v475
        %v484 = vpack.c.b16 %v476, %v476
        %v485 = vpack.c.b16 %v477, %v477
        %v486 = vpack.c.b16 %v478, %v478
        %495 = vst [vmem:[%s288] sm:$0xf] %v479
        %496 = vst [vmem:[%s288 + $0x4] sm:$0xf] %v480
        %497 = vst [vmem:[%s288 + $0x8] sm:$0xf] %v481
        %498 = vst [vmem:[%s288 + $0xc] sm:$0xf] %v482
        %499 = vst [vmem:[%s288 + $0x10] sm:$0xf] %v483
        %500 = vst [vmem:[%s288 + $0x14] sm:$0xf] %v484
        %501 = vst [vmem:[%s288 + $0x18] sm:$0xf] %v485
        %502 = vst [vmem:[%s288 + $0x1c] sm:$0xf] %v486
        %v503 = vadd.f32 %v455, %v456
        %v504 = vadd.f32 %v503, %v457
        %v505 = vadd.f32 %v504, %v458
        %v506 = vadd.f32 %v505, %v459
        %v507 = vadd.f32 %v506, %v460
        %v508 = vadd.f32 %v507, %v461
        %v509 = vadd.f32 %v508, %v462
        %v510 = vrot.slane %v509, 4
        %v511 = vadd.f32 %v509, %v510
        %v512 = vrot.slane %v511, 2
        %v513 = vadd.f32 %v511, %v512
        %v514 = vrot.slane %v513, 1
        %v515 = vadd.f32 %v513, %v514
        %v516 = vmul.f32 %v455, %v455
        %v517 = vmul.f32 %v456, %v456
        %v518 = vmul.f32 %v457, %v457
        %v519 = vmul.f32 %v458, %v458
        %v520 = vmul.f32 %v459, %v459
        %v521 = vmul.f32 %v460, %v460
        %v522 = vmul.f32 %v461, %v461
        %v523 = vmul.f32 %v462, %v462
        %v524 = vadd.f32 %v516, %v517
        %v525 = vadd.f32 %v524, %v518
        %v526 = vadd.f32 %v525, %v519
        %v527 = vadd.f32 %v526, %v520
        %v528 = vadd.f32 %v527, %v521
        %v529 = vadd.f32 %v528, %v522
        %v530 = vadd.f32 %v529, %v523
        %v531 = vrot.slane %v530, 4
        %v532 = vadd.f32 %v530, %v531
        %v533 = vrot.slane %v532, 2
        %v534 = vadd.f32 %v532, %v533
        %v535 = vrot.slane %v534, 1
        %v536 = vadd.f32 %v534, %v535
        %537 = vst [vmem:[%s296] sm:$0xff] %v515
        %538 = vst [vmem:[%s303] sm:$0xff] %v536
      $region36: #{basic_block_forward.8} parent=27 // pred_fallthru
        _
      %s539 = smul.u32 8, %s21
      %p540 = scmp.lt.s32.totalorder %s539, 15
      %s541 = scalar_select %p540, %s539, 15
      %p542 = scmp.lt.s32.totalorder %s22, 0
      %s543 = scalar_select %p542, %s22, 0
      %s544 = sadd.s32 %s543, %s541
      %s545 = smul.addr %s544, 4
      %s546 = scalar_lea.vmem %s2, %s545
      %p547 = scmp.lt.s32.totalorder %s21, 1
      %s548 = scalar_select %p547, %s21, 1
      %p549 = scmp.lt.s32.totalorder %s22, 0
      %s550 = scalar_select %p549, %s22, 0
      %s551 = sadd.s32 %s550, %s548
      %s552 = smul.addr %s551, 8
      %s553 = scalar_lea.vmem %s3, %s552
      %p554 = scmp.lt.s32.totalorder %s21, 1
      %s555 = scalar_select %p554, %s21, 1
      %p556 = scmp.lt.s32.totalorder %s22, 0
      %s557 = scalar_select %p556, %s22, 0
      %s558 = sadd.s32 %s557, %s555
      %s559 = smul.addr %s558, 8
      %s560 = scalar_lea.vmem %s4, %s559
      // Predicated region
      $region37: #{basic_block_forward.8} parent=27 // pred_check
        %p561 = pneg %p111
      $region38: #{basic_block_forward.8} parent=27 // pred_check_branch
        %563 = sbr.rel (%p561) target = $region40
      $region39: #{basic_block_forward.8} parent=27 // pred_region
        %s564 = smul.u32 8, %s21
      $region40: #{basic_block_forward.8} parent=27 // pred_fallthru
        _
      // Predicated region
      $region41: #{basic_block_forward.8} parent=27 // pred_check
        %p565 = pneg %p139
      $region42: #{basic_block_forward.8} parent=27 // pred_check_branch
        %567 = sbr.rel (%p565) target = $region44
      $region43: #{basic_block_forward.8} parent=27 // pred_region
        _
      $region44: #{basic_block_forward.8} parent=27 // pred_fallthru
        _
      // Predicated region
      $region45: #{basic_block_forward.8} parent=27 // pred_check
        %p568 = pneg %p167
      $region46: #{basic_block_forward.8} parent=27 // pred_check_branch
        %570 = sbr.rel (%p568) target = $region48
      $region47: #{basic_block_forward.8} parent=27 // pred_region
        _
      $region48: #{basic_block_forward.8} parent=27 // pred_fallthru
        _
    $region28: #{basic_block_forward.8} parent=5 // pred_fallthru
      _
    %p571 = scmp.le.s32.totalorder 2, %s11
    // Predicated region
    $region49: #{basic_block_forward.8} parent=5 // pred_check
      %p572 = pneg %p571
    $region50: #{basic_block_forward.8} parent=5 // pred_check_branch
      %574 = sbr.rel (%p572) target = $region52
    $region51: #{basic_block_forward.8} parent=5 // pred_region
      %s575 = ssub.s32 %s11, 2
      // Predicated region
      $region53: #{basic_block_forward.8} parent=51 // pred_check
        %p576 = pneg %p117
      $region54: #{basic_block_forward.8} parent=51 // pred_check_branch
        %578 = sbr.rel (%p576) target = $region56
      $region55: #{basic_block_forward.8} parent=51 // pred_region
        %s579 = smul.u32 8, %s24
        %p580 = scmp.lt.s32.totalorder %s579, 15
        %s581 = scalar_select %p580, %s579, 15
        %p582 = scmp.lt.s32.totalorder %s25, 0
        %s583 = scalar_select %p582, %s25, 0
        %s584 = sadd.s32 %s583, %s581
        %s585 = smul.addr %s584, 4
        %s586 = scalar_lea.vmem %s2, %s585
      $region56: #{basic_block_forward.8} parent=51 // pred_fallthru
        _
      // Predicated region
      $region57: #{basic_block_forward.8} parent=51 // pred_check
        %p587 = pneg %p145
      $region58: #{basic_block_forward.8} parent=51 // pred_check_branch
        %589 = sbr.rel (%p587) target = $region60
      $region59: #{basic_block_forward.8} parent=51 // pred_region
        %p590 = scmp.lt.s32.totalorder %s24, 1
        %s591 = scalar_select %p590, %s24, 1
        %p592 = scmp.lt.s32.totalorder %s25, 0
        %s593 = scalar_select %p592, %s25, 0
        %s594 = sadd.s32 %s593, %s591
        %s595 = smul.addr %s594, 8
        %s596 = scalar_lea.vmem %s3, %s595
      $region60: #{basic_block_forward.8} parent=51 // pred_fallthru
        _
      // Predicated region
      $region61: #{basic_block_forward.8} parent=51 // pred_check
        %p597 = pneg %p173
      $region62: #{basic_block_forward.8} parent=51 // pred_check_branch
        %599 = sbr.rel (%p597) target = $region64
      $region63: #{basic_block_forward.8} parent=51 // pred_region
        %p600 = scmp.lt.s32.totalorder %s24, 1
        %s601 = scalar_select %p600, %s24, 1
        %p602 = scmp.lt.s32.totalorder %s25, 0
        %s603 = scalar_select %p602, %s25, 0
        %s604 = sadd.s32 %s603, %s601
        %s605 = smul.addr %s604, 8
        %s606 = scalar_lea.vmem %s4, %s605
      $region64: #{basic_block_forward.8} parent=51 // pred_fallthru
        _
    $region52: #{basic_block_forward.8} parent=5 // pred_fallthru
      _
  $region6: #{basic_block_forward.8} parent=0 // loop_footer
    %s15 = sadd.s32 1, %s11
  $region7: #{basic_block_forward.8} parent=0 // loop_footer_branch
    %10 = sbr.rel target = $region3
  $region8: #{basic_block_forward.8} parent=0 // loop_exit
    _

</llo_original>
